<compile_context>
chip_gen: v6e
topology: v6e:2x2x1
jax: 0.10.0
libtpu: 0.0.40
codegen_flags: <defaults>
</compile_context>

<pallas_src>
import functools
import math

import jax
import jax.numpy as jnp
from jax import lax
from jax.experimental import pallas as pl
from jax.experimental.pallas import tpu as pltpu

_HID = 64
_INV_SQRT_DK = 1.0 / math.sqrt(64.0)   # d_k_obs_act = 64 in the torch module


# ----------------------------- in-kernel math ------------------------------

def _gelu(x):
    # tanh-GELU: transcendental goes to the EUP slot instead of ~10 VALU ops.
    c = 0.7978845608028654  # sqrt(2/pi)
    return 0.5 * x * (1.0 + jnp.tanh(c * (x + 0.044715 * x * x * x)))


def _layer_norm(x, g, b, eps=1e-5):
    mu = jnp.mean(x, axis=-1, keepdims=True)
    var = jnp.mean((x - mu) * (x - mu), axis=-1, keepdims=True)
    return (x - mu) * lax.rsqrt(var + eps) * g + b


# --------------------------------- kernel ----------------------------------

def _critic_kernel(n, tb, dp, sap_ref, w128_ref, w64_ref, vecs_ref, out_ref):
    f32 = jnp.float32
    hid = _HID
    ntb = n * tb
    dot = lambda a, b: jnp.dot(a, b, preferred_element_type=f32)

    sap = sap_ref[0]                                   # (2*ntb, dp), agent-major rows
    oa = sap[0:ntb, :]                                 # [states | actions] half

    # packed weights (all row offsets are multiples of 8)
    w_in = w128_ref[0:dp, :]                           # [w_se | w_ca], zero rows on action dims
    w_kq = w128_ref[dp:dp + hid, :]                    # [w_key | w_qry]
    w_sap = w64_ref[0:dp, :]
    w_av = w64_ref[dp:dp + hid, :]
    w_f1a = w64_ref[dp + hid:dp + 2 * hid, :]          # fc1 half on curr-agent features
    w_f1b = w64_ref[dp + 2 * hid:dp + 3 * hid, :]      # fc1 half on node features
    w_f2 = w64_ref[dp + 3 * hid:dp + 4 * hid, :]

    b_in = vecs_ref[0:1, :]                            # [b_se | b_ca] (1,128)
    b_kq = vecs_ref[1:2, :]                            # [b_key | b_qry]
    b_sap = vecs_ref[2:3, 0:hid]
    b_av = vecs_ref[3:4, 0:hid]
    b_f1 = vecs_ref[4:5, 0:hid]
    b_f2 = vecs_ref[5:6, 0:hid]
    ln1_g = vecs_ref[6:7, 0:hid]
    ln1_b = vecs_ref[7:8, 0:hid]
    ln2_g = vecs_ref[8:9, 0:hid]
    ln2_b = vecs_ref[9:10, 0:hid]
    w_f3 = vecs_ref[10:11, 0:hid]
    b_f3 = vecs_ref[11:12, 0:1]

    # ---- per-agent embeddings (rows = (agent, example)) --------------------
    sc = _gelu(dot(oa, w_in) + b_in)                   # [state_embed | curr_agent_embed]
    se, ca = sc[:, 0:hid], sc[:, hid:2 * hid]
    kq = _gelu(dot(se, w_kq) + b_kq)                   # [key | query]
    key, qry = kq[:, 0:hid], kq[:, hid:2 * hid]

    emb2 = _gelu(dot(sap, w_sap) + b_sap)              # (2*ntb, 64) action/policy branches
    av2 = _gelu(dot(emb2, w_av) + b_av)
    emb_a = emb2[0:ntb, :]
    d_emb = emb2[ntb:2 * ntb, :] - emb_a
    av_a = av2[0:ntb, :]
    d_av = av2[ntb:2 * ntb, :] - av_a

    ca_ln = _layer_norm(ca + se, ln2_g, ln2_b)         # (ntb, 64)
    y_ca = dot(ca_ln, w_f1a) + b_f1                    # curr-agent half of fc1 (N-fold fewer rows)

    # ---- per-example attention + pair-row (b,p,q) construction -------------
    # All expansions are static slices of agent-major blocks; diag(p==q) is a
    # compile-time branch.  exact delta decomposition:
    #   x[b,p,q] = emb_a[b,q] + [p==q]*(emb_p-emb_a)[b,q]
    #              + sum_j att[b,p,j]*av_a[b,j] + att[b,p,q]*(av_p-av_a)[b,q]
    zpad = jnp.zeros((tb, 7), f32)
    x_blocks, y_blocks, w_blocks = [], [], []
    for p in range(n):
        qp = qry[p * tb:(p + 1) * tb, :]
        cols = [jnp.sum(qp * key[q * tb:(q + 1) * tb, :], axis=-1, keepdims=True)
                for q in range(n)]
        logits = jnp.concatenate(cols, axis=1) * _INV_SQRT_DK          # (tb, n)
        logits = logits - jnp.max(logits, axis=-1, keepdims=True)
        e = jnp.exp(logits)
        att_p = e / jnp.sum(e, axis=-1, keepdims=True)                  # softmax over n lanes

        na_p = jnp.zeros((tb, hid), f32)                                # sum_j att*av_a
        for j in range(n):
            na_p = na_p + att_p[:, j:j + 1] * av_a[j * tb:(j + 1) * tb, :]

        yp = y_ca[p * tb:(p + 1) * tb, :]
        for q in range(n):
            att_c = att_p[:, q:q + 1]
            x = (emb_a[q * tb:(q + 1) * tb, :] + na_p
                 + att_c * d_av[q * tb:(q + 1) * tb, :])
            if p == q:
                x = x + d_emb[q * tb:(q + 1) * tb, :]
            x_blocks.append(x)
            y_blocks.append(yp)
            w_blocks.append(jnp.concatenate([att_c, zpad], axis=1))

    nf = jnp.concatenate(x_blocks, axis=0)             # (tbnn, 64), rows (p, q, example)
    y1 = jnp.concatenate(y_blocks, axis=0)             # (tbnn, 64)
    att8 = jnp.concatenate(w_blocks, axis=0)           # (tbnn, 8), att value in lane 0

    # ---- final value MLP -----------------------------------------------------
    nf_ln = _layer_norm(nf, ln1_g, ln1_b)
    h1 = _gelu(dot(nf_ln, w_f1b) + y1)
    h2 = _gelu(dot(h1, w_f2) + b_f2)

    # lane-dense (1, tbnn) rows via M=1 dot_generals (MXU transpose idiom)
    tdims = (((1,), (1,)), ((), ()))
    val_row = lax.dot_general(w_f3, h2, tdims, preferred_element_type=f32) + b_f3
    wgt_row = lax.dot_general(jnp.ones((1, 8), f32), att8, tdims,
                              preferred_element_type=f32)
    out_ref[0] = jnp.concatenate([val_row, wgt_row], axis=0)            # (2, tbnn)


# --------------------------- parameter helpers ------------------------------

def _init_params(key, obs_dim, obs_act_dim):
    def xavier(k, fan_in, fan_out):
        a = math.sqrt(6.0 / (fan_in + fan_out))
        return jax.random.uniform(k, (fan_in, fan_out), jnp.float32, -a, a)

    def bias(k, fan_in, fan_out):
        a = 1.0 / math.sqrt(fan_in)
        return jax.random.uniform(k, (1, fan_out), jnp.float32, -a, a)

    ks = iter(jax.random.split(key, 20))
    p = {}
    p["w_se"], p["b_se"] = xavier(next(ks), obs_dim, _HID), bias(next(ks), obs_dim, _HID)
    p["w_key"], p["b_key"] = xavier(next(ks), _HID, _HID), bias(next(ks), _HID, _HID)
    p["w_qry"], p["b_qry"] = xavier(next(ks), _HID, _HID), bias(next(ks), _HID, _HID)
    p["w_sap"], p["b_sap"] = xavier(next(ks), obs_act_dim, _HID), bias(next(ks), obs_act_dim, _HID)
    p["w_av"], p["b_av"] = xavier(next(ks), _HID, _HID), bias(next(ks), _HID, _HID)
    p["ln1_g"], p["ln1_b"] = jnp.ones((1, _HID), jnp.float32), jnp.zeros((1, _HID), jnp.float32)
    p["w_ca"], p["b_ca"] = xavier(next(ks), obs_dim, _HID), bias(next(ks), obs_dim, _HID)
    p["ln2_g"], p["ln2_b"] = jnp.ones((1, _HID), jnp.float32), jnp.zeros((1, _HID), jnp.float32)
    p["w_f1"], p["b_f1"] = xavier(next(ks), 2 * _HID, _HID), bias(next(ks), 2 * _HID, _HID)
    p["w_f2"], p["b_f2"] = xavier(next(ks), _HID, _HID), bias(next(ks), _HID, _HID)
    p["w_f3"], p["b_f3"] = xavier(next(ks), _HID, 1), bias(next(ks), _HID, 1)
    return p


# ------------------------------ host wrapper --------------------------------

@functools.partial(jax.jit, static_argnames=("tb",))
def transformer_critic_forward(params, states, policies, actions, *, tb=None):
    B, N, Dobs = states.shape
    A = actions.shape[-1]
    D2 = Dobs + A
    Dp = -(-D2 // 8) * 8
    f32 = jnp.float32

    if tb is None:
        # two grid steps when the batch allows it (v7x has 2 TensorCores),
        # tile size a multiple of 8 rows, capped so pair slabs stay small.
        half = -(-B // 2)
        tb = max(8, min(128, -(-half // 8) * 8))
    steps = -(-B // tb)
    Bpad = steps * tb
    pad = Bpad - B
    ntb, tbnn = N * tb, N * N * tb

    def prep(x):
        return jnp.pad(x, ((0, pad), (0, 0), (0, 0))) if pad else x

    st, po, ac = prep(states), prep(policies), prep(actions)
    oa = jnp.concatenate([st, ac], axis=-1)            # (Bpad, N, D2)
    op = jnp.concatenate([st, po], axis=-1)

    def tileize(x):                                    # -> (steps, N*tb, Dp) agent-major
        x = jnp.pad(x, ((0, 0), (0, 0), (0, Dp - D2)))
        return x.reshape(steps, tb, N, Dp).transpose(0, 2, 1, 3).reshape(steps, ntb, Dp)

    sap = jnp.concatenate([tileize(oa), tileize(op)], axis=1)   # (steps, 2*ntb, Dp)

    # ---- packed parameter slabs (8-aligned row offsets, one DMA each) -------
    def padrows(w):
        return jnp.pad(w, ((0, Dp - w.shape[0]), (0, 0)))

    w128 = jnp.concatenate([
        jnp.concatenate([padrows(params["w_se"]), padrows(params["w_ca"])], axis=1),
        jnp.concatenate([params["w_key"], params["w_qry"]], axis=1)], axis=0)   # (Dp+64, 128)
    w64 = jnp.concatenate([
        padrows(params["w_sap"]), params["w_av"],
        params["w_f1"][:_HID], params["w_f1"][_HID:], params["w_f2"]], axis=0)  # (Dp+256, 64)

    def row128(v):
        return jnp.pad(v, ((0, 0), (0, 2 * _HID - v.shape[1])))

    vecs = jnp.concatenate([
        jnp.concatenate([params["b_se"], params["b_ca"]], axis=1),
        jnp.concatenate([params["b_key"], params["b_qry"]], axis=1),
        row128(params["b_sap"]), row128(params["b_av"]),
        row128(params["b_f1"]), row128(params["b_f2"]),
        row128(params["ln1_g"]), row128(params["ln1_b"]),
        row128(params["ln2_g"]), row128(params["ln2_b"]),
        row128(params["w_f3"].reshape(1, _HID)),
        row128(jnp.full((1, _HID), params["b_f3"][0, 0], f32)),
    ], axis=0)                                                                   # (12, 128)

    in_specs = [
        pl.BlockSpec((1, 2 * ntb, Dp), lambda i: (i, 0, 0)),
        pl.BlockSpec(w128.shape, lambda i: (0, 0)),
        pl.BlockSpec(w64.shape, lambda i: (0, 0)),
        pl.BlockSpec(vecs.shape, lambda i: (0, 0)),
    ]
    out_specs = pl.BlockSpec((1, 2, tbnn), lambda i: (i, 0, 0))
    out_shape = jax.ShapeDtypeStruct((steps, 2, tbnn), f32)

    macs = (ntb * Dp * 2 * _HID + ntb * _HID * 2 * _HID
            + 2 * ntb * Dp * _HID + 2 * ntb * _HID * _HID + ntb * _HID * _HID
            + 2 * N * N * tb * _HID
            + 2 * tbnn * _HID * _HID + tbnn * _HID + tbnn * 8)
    cost = pl.CostEstimate(
        flops=int(2 * macs * steps),
        transcendentals=int(steps * (4 * ntb * _HID + 4 * ntb * _HID
                                     + 2 * tbnn * _HID + 2 * tbnn + ntb)),
        bytes_accessed=int(4 * (sap.size + steps * (w128.size + w64.size + vecs.size)
                                + steps * 2 * tbnn)))

    out = pl.pallas_call(
        functools.partial(_critic_kernel, N, tb, Dp),
        out_shape=out_shape,
        grid=(steps,),
        in_specs=in_specs,
        out_specs=out_specs,
        compiler_params=pltpu.CompilerParams(dimension_semantics=("parallel",)),
        cost_estimate=cost,
    )(sap, w128, w64, vecs)

    # unscramble lanes (p, q, example) -> (B, N, N)
    flat = out.reshape(steps, 2, N, N, tb).transpose(0, 4, 1, 2, 3).reshape(Bpad, 2, N, N)
    value = flat[:B, 0][..., None]                     # (B, N, N, 1)
    ret_weight = flat[:B, 1]                           # (B, N, N)
    return value, ret_weight


# ------------------------- pure-JAX reference (check) -----------------------

def _reference_forward(p, states, policies, actions, *, approximate_gelu=False):
    hp = jax.lax.Precision.HIGHEST
    gelu = lambda x: jax.nn.gelu(x, approximate=approximate_gelu)

    def ln(x, g, b):
        mu = jnp.mean(x, -1, keepdims=True)
        var = jnp.mean((x - mu) ** 2, -1, keepdims=True)
        return (x - mu) * jax.lax.rsqrt(var + 1e-5) * g.reshape(-1) + b.reshape(-1)

    mm = lambda x, w: jnp.matmul(x, w, precision=hp)
    B, N, _ = states.shape

    se = gelu(mm(states, p["w_se"]) + p["b_se"][0])
    key = gelu(mm(se, p["w_key"]) + p["b_key"][0])
    qry = gelu(mm(se, p["w_qry"]) + p["b_qry"][0])
    weight = jax.nn.softmax(
        jnp.einsum("bnd,bmd->bnm", qry, key, precision=hp) / math.sqrt(64.0), axis=-1)

    oa = jnp.concatenate([states, actions], -1)
    opol = jnp.concatenate([states, policies], -1)
    D2 = oa.shape[-1]
    oa_r = jnp.broadcast_to(oa[:, None, :, :], (B, N, N, D2))
    op_r = jnp.broadcast_to(opol[:, None, :, :], (B, N, N, D2))
    eye = jnp.eye(N, dtype=states.dtype)[None, :, :, None]
    oap = eye * op_r + (1.0 - eye) * oa_r

    emb = gelu(mm(oap, p["w_sap"]) + p["b_sap"][0])
    av = gelu(mm(emb, p["w_av"]) + p["b_av"][0])
    nf = jnp.einsum("bpj,bqjd->bpqd", weight, av, precision=hp)
    nf_ln = ln(emb + nf, p["ln1_g"], p["ln1_b"])

    ca = gelu(mm(states, p["w_ca"]) + p["b_ca"][0])
    ca_ln = ln(ca + se, p["ln2_g"], p["ln2_b"])
    cat = jnp.concatenate(
        [jnp.broadcast_to(ca_ln[:, :, None, :], (B, N, N, _HID)), nf_ln], axis=-1)

    h1 = gelu(mm(cat, p["w_f1"]) + p["b_f1"][0])
    h2 = gelu(mm(h1, p["w_f2"]) + p["b_f2"][0])
    v = mm(h2, p["w_f3"]) + p["b_f3"][0]
    return v, weight


# ----------------------------------- main -----------------------------------

if __name__ == "__main__":
    B, N = 32, 4                       # batch, num_agents
    obs_dim, num_actions = 16, 4
    obs_act_dim = obs_dim + num_actions

    root = jax.random.PRNGKey(0)
    kp, ks, kpol, kact = jax.random.split(root, 4)

    params = _init_params(kp, obs_dim, obs_act_dim)
    states = jax.random.normal(ks, (B, N, obs_dim), jnp.float32)
    policies = jax.nn.softmax(
        jax.random.normal(kpol, (B, N, num_actions), jnp.float32), axis=-1)
    actions = jax.nn.one_hot(
        jax.random.randint(kact, (B, N), 0, num_actions), num_actions, dtype=jnp.float32)

    # default tb=16 -> grid=(2,), 256 lane-dense pair rows per step
    value, ret_weight = transformer_critic_forward(params, states, policies, actions)
    jax.block_until_ready((value, ret_weight))
    assert value.shape == (B, N, N, 1) and ret_weight.shape == (B, N, N)

    # tight check vs a reference using the same tanh-GELU (verifies the kernel)
    v_t, w_t = _reference_forward(params, states, policies, actions, approximate_gelu=True)
    assert bool(jnp.allclose(value[..., 0], v_t[..., 0], atol=5e-3, rtol=5e-3)), \
        float(jnp.max(jnp.abs(value - v_t)))
    assert bool(jnp.allclose(ret_weight, w_t, atol=5e-3, rtol=5e-3)), \
        float(jnp.max(jnp.abs(ret_weight - w_t)))

    # looser check vs torch-exact (erf) GELU semantics
    v_e, w_e = _reference_forward(params, states, policies, actions, approximate_gelu=False)
    assert bool(jnp.allclose(value, v_e, atol=2e-2, rtol=2e-2)), \
        float(jnp.max(jnp.abs(value - v_e)))
    assert bool(jnp.allclose(ret_weight, w_e, atol=2e-2, rtol=2e-2)), \
        float(jnp.max(jnp.abs(ret_weight - w_e)))

    # batch not divisible by the tile: exercises the padding path (tb=8, grid=(1,))
    B2 = 5
    v2, w2 = transformer_critic_forward(params, states[:B2], policies[:B2], actions[:B2])
    jax.block_until_ready((v2, w2))
    assert v2.shape == (B2, N, N, 1) and w2.shape == (B2, N, N)
    assert bool(jnp.allclose(v2, v_t[:B2], atol=5e-3, rtol=5e-3)), \
        float(jnp.max(jnp.abs(v2 - v_t[:B2])))
    assert bool(jnp.allclose(w2, w_t[:B2], atol=5e-3, rtol=5e-3)), \
        float(jnp.max(jnp.abs(w2 - w_t[:B2])))

    print("KERNEL_OK")
</pallas_src>

<mosaic_0001>
module attributes {stable_mosaic.version = 11 : i64} {
  func.func @_critic_kernel(%arg0: i32, %arg1: memref<1x128x24xf32, #tpu.memory_space<vmem>>, %arg2: memref<88x128xf32, #tpu.memory_space<vmem>>, %arg3: memref<280x64xf32, #tpu.memory_space<vmem>>, %arg4: memref<12x128xf32, #tpu.memory_space<vmem>>, %arg5: memref<1x2x256xf32, #tpu.memory_space<vmem>>) attributes {dimension_semantics = [#tpu.dimension_semantics<parallel>], iteration_bounds = array<i64: 2>, scalar_prefetch = 0 : i64, scratch_operands = 0 : i64, tpu.core_type = #tpu.core_type<tc>, window_params = [{transform_indices = @transform_0, window_bounds = array<i64: 1, 128, 24>}, {pipeline_mode = #tpu.pipeline_mode<synchronous>, transform_indices = @transform_1, window_bounds = array<i64: 88, 128>}, {pipeline_mode = #tpu.pipeline_mode<synchronous>, transform_indices = @transform_2, window_bounds = array<i64: 280, 64>}, {pipeline_mode = #tpu.pipeline_mode<synchronous>, transform_indices = @transform_3, window_bounds = array<i64: 12, 128>}, {transform_indices = @transform_4, window_bounds = array<i64: 1, 2, 256>}]} {
    %c0 = arith.constant 0 : index
    %c0_0 = arith.constant 0 : index
    %c0_1 = arith.constant 0 : index
    %0 = vector.load %arg1[%c0, %c0_0, %c0_1] : memref<1x128x24xf32, #tpu.memory_space<vmem>>, vector<1x128x24xf32>
    %1 = vector.shape_cast %0 : vector<1x128x24xf32> to vector<128x24xf32>
    %2 = vector.extract_strided_slice %1 {offsets = [0, 0], sizes = [64, 24], strides = [1, 1]} : vector<128x24xf32> to vector<64x24xf32>
    %c0_2 = arith.constant 0 : index
    %c0_3 = arith.constant 0 : index
    %3 = vector.load %arg2[%c0_2, %c0_3] : memref<88x128xf32, #tpu.memory_space<vmem>>, vector<24x128xf32>
    %c24 = arith.constant 24 : index
    %c0_4 = arith.constant 0 : index
    %4 = vector.load %arg2[%c24, %c0_4] : memref<88x128xf32, #tpu.memory_space<vmem>>, vector<64x128xf32>
    %c0_5 = arith.constant 0 : index
    %c0_6 = arith.constant 0 : index
    %5 = vector.load %arg3[%c0_5, %c0_6] : memref<280x64xf32, #tpu.memory_space<vmem>>, vector<24x64xf32>
    %c24_7 = arith.constant 24 : index
    %c0_8 = arith.constant 0 : index
    %6 = vector.load %arg3[%c24_7, %c0_8] : memref<280x64xf32, #tpu.memory_space<vmem>>, vector<64x64xf32>
    %c88 = arith.constant 88 : index
    %c0_9 = arith.constant 0 : index
    %7 = vector.load %arg3[%c88, %c0_9] : memref<280x64xf32, #tpu.memory_space<vmem>>, vector<64x64xf32>
    %c152 = arith.constant 152 : index
    %c0_10 = arith.constant 0 : index
    %8 = vector.load %arg3[%c152, %c0_10] : memref<280x64xf32, #tpu.memory_space<vmem>>, vector<64x64xf32>
    %c216 = arith.constant 216 : index
    %c0_11 = arith.constant 0 : index
    %9 = vector.load %arg3[%c216, %c0_11] : memref<280x64xf32, #tpu.memory_space<vmem>>, vector<64x64xf32>
    %c0_12 = arith.constant 0 : index
    %c0_13 = arith.constant 0 : index
    %10 = vector.load %arg4[%c0_12, %c0_13] : memref<12x128xf32, #tpu.memory_space<vmem>>, vector<1x128xf32>
    %c1 = arith.constant 1 : index
    %c0_14 = arith.constant 0 : index
    %11 = vector.load %arg4[%c1, %c0_14] : memref<12x128xf32, #tpu.memory_space<vmem>>, vector<1x128xf32>
    %c2 = arith.constant 2 : index
    %c0_15 = arith.constant 0 : index
    %12 = vector.load %arg4[%c2, %c0_15] : memref<12x128xf32, #tpu.memory_space<vmem>>, vector<1x64xf32>
    %c3 = arith.constant 3 : index
    %c0_16 = arith.constant 0 : index
    %13 = vector.load %arg4[%c3, %c0_16] : memref<12x128xf32, #tpu.memory_space<vmem>>, vector<1x64xf32>
    %c4 = arith.constant 4 : index
    %c0_17 = arith.constant 0 : index
    %14 = vector.load %arg4[%c4, %c0_17] : memref<12x128xf32, #tpu.memory_space<vmem>>, vector<1x64xf32>
    %c5 = arith.constant 5 : index
    %c0_18 = arith.constant 0 : index
    %15 = vector.load %arg4[%c5, %c0_18] : memref<12x128xf32, #tpu.memory_space<vmem>>, vector<1x64xf32>
    %c6 = arith.constant 6 : index
    %c0_19 = arith.constant 0 : index
    %16 = vector.load %arg4[%c6, %c0_19] : memref<12x128xf32, #tpu.memory_space<vmem>>, vector<1x64xf32>
    %c7 = arith.constant 7 : index
    %c0_20 = arith.constant 0 : index
    %17 = vector.load %arg4[%c7, %c0_20] : memref<12x128xf32, #tpu.memory_space<vmem>>, vector<1x64xf32>
    %c8 = arith.constant 8 : index
    %c0_21 = arith.constant 0 : index
    %18 = vector.load %arg4[%c8, %c0_21] : memref<12x128xf32, #tpu.memory_space<vmem>>, vector<1x64xf32>
    %c9 = arith.constant 9 : index
    %c0_22 = arith.constant 0 : index
    %19 = vector.load %arg4[%c9, %c0_22] : memref<12x128xf32, #tpu.memory_space<vmem>>, vector<1x64xf32>
    %c10 = arith.constant 10 : index
    %c0_23 = arith.constant 0 : index
    %20 = vector.load %arg4[%c10, %c0_23] : memref<12x128xf32, #tpu.memory_space<vmem>>, vector<1x64xf32>
    %c11 = arith.constant 11 : index
    %c0_24 = arith.constant 0 : index
    %21 = vector.load %arg4[%c11, %c0_24] : memref<12x128xf32, #tpu.memory_space<vmem>>, vector<1x1xf32>
    %cst = arith.constant dense<0.000000e+00> : vector<64x128xf32>
    %22 = tpu.matmul %2, %3, %cst {dimension_numbers = #tpu.dot_dimension_numbers<[1], [0], [0], [1], [0, 0, 1, 1], [], []>} : vector<64x24xf32>, vector<24x128xf32>, vector<64x128xf32> -> vector<64x128xf32>
    %23 = vector.broadcast %10 : vector<1x128xf32> to vector<64x128xf32>
    %24 = arith.addf %22, %23 : vector<64x128xf32>
    %cst_25 = arith.constant 5.000000e-01 : f32
    %25 = vector.broadcast %cst_25 : f32 to vector<64x128xf32>
    %26 = arith.mulf %25, %24 : vector<64x128xf32>
    %cst_26 = arith.constant 4.471500e-02 : f32
    %27 = vector.broadcast %cst_26 : f32 to vector<64x128xf32>
    %28 = arith.mulf %27, %24 : vector<64x128xf32>
    %29 = arith.mulf %28, %24 : vector<64x128xf32>
    %30 = arith.mulf %29, %24 : vector<64x128xf32>
    %31 = arith.addf %24, %30 : vector<64x128xf32>
    %cst_27 = arith.constant 0.797884583 : f32
    %32 = vector.broadcast %cst_27 : f32 to vector<64x128xf32>
    %33 = arith.mulf %32, %31 : vector<64x128xf32>
    %34 = math.tanh %33 : vector<64x128xf32>
    %cst_28 = arith.constant 1.000000e+00 : f32
    %35 = vector.broadcast %cst_28 : f32 to vector<64x128xf32>
    %36 = arith.addf %35, %34 : vector<64x128xf32>
    %37 = arith.mulf %26, %36 : vector<64x128xf32>
    %38 = vector.extract_strided_slice %37 {offsets = [0, 0], sizes = [64, 64], strides = [1, 1]} : vector<64x128xf32> to vector<64x64xf32>
    %39 = vector.extract_strided_slice %37 {offsets = [0, 64], sizes = [64, 64], strides = [1, 1]} : vector<64x128xf32> to vector<64x64xf32>
    %cst_29 = arith.constant dense<0.000000e+00> : vector<64x128xf32>
    %40 = tpu.matmul %38, %4, %cst_29 {dimension_numbers = #tpu.dot_dimension_numbers<[1], [0], [0], [1], [0, 0, 1, 1], [], []>} : vector<64x64xf32>, vector<64x128xf32>, vector<64x128xf32> -> vector<64x128xf32>
    %41 = vector.broadcast %11 : vector<1x128xf32> to vector<64x128xf32>
    %42 = arith.addf %40, %41 : vector<64x128xf32>
    %cst_30 = arith.constant 5.000000e-01 : f32
    %43 = vector.broadcast %cst_30 : f32 to vector<64x128xf32>
    %44 = arith.mulf %43, %42 : vector<64x128xf32>
    %cst_31 = arith.constant 4.471500e-02 : f32
    %45 = vector.broadcast %cst_31 : f32 to vector<64x128xf32>
    %46 = arith.mulf %45, %42 : vector<64x128xf32>
    %47 = arith.mulf %46, %42 : vector<64x128xf32>
    %48 = arith.mulf %47, %42 : vector<64x128xf32>
    %49 = arith.addf %42, %48 : vector<64x128xf32>
    %cst_32 = arith.constant 0.797884583 : f32
    %50 = vector.broadcast %cst_32 : f32 to vector<64x128xf32>
    %51 = arith.mulf %50, %49 : vector<64x128xf32>
    %52 = math.tanh %51 : vector<64x128xf32>
    %cst_33 = arith.constant 1.000000e+00 : f32
    %53 = vector.broadcast %cst_33 : f32 to vector<64x128xf32>
    %54 = arith.addf %53, %52 : vector<64x128xf32>
    %55 = arith.mulf %44, %54 : vector<64x128xf32>
    %56 = vector.extract_strided_slice %55 {offsets = [0, 0], sizes = [64, 64], strides = [1, 1]} : vector<64x128xf32> to vector<64x64xf32>
    %57 = vector.extract_strided_slice %55 {offsets = [0, 64], sizes = [64, 64], strides = [1, 1]} : vector<64x128xf32> to vector<64x64xf32>
    %cst_34 = arith.constant dense<0.000000e+00> : vector<128x64xf32>
    %58 = tpu.matmul %1, %5, %cst_34 {dimension_numbers = #tpu.dot_dimension_numbers<[1], [0], [0], [1], [0, 0, 1, 1], [], []>} : vector<128x24xf32>, vector<24x64xf32>, vector<128x64xf32> -> vector<128x64xf32>
    %59 = vector.broadcast %12 : vector<1x64xf32> to vector<128x64xf32>
    %60 = arith.addf %58, %59 : vector<128x64xf32>
    %cst_35 = arith.constant 5.000000e-01 : f32
    %61 = vector.broadcast %cst_35 : f32 to vector<128x64xf32>
    %62 = arith.mulf %61, %60 : vector<128x64xf32>
    %cst_36 = arith.constant 4.471500e-02 : f32
    %63 = vector.broadcast %cst_36 : f32 to vector<128x64xf32>
    %64 = arith.mulf %63, %60 : vector<128x64xf32>
    %65 = arith.mulf %64, %60 : vector<128x64xf32>
    %66 = arith.mulf %65, %60 : vector<128x64xf32>
    %67 = arith.addf %60, %66 : vector<128x64xf32>
    %cst_37 = arith.constant 0.797884583 : f32
    %68 = vector.broadcast %cst_37 : f32 to vector<128x64xf32>
    %69 = arith.mulf %68, %67 : vector<128x64xf32>
    %70 = math.tanh %69 : vector<128x64xf32>
    %cst_38 = arith.constant 1.000000e+00 : f32
    %71 = vector.broadcast %cst_38 : f32 to vector<128x64xf32>
    %72 = arith.addf %71, %70 : vector<128x64xf32>
    %73 = arith.mulf %62, %72 : vector<128x64xf32>
    %cst_39 = arith.constant dense<0.000000e+00> : vector<128x64xf32>
    %74 = tpu.matmul %73, %6, %cst_39 {dimension_numbers = #tpu.dot_dimension_numbers<[1], [0], [0], [1], [0, 0, 1, 1], [], []>} : vector<128x64xf32>, vector<64x64xf32>, vector<128x64xf32> -> vector<128x64xf32>
    %75 = vector.broadcast %13 : vector<1x64xf32> to vector<128x64xf32>
    %76 = arith.addf %74, %75 : vector<128x64xf32>
    %cst_40 = arith.constant 5.000000e-01 : f32
    %77 = vector.broadcast %cst_40 : f32 to vector<128x64xf32>
    %78 = arith.mulf %77, %76 : vector<128x64xf32>
    %cst_41 = arith.constant 4.471500e-02 : f32
    %79 = vector.broadcast %cst_41 : f32 to vector<128x64xf32>
    %80 = arith.mulf %79, %76 : vector<128x64xf32>
    %81 = arith.mulf %80, %76 : vector<128x64xf32>
    %82 = arith.mulf %81, %76 : vector<128x64xf32>
    %83 = arith.addf %76, %82 : vector<128x64xf32>
    %cst_42 = arith.constant 0.797884583 : f32
    %84 = vector.broadcast %cst_42 : f32 to vector<128x64xf32>
    %85 = arith.mulf %84, %83 : vector<128x64xf32>
    %86 = math.tanh %85 : vector<128x64xf32>
    %cst_43 = arith.constant 1.000000e+00 : f32
    %87 = vector.broadcast %cst_43 : f32 to vector<128x64xf32>
    %88 = arith.addf %87, %86 : vector<128x64xf32>
    %89 = arith.mulf %78, %88 : vector<128x64xf32>
    %90 = vector.extract_strided_slice %73 {offsets = [0, 0], sizes = [64, 64], strides = [1, 1]} : vector<128x64xf32> to vector<64x64xf32>
    %91 = vector.extract_strided_slice %73 {offsets = [64, 0], sizes = [64, 64], strides = [1, 1]} : vector<128x64xf32> to vector<64x64xf32>
    %92 = arith.subf %91, %90 : vector<64x64xf32>
    %93 = vector.extract_strided_slice %89 {offsets = [0, 0], sizes = [64, 64], strides = [1, 1]} : vector<128x64xf32> to vector<64x64xf32>
    %94 = vector.extract_strided_slice %89 {offsets = [64, 0], sizes = [64, 64], strides = [1, 1]} : vector<128x64xf32> to vector<64x64xf32>
    %95 = arith.subf %94, %93 : vector<64x64xf32>
    %96 = arith.addf %39, %38 : vector<64x64xf32>
    %cst_44 = arith.constant dense<0.000000e+00> : vector<64xf32>
    %97 = vector.multi_reduction <add>, %96, %cst_44 [1] : vector<64x64xf32> to vector<64xf32>
    %98 = vector.shape_cast %97 : vector<64xf32> to vector<64x1xf32>
    %cst_45 = arith.constant 6.400000e+01 : f32
    %99 = vector.broadcast %cst_45 : f32 to vector<64x1xf32>
    %100 = arith.divf %98, %99 : vector<64x1xf32>
    %101 = vector.broadcast %100 : vector<64x1xf32> to vector<64x64xf32>
    %102 = arith.subf %96, %101 : vector<64x64xf32>
    %103 = vector.broadcast %100 : vector<64x1xf32> to vector<64x64xf32>
    %104 = arith.subf %96, %103 : vector<64x64xf32>
    %105 = arith.mulf %102, %104 : vector<64x64xf32>
    %cst_46 = arith.constant dense<0.000000e+00> : vector<64xf32>
    %106 = vector.multi_reduction <add>, %105, %cst_46 [1] : vector<64x64xf32> to vector<64xf32>
    %107 = vector.shape_cast %106 : vector<64xf32> to vector<64x1xf32>
    %cst_47 = arith.constant 6.400000e+01 : f32
    %108 = vector.broadcast %cst_47 : f32 to vector<64x1xf32>
    %109 = arith.divf %107, %108 : vector<64x1xf32>
    %110 = vector.broadcast %100 : vector<64x1xf32> to vector<64x64xf32>
    %111 = arith.subf %96, %110 : vector<64x64xf32>
    %cst_48 = arith.constant 9.99999974E-6 : f32
    %112 = vector.broadcast %cst_48 : f32 to vector<64x1xf32>
    %113 = arith.addf %109, %112 : vector<64x1xf32>
    %114 = math.rsqrt %113 : vector<64x1xf32>
    %115 = vector.broadcast %114 : vector<64x1xf32> to vector<64x64xf32>
    %116 = arith.mulf %111, %115 : vector<64x64xf32>
    %117 = vector.broadcast %18 : vector<1x64xf32> to vector<64x64xf32>
    %118 = arith.mulf %116, %117 : vector<64x64xf32>
    %119 = vector.broadcast %19 : vector<1x64xf32> to vector<64x64xf32>
    %120 = arith.addf %118, %119 : vector<64x64xf32>
    %cst_49 = arith.constant dense<0.000000e+00> : vector<64x64xf32>
    %121 = tpu.matmul %120, %7, %cst_49 {dimension_numbers = #tpu.dot_dimension_numbers<[1], [0], [0], [1], [0, 0, 1, 1], [], []>} : vector<64x64xf32>, vector<64x64xf32>, vector<64x64xf32> -> vector<64x64xf32>
    %122 = vector.broadcast %14 : vector<1x64xf32> to vector<64x64xf32>
    %123 = arith.addf %121, %122 : vector<64x64xf32>
    %cst_50 = arith.constant 0.000000e+00 : f32
    %124 = vector.broadcast %cst_50 : f32 to vector<16x7xf32>
    %125 = vector.extract_strided_slice %57 {offsets = [0, 0], sizes = [16, 64], strides = [1, 1]} : vector<64x64xf32> to vector<16x64xf32>
    %126 = vector.extract_strided_slice %56 {offsets = [0, 0], sizes = [16, 64], strides = [1, 1]} : vector<64x64xf32> to vector<16x64xf32>
    %127 = arith.mulf %125, %126 : vector<16x64xf32>
    %cst_51 = arith.constant dense<0.000000e+00> : vector<16xf32>
    %128 = vector.multi_reduction <add>, %127, %cst_51 [1] : vector<16x64xf32> to vector<16xf32>
    %129 = vector.shape_cast %128 : vector<16xf32> to vector<16x1xf32>
    %130 = vector.extract_strided_slice %56 {offsets = [16, 0], sizes = [16, 64], strides = [1, 1]} : vector<64x64xf32> to vector<16x64xf32>
    %131 = arith.mulf %125, %130 : vector<16x64xf32>
    %cst_52 = arith.constant dense<0.000000e+00> : vector<16xf32>
    %132 = vector.multi_reduction <add>, %131, %cst_52 [1] : vector<16x64xf32> to vector<16xf32>
    %133 = vector.shape_cast %132 : vector<16xf32> to vector<16x1xf32>
    %134 = vector.extract_strided_slice %56 {offsets = [32, 0], sizes = [16, 64], strides = [1, 1]} : vector<64x64xf32> to vector<16x64xf32>
    %135 = arith.mulf %125, %134 : vector<16x64xf32>
    %cst_53 = arith.constant dense<0.000000e+00> : vector<16xf32>
    %136 = vector.multi_reduction <add>, %135, %cst_53 [1] : vector<16x64xf32> to vector<16xf32>
    %137 = vector.shape_cast %136 : vector<16xf32> to vector<16x1xf32>
    %138 = vector.extract_strided_slice %56 {offsets = [48, 0], sizes = [16, 64], strides = [1, 1]} : vector<64x64xf32> to vector<16x64xf32>
    %139 = arith.mulf %125, %138 : vector<16x64xf32>
    %cst_54 = arith.constant dense<0.000000e+00> : vector<16xf32>
    %140 = vector.multi_reduction <add>, %139, %cst_54 [1] : vector<16x64xf32> to vector<16xf32>
    %141 = vector.shape_cast %140 : vector<16xf32> to vector<16x1xf32>
    %142 = tpu.concatenate %129, %133, %137, %141 in 1 : vector<16x1xf32>, vector<16x1xf32>, vector<16x1xf32>, vector<16x1xf32> -> vector<16x4xf32>
    %cst_55 = arith.constant 1.250000e-01 : f32
    %143 = vector.broadcast %cst_55 : f32 to vector<16x4xf32>
    %144 = arith.mulf %142, %143 : vector<16x4xf32>
    %cst_56 = arith.constant dense<0xFF800000> : vector<16xf32>
    %145 = vector.multi_reduction <maximumf>, %144, %cst_56 [1] : vector<16x4xf32> to vector<16xf32>
    %146 = vector.shape_cast %145 : vector<16xf32> to vector<16x1xf32>
    %147 = vector.broadcast %146 : vector<16x1xf32> to vector<16x4xf32>
    %148 = arith.subf %144, %147 : vector<16x4xf32>
    %149 = math.exp %148 : vector<16x4xf32>
    %cst_57 = arith.constant dense<0.000000e+00> : vector<16xf32>
    %150 = vector.multi_reduction <add>, %149, %cst_57 [1] : vector<16x4xf32> to vector<16xf32>
    %151 = vector.shape_cast %150 : vector<16xf32> to vector<16x1xf32>
    %152 = vector.broadcast %151 : vector<16x1xf32> to vector<16x4xf32>
    %153 = arith.divf %149, %152 : vector<16x4xf32>
    %cst_58 = arith.constant 0.000000e+00 : f32
    %154 = vector.broadcast %cst_58 : f32 to vector<16x64xf32>
    %155 = vector.extract_strided_slice %153 {offsets = [0, 0], sizes = [16, 1], strides = [1, 1]} : vector<16x4xf32> to vector<16x1xf32>
    %156 = vector.extract_strided_slice %93 {offsets = [0, 0], sizes = [16, 64], strides = [1, 1]} : vector<64x64xf32> to vector<16x64xf32>
    %157 = vector.broadcast %155 : vector<16x1xf32> to vector<16x64xf32>
    %158 = arith.mulf %157, %156 : vector<16x64xf32>
    %159 = arith.addf %154, %158 : vector<16x64xf32>
    %160 = vector.extract_strided_slice %153 {offsets = [0, 1], sizes = [16, 1], strides = [1, 1]} : vector<16x4xf32> to vector<16x1xf32>
    %161 = vector.extract_strided_slice %93 {offsets = [16, 0], sizes = [16, 64], strides = [1, 1]} : vector<64x64xf32> to vector<16x64xf32>
    %162 = vector.broadcast %160 : vector<16x1xf32> to vector<16x64xf32>
    %163 = arith.mulf %162, %161 : vector<16x64xf32>
    %164 = arith.addf %159, %163 : vector<16x64xf32>
    %165 = vector.extract_strided_slice %153 {offsets = [0, 2], sizes = [16, 1], strides = [1, 1]} : vector<16x4xf32> to vector<16x1xf32>
    %166 = vector.extract_strided_slice %93 {offsets = [32, 0], sizes = [16, 64], strides = [1, 1]} : vector<64x64xf32> to vector<16x64xf32>
    %167 = vector.broadcast %165 : vector<16x1xf32> to vector<16x64xf32>
    %168 = arith.mulf %167, %166 : vector<16x64xf32>
    %169 = arith.addf %164, %168 : vector<16x64xf32>
    %170 = vector.extract_strided_slice %153 {offsets = [0, 3], sizes = [16, 1], strides = [1, 1]} : vector<16x4xf32> to vector<16x1xf32>
    %171 = vector.extract_strided_slice %93 {offsets = [48, 0], sizes = [16, 64], strides = [1, 1]} : vector<64x64xf32> to vector<16x64xf32>
    %172 = vector.broadcast %170 : vector<16x1xf32> to vector<16x64xf32>
    %173 = arith.mulf %172, %171 : vector<16x64xf32>
    %174 = arith.addf %169, %173 : vector<16x64xf32>
    %175 = vector.extract_strided_slice %123 {offsets = [0, 0], sizes = [16, 64], strides = [1, 1]} : vector<64x64xf32> to vector<16x64xf32>
    %176 = vector.extract_strided_slice %153 {offsets = [0, 0], sizes = [16, 1], strides = [1, 1]} : vector<16x4xf32> to vector<16x1xf32>
    %177 = vector.extract_strided_slice %90 {offsets = [0, 0], sizes = [16, 64], strides = [1, 1]} : vector<64x64xf32> to vector<16x64xf32>
    %178 = arith.addf %177, %174 : vector<16x64xf32>
    %179 = vector.extract_strided_slice %95 {offsets = [0, 0], sizes = [16, 64], strides = [1, 1]} : vector<64x64xf32> to vector<16x64xf32>
    %180 = vector.broadcast %176 : vector<16x1xf32> to vector<16x64xf32>
    %181 = arith.mulf %180, %179 : vector<16x64xf32>
    %182 = arith.addf %178, %181 : vector<16x64xf32>
    %183 = vector.extract_strided_slice %92 {offsets = [0, 0], sizes = [16, 64], strides = [1, 1]} : vector<64x64xf32> to vector<16x64xf32>
    %184 = arith.addf %182, %183 : vector<16x64xf32>
    %185 = tpu.concatenate %176, %124 in 1 : vector<16x1xf32>, vector<16x7xf32> -> vector<16x8xf32>
    %186 = vector.extract_strided_slice %153 {offsets = [0, 1], sizes = [16, 1], strides = [1, 1]} : vector<16x4xf32> to vector<16x1xf32>
    %187 = vector.extract_strided_slice %90 {offsets = [16, 0], sizes = [16, 64], strides = [1, 1]} : vector<64x64xf32> to vector<16x64xf32>
    %188 = arith.addf %187, %174 : vector<16x64xf32>
    %189 = vector.extract_strided_slice %95 {offsets = [16, 0], sizes = [16, 64], strides = [1, 1]} : vector<64x64xf32> to vector<16x64xf32>
    %190 = vector.broadcast %186 : vector<16x1xf32> to vector<16x64xf32>
    %191 = arith.mulf %190, %189 : vector<16x64xf32>
    %192 = arith.addf %188, %191 : vector<16x64xf32>
    %193 = tpu.concatenate %186, %124 in 1 : vector<16x1xf32>, vector<16x7xf32> -> vector<16x8xf32>
    %194 = vector.extract_strided_slice %153 {offsets = [0, 2], sizes = [16, 1], strides = [1, 1]} : vector<16x4xf32> to vector<16x1xf32>
    %195 = vector.extract_strided_slice %90 {offsets = [32, 0], sizes = [16, 64], strides = [1, 1]} : vector<64x64xf32> to vector<16x64xf32>
    %196 = arith.addf %195, %174 : vector<16x64xf32>
    %197 = vector.extract_strided_slice %95 {offsets = [32, 0], sizes = [16, 64], strides = [1, 1]} : vector<64x64xf32> to vector<16x64xf32>
    %198 = vector.broadcast %194 : vector<16x1xf32> to vector<16x64xf32>
    %199 = arith.mulf %198, %197 : vector<16x64xf32>
    %200 = arith.addf %196, %199 : vector<16x64xf32>
    %201 = tpu.concatenate %194, %124 in 1 : vector<16x1xf32>, vector<16x7xf32> -> vector<16x8xf32>
    %202 = vector.extract_strided_slice %153 {offsets = [0, 3], sizes = [16, 1], strides = [1, 1]} : vector<16x4xf32> to vector<16x1xf32>
    %203 = vector.extract_strided_slice %90 {offsets = [48, 0], sizes = [16, 64], strides = [1, 1]} : vector<64x64xf32> to vector<16x64xf32>
    %204 = arith.addf %203, %174 : vector<16x64xf32>
    %205 = vector.extract_strided_slice %95 {offsets = [48, 0], sizes = [16, 64], strides = [1, 1]} : vector<64x64xf32> to vector<16x64xf32>
    %206 = vector.broadcast %202 : vector<16x1xf32> to vector<16x64xf32>
    %207 = arith.mulf %206, %205 : vector<16x64xf32>
    %208 = arith.addf %204, %207 : vector<16x64xf32>
    %209 = tpu.concatenate %202, %124 in 1 : vector<16x1xf32>, vector<16x7xf32> -> vector<16x8xf32>
    %210 = vector.extract_strided_slice %57 {offsets = [16, 0], sizes = [16, 64], strides = [1, 1]} : vector<64x64xf32> to vector<16x64xf32>
    %211 = vector.extract_strided_slice %56 {offsets = [0, 0], sizes = [16, 64], strides = [1, 1]} : vector<64x64xf32> to vector<16x64xf32>
    %212 = arith.mulf %210, %211 : vector<16x64xf32>
    %cst_59 = arith.constant dense<0.000000e+00> : vector<16xf32>
    %213 = vector.multi_reduction <add>, %212, %cst_59 [1] : vector<16x64xf32> to vector<16xf32>
    %214 = vector.shape_cast %213 : vector<16xf32> to vector<16x1xf32>
    %215 = vector.extract_strided_slice %56 {offsets = [16, 0], sizes = [16, 64], strides = [1, 1]} : vector<64x64xf32> to vector<16x64xf32>
    %216 = arith.mulf %210, %215 : vector<16x64xf32>
    %cst_60 = arith.constant dense<0.000000e+00> : vector<16xf32>
    %217 = vector.multi_reduction <add>, %216, %cst_60 [1] : vector<16x64xf32> to vector<16xf32>
    %218 = vector.shape_cast %217 : vector<16xf32> to vector<16x1xf32>
    %219 = vector.extract_strided_slice %56 {offsets = [32, 0], sizes = [16, 64], strides = [1, 1]} : vector<64x64xf32> to vector<16x64xf32>
    %220 = arith.mulf %210, %219 : vector<16x64xf32>
    %cst_61 = arith.constant dense<0.000000e+00> : vector<16xf32>
    %221 = vector.multi_reduction <add>, %220, %cst_61 [1] : vector<16x64xf32> to vector<16xf32>
    %222 = vector.shape_cast %221 : vector<16xf32> to vector<16x1xf32>
    %223 = vector.extract_strided_slice %56 {offsets = [48, 0], sizes = [16, 64], strides = [1, 1]} : vector<64x64xf32> to vector<16x64xf32>
    %224 = arith.mulf %210, %223 : vector<16x64xf32>
    %cst_62 = arith.constant dense<0.000000e+00> : vector<16xf32>
    %225 = vector.multi_reduction <add>, %224, %cst_62 [1] : vector<16x64xf32> to vector<16xf32>
    %226 = vector.shape_cast %225 : vector<16xf32> to vector<16x1xf32>
    %227 = tpu.concatenate %214, %218, %222, %226 in 1 : vector<16x1xf32>, vector<16x1xf32>, vector<16x1xf32>, vector<16x1xf32> -> vector<16x4xf32>
    %cst_63 = arith.constant 1.250000e-01 : f32
    %228 = vector.broadcast %cst_63 : f32 to vector<16x4xf32>
    %229 = arith.mulf %227, %228 : vector<16x4xf32>
    %cst_64 = arith.constant dense<0xFF800000> : vector<16xf32>
    %230 = vector.multi_reduction <maximumf>, %229, %cst_64 [1] : vector<16x4xf32> to vector<16xf32>
    %231 = vector.shape_cast %230 : vector<16xf32> to vector<16x1xf32>
    %232 = vector.broadcast %231 : vector<16x1xf32> to vector<16x4xf32>
    %233 = arith.subf %229, %232 : vector<16x4xf32>
    %234 = math.exp %233 : vector<16x4xf32>
    %cst_65 = arith.constant dense<0.000000e+00> : vector<16xf32>
    %235 = vector.multi_reduction <add>, %234, %cst_65 [1] : vector<16x4xf32> to vector<16xf32>
    %236 = vector.shape_cast %235 : vector<16xf32> to vector<16x1xf32>
    %237 = vector.broadcast %236 : vector<16x1xf32> to vector<16x4xf32>
    %238 = arith.divf %234, %237 : vector<16x4xf32>
    %cst_66 = arith.constant 0.000000e+00 : f32
    %239 = vector.broadcast %cst_66 : f32 to vector<16x64xf32>
    %240 = vector.extract_strided_slice %238 {offsets = [0, 0], sizes = [16, 1], strides = [1, 1]} : vector<16x4xf32> to vector<16x1xf32>
    %241 = vector.extract_strided_slice %93 {offsets = [0, 0], sizes = [16, 64], strides = [1, 1]} : vector<64x64xf32> to vector<16x64xf32>
    %242 = vector.broadcast %240 : vector<16x1xf32> to vector<16x64xf32>
    %243 = arith.mulf %242, %241 : vector<16x64xf32>
    %244 = arith.addf %239, %243 : vector<16x64xf32>
    %245 = vector.extract_strided_slice %238 {offsets = [0, 1], sizes = [16, 1], strides = [1, 1]} : vector<16x4xf32> to vector<16x1xf32>
    %246 = vector.extract_strided_slice %93 {offsets = [16, 0], sizes = [16, 64], strides = [1, 1]} : vector<64x64xf32> to vector<16x64xf32>
    %247 = vector.broadcast %245 : vector<16x1xf32> to vector<16x64xf32>
    %248 = arith.mulf %247, %246 : vector<16x64xf32>
    %249 = arith.addf %244, %248 : vector<16x64xf32>
    %250 = vector.extract_strided_slice %238 {offsets = [0, 2], sizes = [16, 1], strides = [1, 1]} : vector<16x4xf32> to vector<16x1xf32>
    %251 = vector.extract_strided_slice %93 {offsets = [32, 0], sizes = [16, 64], strides = [1, 1]} : vector<64x64xf32> to vector<16x64xf32>
    %252 = vector.broadcast %250 : vector<16x1xf32> to vector<16x64xf32>
    %253 = arith.mulf %252, %251 : vector<16x64xf32>
    %254 = arith.addf %249, %253 : vector<16x64xf32>
    %255 = vector.extract_strided_slice %238 {offsets = [0, 3], sizes = [16, 1], strides = [1, 1]} : vector<16x4xf32> to vector<16x1xf32>
    %256 = vector.extract_strided_slice %93 {offsets = [48, 0], sizes = [16, 64], strides = [1, 1]} : vector<64x64xf32> to vector<16x64xf32>
    %257 = vector.broadcast %255 : vector<16x1xf32> to vector<16x64xf32>
    %258 = arith.mulf %257, %256 : vector<16x64xf32>
    %259 = arith.addf %254, %258 : vector<16x64xf32>
    %260 = vector.extract_strided_slice %123 {offsets = [16, 0], sizes = [16, 64], strides = [1, 1]} : vector<64x64xf32> to vector<16x64xf32>
    %261 = vector.extract_strided_slice %238 {offsets = [0, 0], sizes = [16, 1], strides = [1, 1]} : vector<16x4xf32> to vector<16x1xf32>
    %262 = vector.extract_strided_slice %90 {offsets = [0, 0], sizes = [16, 64], strides = [1, 1]} : vector<64x64xf32> to vector<16x64xf32>
    %263 = arith.addf %262, %259 : vector<16x64xf32>
    %264 = vector.extract_strided_slice %95 {offsets = [0, 0], sizes = [16, 64], strides = [1, 1]} : vector<64x64xf32> to vector<16x64xf32>
    %265 = vector.broadcast %261 : vector<16x1xf32> to vector<16x64xf32>
    %266 = arith.mulf %265, %264 : vector<16x64xf32>
    %267 = arith.addf %263, %266 : vector<16x64xf32>
    %268 = tpu.concatenate %261, %124 in 1 : vector<16x1xf32>, vector<16x7xf32> -> vector<16x8xf32>
    %269 = vector.extract_strided_slice %238 {offsets = [0, 1], sizes = [16, 1], strides = [1, 1]} : vector<16x4xf32> to vector<16x1xf32>
    %270 = vector.extract_strided_slice %90 {offsets = [16, 0], sizes = [16, 64], strides = [1, 1]} : vector<64x64xf32> to vector<16x64xf32>
    %271 = arith.addf %270, %259 : vector<16x64xf32>
    %272 = vector.extract_strided_slice %95 {offsets = [16, 0], sizes = [16, 64], strides = [1, 1]} : vector<64x64xf32> to vector<16x64xf32>
    %273 = vector.broadcast %269 : vector<16x1xf32> to vector<16x64xf32>
    %274 = arith.mulf %273, %272 : vector<16x64xf32>
    %275 = arith.addf %271, %274 : vector<16x64xf32>
    %276 = vector.extract_strided_slice %92 {offsets = [16, 0], sizes = [16, 64], strides = [1, 1]} : vector<64x64xf32> to vector<16x64xf32>
    %277 = arith.addf %275, %276 : vector<16x64xf32>
    %278 = tpu.concatenate %269, %124 in 1 : vector<16x1xf32>, vector<16x7xf32> -> vector<16x8xf32>
    %279 = vector.extract_strided_slice %238 {offsets = [0, 2], sizes = [16, 1], strides = [1, 1]} : vector<16x4xf32> to vector<16x1xf32>
    %280 = vector.extract_strided_slice %90 {offsets = [32, 0], sizes = [16, 64], strides = [1, 1]} : vector<64x64xf32> to vector<16x64xf32>
    %281 = arith.addf %280, %259 : vector<16x64xf32>
    %282 = vector.extract_strided_slice %95 {offsets = [32, 0], sizes = [16, 64], strides = [1, 1]} : vector<64x64xf32> to vector<16x64xf32>
    %283 = vector.broadcast %279 : vector<16x1xf32> to vector<16x64xf32>
    %284 = arith.mulf %283, %282 : vector<16x64xf32>
    %285 = arith.addf %281, %284 : vector<16x64xf32>
    %286 = tpu.concatenate %279, %124 in 1 : vector<16x1xf32>, vector<16x7xf32> -> vector<16x8xf32>
    %287 = vector.extract_strided_slice %238 {offsets = [0, 3], sizes = [16, 1], strides = [1, 1]} : vector<16x4xf32> to vector<16x1xf32>
    %288 = vector.extract_strided_slice %90 {offsets = [48, 0], sizes = [16, 64], strides = [1, 1]} : vector<64x64xf32> to vector<16x64xf32>
    %289 = arith.addf %288, %259 : vector<16x64xf32>
    %290 = vector.extract_strided_slice %95 {offsets = [48, 0], sizes = [16, 64], strides = [1, 1]} : vector<64x64xf32> to vector<16x64xf32>
    %291 = vector.broadcast %287 : vector<16x1xf32> to vector<16x64xf32>
    %292 = arith.mulf %291, %290 : vector<16x64xf32>
    %293 = arith.addf %289, %292 : vector<16x64xf32>
    %294 = tpu.concatenate %287, %124 in 1 : vector<16x1xf32>, vector<16x7xf32> -> vector<16x8xf32>
    %295 = vector.extract_strided_slice %57 {offsets = [32, 0], sizes = [16, 64], strides = [1, 1]} : vector<64x64xf32> to vector<16x64xf32>
    %296 = vector.extract_strided_slice %56 {offsets = [0, 0], sizes = [16, 64], strides = [1, 1]} : vector<64x64xf32> to vector<16x64xf32>
    %297 = arith.mulf %295, %296 : vector<16x64xf32>
    %cst_67 = arith.constant dense<0.000000e+00> : vector<16xf32>
    %298 = vector.multi_reduction <add>, %297, %cst_67 [1] : vector<16x64xf32> to vector<16xf32>
    %299 = vector.shape_cast %298 : vector<16xf32> to vector<16x1xf32>
    %300 = vector.extract_strided_slice %56 {offsets = [16, 0], sizes = [16, 64], strides = [1, 1]} : vector<64x64xf32> to vector<16x64xf32>
    %301 = arith.mulf %295, %300 : vector<16x64xf32>
    %cst_68 = arith.constant dense<0.000000e+00> : vector<16xf32>
    %302 = vector.multi_reduction <add>, %301, %cst_68 [1] : vector<16x64xf32> to vector<16xf32>
    %303 = vector.shape_cast %302 : vector<16xf32> to vector<16x1xf32>
    %304 = vector.extract_strided_slice %56 {offsets = [32, 0], sizes = [16, 64], strides = [1, 1]} : vector<64x64xf32> to vector<16x64xf32>
    %305 = arith.mulf %295, %304 : vector<16x64xf32>
    %cst_69 = arith.constant dense<0.000000e+00> : vector<16xf32>
    %306 = vector.multi_reduction <add>, %305, %cst_69 [1] : vector<16x64xf32> to vector<16xf32>
    %307 = vector.shape_cast %306 : vector<16xf32> to vector<16x1xf32>
    %308 = vector.extract_strided_slice %56 {offsets = [48, 0], sizes = [16, 64], strides = [1, 1]} : vector<64x64xf32> to vector<16x64xf32>
    %309 = arith.mulf %295, %308 : vector<16x64xf32>
    %cst_70 = arith.constant dense<0.000000e+00> : vector<16xf32>
    %310 = vector.multi_reduction <add>, %309, %cst_70 [1] : vector<16x64xf32> to vector<16xf32>
    %311 = vector.shape_cast %310 : vector<16xf32> to vector<16x1xf32>
    %312 = tpu.concatenate %299, %303, %307, %311 in 1 : vector<16x1xf32>, vector<16x1xf32>, vector<16x1xf32>, vector<16x1xf32> -> vector<16x4xf32>
    %cst_71 = arith.constant 1.250000e-01 : f32
    %313 = vector.broadcast %cst_71 : f32 to vector<16x4xf32>
    %314 = arith.mulf %312, %313 : vector<16x4xf32>
    %cst_72 = arith.constant dense<0xFF800000> : vector<16xf32>
    %315 = vector.multi_reduction <maximumf>, %314, %cst_72 [1] : vector<16x4xf32> to vector<16xf32>
    %316 = vector.shape_cast %315 : vector<16xf32> to vector<16x1xf32>
    %317 = vector.broadcast %316 : vector<16x1xf32> to vector<16x4xf32>
    %318 = arith.subf %314, %317 : vector<16x4xf32>
    %319 = math.exp %318 : vector<16x4xf32>
    %cst_73 = arith.constant dense<0.000000e+00> : vector<16xf32>
    %320 = vector.multi_reduction <add>, %319, %cst_73 [1] : vector<16x4xf32> to vector<16xf32>
    %321 = vector.shape_cast %320 : vector<16xf32> to vector<16x1xf32>
    %322 = vector.broadcast %321 : vector<16x1xf32> to vector<16x4xf32>
    %323 = arith.divf %319, %322 : vector<16x4xf32>
    %cst_74 = arith.constant 0.000000e+00 : f32
    %324 = vector.broadcast %cst_74 : f32 to vector<16x64xf32>
    %325 = vector.extract_strided_slice %323 {offsets = [0, 0], sizes = [16, 1], strides = [1, 1]} : vector<16x4xf32> to vector<16x1xf32>
    %326 = vector.extract_strided_slice %93 {offsets = [0, 0], sizes = [16, 64], strides = [1, 1]} : vector<64x64xf32> to vector<16x64xf32>
    %327 = vector.broadcast %325 : vector<16x1xf32> to vector<16x64xf32>
    %328 = arith.mulf %327, %326 : vector<16x64xf32>
    %329 = arith.addf %324, %328 : vector<16x64xf32>
    %330 = vector.extract_strided_slice %323 {offsets = [0, 1], sizes = [16, 1], strides = [1, 1]} : vector<16x4xf32> to vector<16x1xf32>
    %331 = vector.extract_strided_slice %93 {offsets = [16, 0], sizes = [16, 64], strides = [1, 1]} : vector<64x64xf32> to vector<16x64xf32>
    %332 = vector.broadcast %330 : vector<16x1xf32> to vector<16x64xf32>
    %333 = arith.mulf %332, %331 : vector<16x64xf32>
    %334 = arith.addf %329, %333 : vector<16x64xf32>
    %335 = vector.extract_strided_slice %323 {offsets = [0, 2], sizes = [16, 1], strides = [1, 1]} : vector<16x4xf32> to vector<16x1xf32>
    %336 = vector.extract_strided_slice %93 {offsets = [32, 0], sizes = [16, 64], strides = [1, 1]} : vector<64x64xf32> to vector<16x64xf32>
    %337 = vector.broadcast %335 : vector<16x1xf32> to vector<16x64xf32>
    %338 = arith.mulf %337, %336 : vector<16x64xf32>
    %339 = arith.addf %334, %338 : vector<16x64xf32>
    %340 = vector.extract_strided_slice %323 {offsets = [0, 3], sizes = [16, 1], strides = [1, 1]} : vector<16x4xf32> to vector<16x1xf32>
    %341 = vector.extract_strided_slice %93 {offsets = [48, 0], sizes = [16, 64], strides = [1, 1]} : vector<64x64xf32> to vector<16x64xf32>
    %342 = vector.broadcast %340 : vector<16x1xf32> to vector<16x64xf32>
    %343 = arith.mulf %342, %341 : vector<16x64xf32>
    %344 = arith.addf %339, %343 : vector<16x64xf32>
    %345 = vector.extract_strided_slice %123 {offsets = [32, 0], sizes = [16, 64], strides = [1, 1]} : vector<64x64xf32> to vector<16x64xf32>
    %346 = vector.extract_strided_slice %323 {offsets = [0, 0], sizes = [16, 1], strides = [1, 1]} : vector<16x4xf32> to vector<16x1xf32>
    %347 = vector.extract_strided_slice %90 {offsets = [0, 0], sizes = [16, 64], strides = [1, 1]} : vector<64x64xf32> to vector<16x64xf32>
    %348 = arith.addf %347, %344 : vector<16x64xf32>
    %349 = vector.extract_strided_slice %95 {offsets = [0, 0], sizes = [16, 64], strides = [1, 1]} : vector<64x64xf32> to vector<16x64xf32>
    %350 = vector.broadcast %346 : vector<16x1xf32> to vector<16x64xf32>
    %351 = arith.mulf %350, %349 : vector<16x64xf32>
    %352 = arith.addf %348, %351 : vector<16x64xf32>
    %353 = tpu.concatenate %346, %124 in 1 : vector<16x1xf32>, vector<16x7xf32> -> vector<16x8xf32>
    %354 = vector.extract_strided_slice %323 {offsets = [0, 1], sizes = [16, 1], strides = [1, 1]} : vector<16x4xf32> to vector<16x1xf32>
    %355 = vector.extract_strided_slice %90 {offsets = [16, 0], sizes = [16, 64], strides = [1, 1]} : vector<64x64xf32> to vector<16x64xf32>
    %356 = arith.addf %355, %344 : vector<16x64xf32>
    %357 = vector.extract_strided_slice %95 {offsets = [16, 0], sizes = [16, 64], strides = [1, 1]} : vector<64x64xf32> to vector<16x64xf32>
    %358 = vector.broadcast %354 : vector<16x1xf32> to vector<16x64xf32>
    %359 = arith.mulf %358, %357 : vector<16x64xf32>
    %360 = arith.addf %356, %359 : vector<16x64xf32>
    %361 = tpu.concatenate %354, %124 in 1 : vector<16x1xf32>, vector<16x7xf32> -> vector<16x8xf32>
    %362 = vector.extract_strided_slice %323 {offsets = [0, 2], sizes = [16, 1], strides = [1, 1]} : vector<16x4xf32> to vector<16x1xf32>
    %363 = vector.extract_strided_slice %90 {offsets = [32, 0], sizes = [16, 64], strides = [1, 1]} : vector<64x64xf32> to vector<16x64xf32>
    %364 = arith.addf %363, %344 : vector<16x64xf32>
    %365 = vector.extract_strided_slice %95 {offsets = [32, 0], sizes = [16, 64], strides = [1, 1]} : vector<64x64xf32> to vector<16x64xf32>
    %366 = vector.broadcast %362 : vector<16x1xf32> to vector<16x64xf32>
    %367 = arith.mulf %366, %365 : vector<16x64xf32>
    %368 = arith.addf %364, %367 : vector<16x64xf32>
    %369 = vector.extract_strided_slice %92 {offsets = [32, 0], sizes = [16, 64], strides = [1, 1]} : vector<64x64xf32> to vector<16x64xf32>
    %370 = arith.addf %368, %369 : vector<16x64xf32>
    %371 = tpu.concatenate %362, %124 in 1 : vector<16x1xf32>, vector<16x7xf32> -> vector<16x8xf32>
    %372 = vector.extract_strided_slice %323 {offsets = [0, 3], sizes = [16, 1], strides = [1, 1]} : vector<16x4xf32> to vector<16x1xf32>
    %373 = vector.extract_strided_slice %90 {offsets = [48, 0], sizes = [16, 64], strides = [1, 1]} : vector<64x64xf32> to vector<16x64xf32>
    %374 = arith.addf %373, %344 : vector<16x64xf32>
    %375 = vector.extract_strided_slice %95 {offsets = [48, 0], sizes = [16, 64], strides = [1, 1]} : vector<64x64xf32> to vector<16x64xf32>
    %376 = vector.broadcast %372 : vector<16x1xf32> to vector<16x64xf32>
    %377 = arith.mulf %376, %375 : vector<16x64xf32>
    %378 = arith.addf %374, %377 : vector<16x64xf32>
    %379 = tpu.concatenate %372, %124 in 1 : vector<16x1xf32>, vector<16x7xf32> -> vector<16x8xf32>
    %380 = vector.extract_strided_slice %57 {offsets = [48, 0], sizes = [16, 64], strides = [1, 1]} : vector<64x64xf32> to vector<16x64xf32>
    %381 = vector.extract_strided_slice %56 {offsets = [0, 0], sizes = [16, 64], strides = [1, 1]} : vector<64x64xf32> to vector<16x64xf32>
    %382 = arith.mulf %380, %381 : vector<16x64xf32>
    %cst_75 = arith.constant dense<0.000000e+00> : vector<16xf32>
    %383 = vector.multi_reduction <add>, %382, %cst_75 [1] : vector<16x64xf32> to vector<16xf32>
    %384 = vector.shape_cast %383 : vector<16xf32> to vector<16x1xf32>
    %385 = vector.extract_strided_slice %56 {offsets = [16, 0], sizes = [16, 64], strides = [1, 1]} : vector<64x64xf32> to vector<16x64xf32>
    %386 = arith.mulf %380, %385 : vector<16x64xf32>
    %cst_76 = arith.constant dense<0.000000e+00> : vector<16xf32>
    %387 = vector.multi_reduction <add>, %386, %cst_76 [1] : vector<16x64xf32> to vector<16xf32>
    %388 = vector.shape_cast %387 : vector<16xf32> to vector<16x1xf32>
    %389 = vector.extract_strided_slice %56 {offsets = [32, 0], sizes = [16, 64], strides = [1, 1]} : vector<64x64xf32> to vector<16x64xf32>
    %390 = arith.mulf %380, %389 : vector<16x64xf32>
    %cst_77 = arith.constant dense<0.000000e+00> : vector<16xf32>
    %391 = vector.multi_reduction <add>, %390, %cst_77 [1] : vector<16x64xf32> to vector<16xf32>
    %392 = vector.shape_cast %391 : vector<16xf32> to vector<16x1xf32>
    %393 = vector.extract_strided_slice %56 {offsets = [48, 0], sizes = [16, 64], strides = [1, 1]} : vector<64x64xf32> to vector<16x64xf32>
    %394 = arith.mulf %380, %393 : vector<16x64xf32>
    %cst_78 = arith.constant dense<0.000000e+00> : vector<16xf32>
    %395 = vector.multi_reduction <add>, %394, %cst_78 [1] : vector<16x64xf32> to vector<16xf32>
    %396 = vector.shape_cast %395 : vector<16xf32> to vector<16x1xf32>
    %397 = tpu.concatenate %384, %388, %392, %396 in 1 : vector<16x1xf32>, vector<16x1xf32>, vector<16x1xf32>, vector<16x1xf32> -> vector<16x4xf32>
    %cst_79 = arith.constant 1.250000e-01 : f32
    %398 = vector.broadcast %cst_79 : f32 to vector<16x4xf32>
    %399 = arith.mulf %397, %398 : vector<16x4xf32>
    %cst_80 = arith.constant dense<0xFF800000> : vector<16xf32>
    %400 = vector.multi_reduction <maximumf>, %399, %cst_80 [1] : vector<16x4xf32> to vector<16xf32>
    %401 = vector.shape_cast %400 : vector<16xf32> to vector<16x1xf32>
    %402 = vector.broadcast %401 : vector<16x1xf32> to vector<16x4xf32>
    %403 = arith.subf %399, %402 : vector<16x4xf32>
    %404 = math.exp %403 : vector<16x4xf32>
    %cst_81 = arith.constant dense<0.000000e+00> : vector<16xf32>
    %405 = vector.multi_reduction <add>, %404, %cst_81 [1] : vector<16x4xf32> to vector<16xf32>
    %406 = vector.shape_cast %405 : vector<16xf32> to vector<16x1xf32>
    %407 = vector.broadcast %406 : vector<16x1xf32> to vector<16x4xf32>
    %408 = arith.divf %404, %407 : vector<16x4xf32>
    %cst_82 = arith.constant 0.000000e+00 : f32
    %409 = vector.broadcast %cst_82 : f32 to vector<16x64xf32>
    %410 = vector.extract_strided_slice %408 {offsets = [0, 0], sizes = [16, 1], strides = [1, 1]} : vector<16x4xf32> to vector<16x1xf32>
    %411 = vector.extract_strided_slice %93 {offsets = [0, 0], sizes = [16, 64], strides = [1, 1]} : vector<64x64xf32> to vector<16x64xf32>
    %412 = vector.broadcast %410 : vector<16x1xf32> to vector<16x64xf32>
    %413 = arith.mulf %412, %411 : vector<16x64xf32>
    %414 = arith.addf %409, %413 : vector<16x64xf32>
    %415 = vector.extract_strided_slice %408 {offsets = [0, 1], sizes = [16, 1], strides = [1, 1]} : vector<16x4xf32> to vector<16x1xf32>
    %416 = vector.extract_strided_slice %93 {offsets = [16, 0], sizes = [16, 64], strides = [1, 1]} : vector<64x64xf32> to vector<16x64xf32>
    %417 = vector.broadcast %415 : vector<16x1xf32> to vector<16x64xf32>
    %418 = arith.mulf %417, %416 : vector<16x64xf32>
    %419 = arith.addf %414, %418 : vector<16x64xf32>
    %420 = vector.extract_strided_slice %408 {offsets = [0, 2], sizes = [16, 1], strides = [1, 1]} : vector<16x4xf32> to vector<16x1xf32>
    %421 = vector.extract_strided_slice %93 {offsets = [32, 0], sizes = [16, 64], strides = [1, 1]} : vector<64x64xf32> to vector<16x64xf32>
    %422 = vector.broadcast %420 : vector<16x1xf32> to vector<16x64xf32>
    %423 = arith.mulf %422, %421 : vector<16x64xf32>
    %424 = arith.addf %419, %423 : vector<16x64xf32>
    %425 = vector.extract_strided_slice %408 {offsets = [0, 3], sizes = [16, 1], strides = [1, 1]} : vector<16x4xf32> to vector<16x1xf32>
    %426 = vector.extract_strided_slice %93 {offsets = [48, 0], sizes = [16, 64], strides = [1, 1]} : vector<64x64xf32> to vector<16x64xf32>
    %427 = vector.broadcast %425 : vector<16x1xf32> to vector<16x64xf32>
    %428 = arith.mulf %427, %426 : vector<16x64xf32>
    %429 = arith.addf %424, %428 : vector<16x64xf32>
    %430 = vector.extract_strided_slice %123 {offsets = [48, 0], sizes = [16, 64], strides = [1, 1]} : vector<64x64xf32> to vector<16x64xf32>
    %431 = vector.extract_strided_slice %408 {offsets = [0, 0], sizes = [16, 1], strides = [1, 1]} : vector<16x4xf32> to vector<16x1xf32>
    %432 = vector.extract_strided_slice %90 {offsets = [0, 0], sizes = [16, 64], strides = [1, 1]} : vector<64x64xf32> to vector<16x64xf32>
    %433 = arith.addf %432, %429 : vector<16x64xf32>
    %434 = vector.extract_strided_slice %95 {offsets = [0, 0], sizes = [16, 64], strides = [1, 1]} : vector<64x64xf32> to vector<16x64xf32>
    %435 = vector.broadcast %431 : vector<16x1xf32> to vector<16x64xf32>
    %436 = arith.mulf %435, %434 : vector<16x64xf32>
    %437 = arith.addf %433, %436 : vector<16x64xf32>
    %438 = tpu.concatenate %431, %124 in 1 : vector<16x1xf32>, vector<16x7xf32> -> vector<16x8xf32>
    %439 = vector.extract_strided_slice %408 {offsets = [0, 1], sizes = [16, 1], strides = [1, 1]} : vector<16x4xf32> to vector<16x1xf32>
    %440 = vector.extract_strided_slice %90 {offsets = [16, 0], sizes = [16, 64], strides = [1, 1]} : vector<64x64xf32> to vector<16x64xf32>
    %441 = arith.addf %440, %429 : vector<16x64xf32>
    %442 = vector.extract_strided_slice %95 {offsets = [16, 0], sizes = [16, 64], strides = [1, 1]} : vector<64x64xf32> to vector<16x64xf32>
    %443 = vector.broadcast %439 : vector<16x1xf32> to vector<16x64xf32>
    %444 = arith.mulf %443, %442 : vector<16x64xf32>
    %445 = arith.addf %441, %444 : vector<16x64xf32>
    %446 = tpu.concatenate %439, %124 in 1 : vector<16x1xf32>, vector<16x7xf32> -> vector<16x8xf32>
    %447 = vector.extract_strided_slice %408 {offsets = [0, 2], sizes = [16, 1], strides = [1, 1]} : vector<16x4xf32> to vector<16x1xf32>
    %448 = vector.extract_strided_slice %90 {offsets = [32, 0], sizes = [16, 64], strides = [1, 1]} : vector<64x64xf32> to vector<16x64xf32>
    %449 = arith.addf %448, %429 : vector<16x64xf32>
    %450 = vector.extract_strided_slice %95 {offsets = [32, 0], sizes = [16, 64], strides = [1, 1]} : vector<64x64xf32> to vector<16x64xf32>
    %451 = vector.broadcast %447 : vector<16x1xf32> to vector<16x64xf32>
    %452 = arith.mulf %451, %450 : vector<16x64xf32>
    %453 = arith.addf %449, %452 : vector<16x64xf32>
    %454 = tpu.concatenate %447, %124 in 1 : vector<16x1xf32>, vector<16x7xf32> -> vector<16x8xf32>
    %455 = vector.extract_strided_slice %408 {offsets = [0, 3], sizes = [16, 1], strides = [1, 1]} : vector<16x4xf32> to vector<16x1xf32>
    %456 = vector.extract_strided_slice %90 {offsets = [48, 0], sizes = [16, 64], strides = [1, 1]} : vector<64x64xf32> to vector<16x64xf32>
    %457 = arith.addf %456, %429 : vector<16x64xf32>
    %458 = vector.extract_strided_slice %95 {offsets = [48, 0], sizes = [16, 64], strides = [1, 1]} : vector<64x64xf32> to vector<16x64xf32>
    %459 = vector.broadcast %455 : vector<16x1xf32> to vector<16x64xf32>
    %460 = arith.mulf %459, %458 : vector<16x64xf32>
    %461 = arith.addf %457, %460 : vector<16x64xf32>
    %462 = vector.extract_strided_slice %92 {offsets = [48, 0], sizes = [16, 64], strides = [1, 1]} : vector<64x64xf32> to vector<16x64xf32>
    %463 = arith.addf %461, %462 : vector<16x64xf32>
    %464 = tpu.concatenate %455, %124 in 1 : vector<16x1xf32>, vector<16x7xf32> -> vector<16x8xf32>
    %465 = tpu.concatenate %184, %192, %200, %208, %267, %277, %285, %293, %352, %360, %370, %378, %437, %445, %453, %463 in 0 : vector<16x64xf32>, vector<16x64xf32>, vector<16x64xf32>, vector<16x64xf32>, vector<16x64xf32>, vector<16x64xf32>, vector<16x64xf32>, vector<16x64xf32>, vector<16x64xf32>, vector<16x64xf32>, vector<16x64xf32>, vector<16x64xf32>, vector<16x64xf32>, vector<16x64xf32>, vector<16x64xf32>, vector<16x64xf32> -> vector<256x64xf32>
    %466 = tpu.concatenate %175, %175, %175, %175, %260, %260, %260, %260, %345, %345, %345, %345, %430, %430, %430, %430 in 0 : vector<16x64xf32>, vector<16x64xf32>, vector<16x64xf32>, vector<16x64xf32>, vector<16x64xf32>, vector<16x64xf32>, vector<16x64xf32>, vector<16x64xf32>, vector<16x64xf32>, vector<16x64xf32>, vector<16x64xf32>, vector<16x64xf32>, vector<16x64xf32>, vector<16x64xf32>, vector<16x64xf32>, vector<16x64xf32> -> vector<256x64xf32>
    %467 = tpu.concatenate %185, %193, %201, %209, %268, %278, %286, %294, %353, %361, %371, %379, %438, %446, %454, %464 in 0 : vector<16x8xf32>, vector<16x8xf32>, vector<16x8xf32>, vector<16x8xf32>, vector<16x8xf32>, vector<16x8xf32>, vector<16x8xf32>, vector<16x8xf32>, vector<16x8xf32>, vector<16x8xf32>, vector<16x8xf32>, vector<16x8xf32>, vector<16x8xf32>, vector<16x8xf32>, vector<16x8xf32>, vector<16x8xf32> -> vector<256x8xf32>
    %cst_83 = arith.constant dense<0.000000e+00> : vector<256xf32>
    %468 = vector.multi_reduction <add>, %465, %cst_83 [1] : vector<256x64xf32> to vector<256xf32>
    %469 = vector.shape_cast %468 : vector<256xf32> to vector<256x1xf32>
    %cst_84 = arith.constant 6.400000e+01 : f32
    %470 = vector.broadcast %cst_84 : f32 to vector<256x1xf32>
    %471 = arith.divf %469, %470 : vector<256x1xf32>
    %472 = vector.broadcast %471 : vector<256x1xf32> to vector<256x64xf32>
    %473 = arith.subf %465, %472 : vector<256x64xf32>
    %474 = vector.broadcast %471 : vector<256x1xf32> to vector<256x64xf32>
    %475 = arith.subf %465, %474 : vector<256x64xf32>
    %476 = arith.mulf %473, %475 : vector<256x64xf32>
    %cst_85 = arith.constant dense<0.000000e+00> : vector<256xf32>
    %477 = vector.multi_reduction <add>, %476, %cst_85 [1] : vector<256x64xf32> to vector<256xf32>
    %478 = vector.shape_cast %477 : vector<256xf32> to vector<256x1xf32>
    %cst_86 = arith.constant 6.400000e+01 : f32
    %479 = vector.broadcast %cst_86 : f32 to vector<256x1xf32>
    %480 = arith.divf %478, %479 : vector<256x1xf32>
    %481 = vector.broadcast %471 : vector<256x1xf32> to vector<256x64xf32>
    %482 = arith.subf %465, %481 : vector<256x64xf32>
    %cst_87 = arith.constant 9.99999974E-6 : f32
    %483 = vector.broadcast %cst_87 : f32 to vector<256x1xf32>
    %484 = arith.addf %480, %483 : vector<256x1xf32>
    %485 = math.rsqrt %484 : vector<256x1xf32>
    %486 = vector.broadcast %485 : vector<256x1xf32> to vector<256x64xf32>
    %487 = arith.mulf %482, %486 : vector<256x64xf32>
    %488 = vector.broadcast %16 : vector<1x64xf32> to vector<256x64xf32>
    %489 = arith.mulf %487, %488 : vector<256x64xf32>
    %490 = vector.broadcast %17 : vector<1x64xf32> to vector<256x64xf32>
    %491 = arith.addf %489, %490 : vector<256x64xf32>
    %cst_88 = arith.constant dense<0.000000e+00> : vector<256x64xf32>
    %492 = tpu.matmul %491, %8, %cst_88 {dimension_numbers = #tpu.dot_dimension_numbers<[1], [0], [0], [1], [0, 0, 1, 1], [], []>} : vector<256x64xf32>, vector<64x64xf32>, vector<256x64xf32> -> vector<256x64xf32>
    %493 = arith.addf %492, %466 : vector<256x64xf32>
    %cst_89 = arith.constant 5.000000e-01 : f32
    %494 = vector.broadcast %cst_89 : f32 to vector<256x64xf32>
    %495 = arith.mulf %494, %493 : vector<256x64xf32>
    %cst_90 = arith.constant 4.471500e-02 : f32
    %496 = vector.broadcast %cst_90 : f32 to vector<256x64xf32>
    %497 = arith.mulf %496, %493 : vector<256x64xf32>
    %498 = arith.mulf %497, %493 : vector<256x64xf32>
    %499 = arith.mulf %498, %493 : vector<256x64xf32>
    %500 = arith.addf %493, %499 : vector<256x64xf32>
    %cst_91 = arith.constant 0.797884583 : f32
    %501 = vector.broadcast %cst_91 : f32 to vector<256x64xf32>
    %502 = arith.mulf %501, %500 : vector<256x64xf32>
    %503 = math.tanh %502 : vector<256x64xf32>
    %cst_92 = arith.constant 1.000000e+00 : f32
    %504 = vector.broadcast %cst_92 : f32 to vector<256x64xf32>
    %505 = arith.addf %504, %503 : vector<256x64xf32>
    %506 = arith.mulf %495, %505 : vector<256x64xf32>
    %cst_93 = arith.constant dense<0.000000e+00> : vector<256x64xf32>
    %507 = tpu.matmul %506, %9, %cst_93 {dimension_numbers = #tpu.dot_dimension_numbers<[1], [0], [0], [1], [0, 0, 1, 1], [], []>} : vector<256x64xf32>, vector<64x64xf32>, vector<256x64xf32> -> vector<256x64xf32>
    %508 = vector.broadcast %15 : vector<1x64xf32> to vector<256x64xf32>
    %509 = arith.addf %507, %508 : vector<256x64xf32>
    %cst_94 = arith.constant 5.000000e-01 : f32
    %510 = vector.broadcast %cst_94 : f32 to vector<256x64xf32>
    %511 = arith.mulf %510, %509 : vector<256x64xf32>
    %cst_95 = arith.constant 4.471500e-02 : f32
    %512 = vector.broadcast %cst_95 : f32 to vector<256x64xf32>
    %513 = arith.mulf %512, %509 : vector<256x64xf32>
    %514 = arith.mulf %513, %509 : vector<256x64xf32>
    %515 = arith.mulf %514, %509 : vector<256x64xf32>
    %516 = arith.addf %509, %515 : vector<256x64xf32>
    %cst_96 = arith.constant 0.797884583 : f32
    %517 = vector.broadcast %cst_96 : f32 to vector<256x64xf32>
    %518 = arith.mulf %517, %516 : vector<256x64xf32>
    %519 = math.tanh %518 : vector<256x64xf32>
    %cst_97 = arith.constant 1.000000e+00 : f32
    %520 = vector.broadcast %cst_97 : f32 to vector<256x64xf32>
    %521 = arith.addf %520, %519 : vector<256x64xf32>
    %522 = arith.mulf %511, %521 : vector<256x64xf32>
    %cst_98 = arith.constant dense<0.000000e+00> : vector<1x256xf32>
    %523 = tpu.matmul %20, %522, %cst_98 {dimension_numbers = #tpu.dot_dimension_numbers<[1], [1], [0], [0], [0, 0, 1, 0], [], []>} : vector<1x64xf32>, vector<256x64xf32>, vector<1x256xf32> -> vector<1x256xf32>
    %524 = vector.broadcast %21 : vector<1x1xf32> to vector<1x256xf32>
    %525 = arith.addf %523, %524 : vector<1x256xf32>
    %cst_99 = arith.constant 1.000000e+00 : f32
    %526 = vector.broadcast %cst_99 : f32 to vector<1x8xf32>
    %cst_100 = arith.constant dense<0.000000e+00> : vector<1x256xf32>
    %527 = tpu.matmul %526, %467, %cst_100 {dimension_numbers = #tpu.dot_dimension_numbers<[1], [1], [0], [0], [0, 0, 1, 0], [], []>} : vector<1x8xf32>, vector<256x8xf32>, vector<1x256xf32> -> vector<1x256xf32>
    %528 = tpu.concatenate %525, %527 in 0 : vector<1x256xf32>, vector<1x256xf32> -> vector<2x256xf32>
    %c0_101 = arith.constant 0 : index
    %c0_102 = arith.constant 0 : index
    %c0_103 = arith.constant 0 : index
    %529 = vector.load %arg5[%c0_101, %c0_102, %c0_103] : memref<1x2x256xf32, #tpu.memory_space<vmem>>, vector<1x2x256xf32>
    %530 = vector.shape_cast %529 : vector<1x2x256xf32> to vector<2x256xf32>
    %531 = vector.shape_cast %528 : vector<2x256xf32> to vector<1x2x256xf32>
    tpu.vector_store %arg5[%c0_101, %c0_102, %c0_103], %531 {strides = array<i32>} : memref<1x2x256xf32, #tpu.memory_space<vmem>>, vector<1x2x256xf32>,
    return
  }
  func.func @transform_0(%arg0: i32) -> (i32, i32, i32) {
    %c0_i32 = arith.constant 0 : i32
    %c0_i32_0 = arith.constant 0 : i32
    %c0_i32_1 = arith.constant 0 : i32
    return %arg0, %c0_i32, %c0_i32_0 : i32, i32, i32
  }
  func.func @transform_1(%arg0: i32) -> (i32, i32) {
    %c0_i32 = arith.constant 0 : i32
    %c0_i32_0 = arith.constant 0 : i32
    %c0_i32_1 = arith.constant 0 : i32
    return %c0_i32, %c0_i32_0 : i32, i32
  }
  func.func @transform_2(%arg0: i32) -> (i32, i32) {
    %c0_i32 = arith.constant 0 : i32
    %c0_i32_0 = arith.constant 0 : i32
    %c0_i32_1 = arith.constant 0 : i32
    return %c0_i32, %c0_i32_0 : i32, i32
  }
  func.func @transform_3(%arg0: i32) -> (i32, i32) {
    %c0_i32 = arith.constant 0 : i32
    %c0_i32_0 = arith.constant 0 : i32
    %c0_i32_1 = arith.constant 0 : i32
    return %c0_i32, %c0_i32_0 : i32, i32
  }
  func.func @transform_4(%arg0: i32) -> (i32, i32, i32) {
    %c0_i32 = arith.constant 0 : i32
    %c0_i32_0 = arith.constant 0 : i32
    %c0_i32_1 = arith.constant 0 : i32
    return %arg0, %c0_i32, %c0_i32_0 : i32, i32, i32
  }
}

</mosaic_0001>

<llo_original>
// kernel: transformer_critic_forward.1
$region0: #{transformer_critic_forward.1}
  #allocation0 [shape = 'u32[]', space=smem, size = 0x4, offset = 0x4, fixed_abs, tag = 'smem constant byte address 0x4 - core index']
  #allocation1 [shape = 'u32[144,128]{1,0:T(1,128)}', space=vmem, size = 0x12000, scoped, tag = 'internal scratch']
  %s0 = inlined_call_operand.vmem [shape: f32[2,128,24], index: 0, kind: input, shape index: {}]
  %s1 = inlined_call_operand.vmem [shape: f32[88,128], index: 1, kind: input, shape index: {}]
  %s2 = inlined_call_operand.vmem [shape: f32[280,64], index: 2, kind: input, shape index: {}]
  %s3 = inlined_call_operand.vmem [shape: f32[12,128], index: 3, kind: input, shape index: {}]
  %s4 = inlined_call_operand.vmem [shape: f32[2,2,256], index: 4, kind: output, shape index: {}]
  %s5 = sld [smem:[#allocation0]]
  $region49: #{transformer_critic_forward.1} parent=0
    _
  %s7 = ssub.s32 1, %s5
  %s8 = scalar_select 0, %s7, %s5
  loop: start=0, step=1, limit=4
  $region2: #{transformer_critic_forward.1} parent=0 // loop_pre_header
    _
  $region3: #{transformer_critic_forward.1} parent=0 // loop_header
    %s10 = sphi 0, %s14
    %p11 = scmp.ge.s32.totalorder %s10, 4
    %s20 = sphi 0, %s22
    %s23 = sphi 0, %s20
    %s24 = sphi 0, %s23
    %s40 = sphi 0, %s24
    %s44 = sphi 0, %s44
    %s46 = sphi 0, %s44
    %s47 = sphi 0, %s46
    %s61 = sphi 0, %s47
    %s65 = sphi 0, %s65
    %s67 = sphi 0, %s65
    %s68 = sphi 0, %s67
    %s82 = sphi 0, %s68
    %s86 = sphi 0, %s86
    %s88 = sphi 0, %s86
    %s89 = sphi 0, %s88
    %s103 = sphi 0, %s89
    %s109 = sphi 0, %s111
    %s112 = sphi 0, %s109
    %s113 = sphi 0, %s112
    %s129 = sphi 0, %s113
  $region4: #{transformer_critic_forward.1} parent=0 // loop_header_branch
    %13 = sbr.rel (%p11) target = $region8
  $region5: #{transformer_critic_forward.1} parent=0 // loop_body
    %s15 = ssub.s32 %s10, 1
    %s16 = ssub.s32 %s10, 2
    %s17 = sadd.s32 %s10, 1
    %s18 = ssub.s32 %s10, %s17
    %p19 = scmp.eq.s32.totalorder %s18, 0
    %s21 = sadd.s32 %s20, 1
    %s22 = scalar_select %p19, %s20, %s21
    %p25 = pneg %p19
    %p26 = scmp.eq.s32.totalorder %s10, 1
    %p27 = por %p25, %p26
    %p28 = scmp.ne.s32.totalorder %s20, %s23
    %p29 = scmp.eq.s32.totalorder %s10, 0
    %p30 = por %p28, %p29
    %p31 = scmp.ne.s32.totalorder %s20, %s23
    %p32 = scmp.eq.s32.totalorder %s15, 1
    %p33 = por %p31, %p32
    %p34 = scmp.ne.s32.totalorder %s23, %s24
    %p35 = scmp.eq.s32.totalorder %s15, 0
    %p36 = por %p34, %p35
    %p37 = scmp.ne.s32.totalorder %s23, %s24
    %p38 = scmp.eq.s32.totalorder %s16, 1
    %p39 = por %p37, %p38
    %p41 = scmp.ne.s32.totalorder %s24, %s40
    %p42 = scmp.eq.s32.totalorder %s16, 0
    %p43 = por %p41, %p42
    %s45 = sadd.s32 %s44, 1
    %p48 = scmp.eq.s32.totalorder %s10, 1
    %p49 = scmp.ne.s32.totalorder %s44, %s46
    %p50 = scmp.eq.s32.totalorder %s10, 0
    %p51 = por %p49, %p50
    %p52 = scmp.ne.s32.totalorder %s44, %s46
    %p53 = scmp.eq.s32.totalorder %s15, 1
    %p54 = por %p52, %p53
    %p55 = scmp.ne.s32.totalorder %s46, %s47
    %p56 = scmp.eq.s32.totalorder %s15, 0
    %p57 = por %p55, %p56
    %p58 = scmp.ne.s32.totalorder %s46, %s47
    %p59 = scmp.eq.s32.totalorder %s16, 1
    %p60 = por %p58, %p59
    %p62 = scmp.ne.s32.totalorder %s47, %s61
    %p63 = scmp.eq.s32.totalorder %s16, 0
    %p64 = por %p62, %p63
    %s66 = sadd.s32 %s65, 1
    %p69 = scmp.eq.s32.totalorder %s10, 1
    %p70 = scmp.ne.s32.totalorder %s65, %s67
    %p71 = scmp.eq.s32.totalorder %s10, 0
    %p72 = por %p70, %p71
    %p73 = scmp.ne.s32.totalorder %s65, %s67
    %p74 = scmp.eq.s32.totalorder %s15, 1
    %p75 = por %p73, %p74
    %p76 = scmp.ne.s32.totalorder %s67, %s68
    %p77 = scmp.eq.s32.totalorder %s15, 0
    %p78 = por %p76, %p77
    %p79 = scmp.ne.s32.totalorder %s67, %s68
    %p80 = scmp.eq.s32.totalorder %s16, 1
    %p81 = por %p79, %p80
    %p83 = scmp.ne.s32.totalorder %s68, %s82
    %p84 = scmp.eq.s32.totalorder %s16, 0
    %p85 = por %p83, %p84
    %s87 = sadd.s32 %s86, 1
    %p90 = scmp.eq.s32.totalorder %s10, 1
    %p91 = scmp.ne.s32.totalorder %s86, %s88
    %p92 = scmp.eq.s32.totalorder %s10, 0
    %p93 = por %p91, %p92
    %p94 = scmp.ne.s32.totalorder %s86, %s88
    %p95 = scmp.eq.s32.totalorder %s15, 1
    %p96 = por %p94, %p95
    %p97 = scmp.ne.s32.totalorder %s88, %s89
    %p98 = scmp.eq.s32.totalorder %s15, 0
    %p99 = por %p97, %p98
    %p100 = scmp.ne.s32.totalorder %s88, %s89
    %p101 = scmp.eq.s32.totalorder %s16, 1
    %p102 = por %p100, %p101
    %p104 = scmp.ne.s32.totalorder %s89, %s103
    %p105 = scmp.eq.s32.totalorder %s16, 0
    %p106 = por %p104, %p105
    %s107 = ssub.s32 %s10, %s17
    %p108 = scmp.eq.s32.totalorder %s107, 0
    %s110 = sadd.s32 %s109, 1
    %s111 = scalar_select %p108, %s109, %s110
    %p114 = pneg %p108
    %p115 = scmp.eq.s32.totalorder %s10, 1
    %p116 = por %p114, %p115
    %p117 = scmp.ne.s32.totalorder %s109, %s112
    %p118 = scmp.eq.s32.totalorder %s10, 0
    %p119 = por %p117, %p118
    %p120 = scmp.ne.s32.totalorder %s109, %s112
    %p121 = scmp.eq.s32.totalorder %s15, 1
    %p122 = por %p120, %p121
    %p123 = scmp.ne.s32.totalorder %s112, %s113
    %p124 = scmp.eq.s32.totalorder %s15, 0
    %p125 = por %p123, %p124
    %p126 = scmp.ne.s32.totalorder %s112, %s113
    %p127 = scmp.eq.s32.totalorder %s16, 1
    %p128 = por %p126, %p127
    %p130 = scmp.ne.s32.totalorder %s113, %s129
    %p131 = scmp.eq.s32.totalorder %s16, 0
    %p132 = por %p130, %p131
    %p133 = scmp.le.s32.totalorder 1, %s10
    %p134 = scmp.lt.s32.totalorder %s10, 3
    %p135 = pnand %p133, %p134
    %p136 = pneg %p135
    // Predicated region
    $region9: #{transformer_critic_forward.1} parent=5 // pred_check
      _
    $region10: #{transformer_critic_forward.1} parent=5 // pred_check_branch
      %138 = sbr.rel (%p135) target = $region12
    $region11: #{transformer_critic_forward.1} parent=5 // pred_region
      %s139 = ssub.s32 %s10, 1
      // Predicated region
      $region13: #{transformer_critic_forward.1} parent=11 // pred_check
        %p140 = pneg %p57
      $region14: #{transformer_critic_forward.1} parent=11 // pred_check_branch
        %142 = sbr.rel (%p140) target = $region16
      $region15: #{transformer_critic_forward.1} parent=11 // pred_region
        _
      $region16: #{transformer_critic_forward.1} parent=11 // pred_fallthru
        _
      // Predicated region
      $region17: #{transformer_critic_forward.1} parent=11 // pred_check
        %p143 = pneg %p78
      $region18: #{transformer_critic_forward.1} parent=11 // pred_check_branch
        %145 = sbr.rel (%p143) target = $region20
      $region19: #{transformer_critic_forward.1} parent=11 // pred_region
        _
      $region20: #{transformer_critic_forward.1} parent=11 // pred_fallthru
        _
      // Predicated region
      $region21: #{transformer_critic_forward.1} parent=11 // pred_check
        %p146 = pneg %p99
      $region22: #{transformer_critic_forward.1} parent=11 // pred_check_branch
        %148 = sbr.rel (%p146) target = $region24
      $region23: #{transformer_critic_forward.1} parent=11 // pred_region
        _
      $region24: #{transformer_critic_forward.1} parent=11 // pred_fallthru
        _
    $region12: #{transformer_critic_forward.1} parent=5 // pred_fallthru
      _
    %p149 = scmp.lt.s32.totalorder %s10, 2
    // Predicated region
    $region25: #{transformer_critic_forward.1} parent=5 // pred_check
      %p150 = pneg %p149
    $region26: #{transformer_critic_forward.1} parent=5 // pred_check_branch
      %152 = sbr.rel (%p150) target = $region28
    $region27: #{transformer_critic_forward.1} parent=5 // pred_region
      // Predicated region
      $region29: #{transformer_critic_forward.1} parent=27 // pred_check
        %p153 = pneg %p30
      $region30: #{transformer_critic_forward.1} parent=27 // pred_check_branch
        %155 = sbr.rel (%p153) target = $region32
      $region31: #{transformer_critic_forward.1} parent=27 // pred_region
        %p156 = scmp.lt.s32.totalorder %s10, 1
        %s157 = scalar_select %p156, %s10, 1
        %s158 = smul.addr %s157, 16
        %s159 = smul.addr %s158, 8
        %s160 = scalar_lea.vmem %s0, %s159
      $region32: #{transformer_critic_forward.1} parent=27 // pred_fallthru
        _
    $region28: #{transformer_critic_forward.1} parent=5 // pred_fallthru
      _
    %p161 = scmp.le.s32.totalorder 1, %s10
    %p162 = scmp.lt.s32.totalorder %s10, 3
    %p163 = pnand %p161, %p162
    %p164 = pneg %p163
    // Predicated region
    $region33: #{transformer_critic_forward.1} parent=5 // pred_check
      _
    $region34: #{transformer_critic_forward.1} parent=5 // pred_check_branch
      %166 = sbr.rel (%p163) target = $region36
    $region35: #{transformer_critic_forward.1} parent=5 // pred_region
      %s167 = ssub.s32 %s10, 1
      %p168 = scmp.lt.s32.totalorder %s15, 1
      %s169 = scalar_select %p168, %s15, 1
      %s170 = smul.addr %s169, 16
      %s171 = smul.addr %s170, 8
      %s172 = scalar_lea.vmem %s0, %s171
      %p173 = pneg %p36
      %p174 = pneg %p33
      %p175 = pneg %p57
      %p176 = pneg %p54
      %p177 = pneg %p78
      %p178 = pneg %p75
      %p179 = pneg %p99
      %p180 = pneg %p96
      %p181 = pneg %p125
      %p182 = pneg %p122
      %p183 = scmp.lt.s32.totalorder %s15, 1
      %s184 = scalar_select %p183, %s15, 1
      %s185 = smul.addr %s184, 2
      %s186 = smul.addr %s185, 2
      %s187 = scalar_lea.vmem %s4, %s186
      %p188 = scmp.lt.s32.totalorder %s15, 1
      %s189 = scalar_select %p188, %s15, 1
      %s190 = smul.addr %s189, 16
      %s191 = smul.addr %s190, 8
      %s192 = scalar_lea.vmem %s0, %s191
      %p193 = scmp.lt.s32.totalorder %s15, 1
      %s194 = scalar_select %p193, %s15, 1
      %s195 = smul.addr %s194, 2
      %s196 = smul.addr %s195, 2
      %s197 = scalar_lea.vmem %s4, %s196
      %v198 = vld [vmem:[%s192] sm:$0xff]
      %v199 = vld [vmem:[%s192 + $0x8] sm:$0xff]
      %v200 = vld [vmem:[%s192 + $0x10] sm:$0xff]
      %v201 = vld [vmem:[%s192 + $0x18] sm:$0xff]
      %v202 = vld [vmem:[%s192 + $0x20] sm:$0xff]
      %v203 = vld [vmem:[%s192 + $0x28] sm:$0xff]
      %v204 = vld [vmem:[%s192 + $0x30] sm:$0xff]
      %v205 = vld [vmem:[%s192 + $0x38] sm:$0xff]
      %v206 = vld [vmem:[%s192 + $0x40] sm:$0xff]
      %v207 = vld [vmem:[%s192 + $0x48] sm:$0xff]
      %v208 = vld [vmem:[%s192 + $0x50] sm:$0xff]
      %v209 = vld [vmem:[%s192 + $0x58] sm:$0xff]
      %v210 = vld [vmem:[%s192 + $0x60] sm:$0xff]
      %v211 = vld [vmem:[%s192 + $0x68] sm:$0xff]
      %v212 = vld [vmem:[%s192 + $0x70] sm:$0xff]
      %v213 = vld [vmem:[%s192 + $0x78] sm:$0xff]
      %v214 = vld [vmem:[%s1] sm:$0xff]
      %v215 = vld [vmem:[%s1 + $0x8] sm:$0xff]
      %v216 = vld [vmem:[%s1 + $0x10] sm:$0xff]
      %v217 = vld [vmem:[%s1 + $0x18] sm:$0xff]
      %v218 = vld [vmem:[%s1 + $0x20] sm:$0xff]
      %v219 = vld [vmem:[%s1 + $0x28] sm:$0xff]
      %v220 = vld [vmem:[%s1 + $0x30] sm:$0xff]
      %v221 = vld [vmem:[%s1 + $0x38] sm:$0xff]
      %v222 = vld [vmem:[%s1 + $0x40] sm:$0xff]
      %v223 = vld [vmem:[%s1 + $0x48] sm:$0xff]
      %v224 = vld [vmem:[%s1 + $0x50] sm:$0xff]
      %v225 = vld [vmem:[%s2] sm:$0xff]
      %v226 = vld [vmem:[%s2 + $0x8] sm:$0xff]
      %v227 = vld [vmem:[%s2 + $0x10] sm:$0xff]
      %v228 = vld [vmem:[%s2 + $0x18] sm:$0xff]
      %v229 = vld [vmem:[%s2 + $0x20] sm:$0xff]
      %v230 = vld [vmem:[%s2 + $0x28] sm:$0xff]
      %v231 = vld [vmem:[%s2 + $0x30] sm:$0xff]
      %v232 = vld [vmem:[%s2 + $0x38] sm:$0xff]
      %v233 = vld [vmem:[%s2 + $0x40] sm:$0xff]
      %v234 = vld [vmem:[%s2 + $0x48] sm:$0xff]
      %v235 = vld [vmem:[%s2 + $0x50] sm:$0xff]
      %v236 = vld [vmem:[%s2 + $0x58] sm:$0xff]
      %v237 = vld [vmem:[%s2 + $0x60] sm:$0xff]
      %v238 = vld [vmem:[%s2 + $0x68] sm:$0xff]
      %v239 = vld [vmem:[%s2 + $0x70] sm:$0xff]
      %v240 = vld [vmem:[%s2 + $0x78] sm:$0xff]
      %v241 = vld [vmem:[%s2 + $0x80] sm:$0xff]
      %v242 = vld [vmem:[%s2 + $0x88] sm:$0xff]
      %v243 = vld [vmem:[%s2 + $0x90] sm:$0xff]
      %v244 = vld [vmem:[%s2 + $0x98] sm:$0xff]
      %v245 = vld [vmem:[%s2 + $0xa0] sm:$0xff]
      %v246 = vld [vmem:[%s2 + $0xa8] sm:$0xff]
      %v247 = vld [vmem:[%s2 + $0xb0] sm:$0xff]
      %v248 = vld [vmem:[%s2 + $0xb8] sm:$0xff]
      %v249 = vld [vmem:[%s2 + $0xc0] sm:$0xff]
      %v250 = vld [vmem:[%s2 + $0xc8] sm:$0xff]
      %v251 = vld [vmem:[%s2 + $0xd0] sm:$0xff]
      %v252 = vld [vmem:[%s2 + $0xd8] sm:$0xff]
      %v253 = vld [vmem:[%s2 + $0xe0] sm:$0xff]
      %v254 = vld [vmem:[%s2 + $0xe8] sm:$0xff]
      %v255 = vld [vmem:[%s2 + $0xf0] sm:$0xff]
      %v256 = vld [vmem:[%s2 + $0xf8] sm:$0xff]
      %v257 = vld [vmem:[%s2 + $0x100] sm:$0xff]
      %v258 = vld [vmem:[%s2 + $0x108] sm:$0xff]
      %v259 = vld [vmem:[%s2 + $0x110] sm:$0xff]
      %v260 = vld [vmem:[%s3] sm:$0x1]
      %v261 = vld [vmem:[%s3 + $0x1] sm:$0x1]
      %v262 = vld [vmem:[%s3 + $0x2] sm:$0x1]
      %v263 = vld [vmem:[%s3 + $0x3] sm:$0x1]
      %v264 = vld [vmem:[%s3 + $0x4] sm:$0x1]
      %v265 = vld [vmem:[%s3 + $0x5] sm:$0x1]
      %v266 = vld [vmem:[%s3 + $0x6] sm:$0x1]
      %v267 = vld [vmem:[%s3 + $0x7] sm:$0x1]
      %v268 = vld [vmem:[%s3 + $0x8] sm:$0x1]
      %v269 = vld [vmem:[%s3 + $0x9] sm:$0x1]
      %v270 = vld [vmem:[%s3 + $0xa] sm:$0x1]
      %v271 = vld [vmem:[%s3 + $0xb] sm:$0x1]
      %v272 = vlaneseq
      %v273 = vshrl.u32 %v272, 7
      %v274 = vsub.s32 0, %v273
      %v275 = vrot.slane %v260, %v274
      %vm276 = vcmask 195584
      %v278 = vsel %vm276, %v198, 0
      %v281 = vsel %vm276, %v199, 0
      %v284 = vsel %vm276, %v200, 0
      %v287 = vsel %vm276, %v201, 0
      %v290 = vsel %vm276, %v202, 0
      %v293 = vsel %vm276, %v203, 0
      %v296 = vsel %vm276, %v204, 0
      %v299 = vsel %vm276, %v205, 0
      %301 = vmatprep.subr.mxu0 0.0
      %302 = vmatpush1.msra.mxu0 0.0
      %303 = vmatprep.subr.mxu0 0.0
      %304 = vmatpush1.msra.mxu0 0.0
      %305 = vmatprep.subr.mxu0 0.0
      %306 = vmatpush1.msra.mxu0 0.0
      %307 = vmatprep.subr.mxu0 0.0
      %308 = vmatpush1.msra.mxu0 0.0
      %309 = vmatprep.subr.mxu0 0.0
      %310 = vmatpush1.msra.mxu0 0.0
      %311 = vmatprep.subr.mxu0 0.0
      %312 = vmatpush1.msra.mxu0 0.0
      %313 = vmatprep.subr.mxu0 0.0
      %314 = vmatpush1.msra.mxu0 0.0
      %315 = vmatprep.subr.mxu0 0.0
      %316 = vmatpush1.msra.mxu0 0.0
      %317 = vmatprep.subr.mxu0 0.0
      %318 = vmatpush1.msra.mxu0 0.0
      %319 = vmatprep.subr.mxu0 0.0
      %320 = vmatpush1.msra.mxu0 0.0
      %321 = vmatprep.subr.mxu0 0.0
      %322 = vmatpush1.msra.mxu0 0.0
      %323 = vmatprep.subr.mxu0 0.0
      %324 = vmatpush1.msra.mxu0 0.0
      %325 = vmatprep.subr.mxu0 0.0
      %326 = vmatpush1.msra.mxu0 0.0
      %327 = vmatprep.subr.mxu0 0.0
      %328 = vmatpush1.msra.mxu0 %v216
      %329 = vmatprep.subr.mxu0 0.0
      %330 = vmatpush1.msra.mxu0 %v215
      %331 = vmatprep.subr.mxu0 0.0
      %332 = vmatpush1.msra.mxu0 %v214
      %333 = vmatprep.subr.mxu0 0.0
      %334 = vmatpush2.msra.mxu0 0.0
      %335 = vmatprep.subr.mxu0 0.0
      %336 = vmatpush2.msra.mxu0 0.0
      %337 = vmatprep.subr.mxu0 0.0
      %338 = vmatpush2.msra.mxu0 0.0
      %339 = vmatprep.subr.mxu0 0.0
      %340 = vmatpush2.msra.mxu0 0.0
      %341 = vmatprep.subr.mxu0 0.0
      %342 = vmatpush2.msra.mxu0 0.0
      %343 = vmatprep.subr.mxu0 0.0
      %344 = vmatpush2.msra.mxu0 0.0
      %345 = vmatprep.subr.mxu0 0.0
      %346 = vmatpush2.msra.mxu0 0.0
      %347 = vmatprep.subr.mxu0 0.0
      %348 = vmatpush2.msra.mxu0 0.0
      %349 = vmatprep.subr.mxu0 0.0
      %350 = vmatpush2.msra.mxu0 0.0
      %351 = vmatprep.subr.mxu0 0.0
      %352 = vmatpush2.msra.mxu0 0.0
      %353 = vmatprep.subr.mxu0 0.0
      %354 = vmatpush2.msra.mxu0 0.0
      %355 = vmatprep.subr.mxu0 0.0
      %356 = vmatpush2.msra.mxu0 0.0
      %357 = vmatprep.subr.mxu0 0.0
      %358 = vmatpush2.msra.mxu0 0.0
      %359 = vmatprep.subr.mxu0 0.0
      %360 = vmatpush2.msra.mxu0 0.0
      %361 = vmatprep.subr.mxu0 0.0
      %362 = vmatpush2.msra.mxu0 0.0
      %363 = vmatprep.subr.mxu0 0.0
      %364 = vmatpush2.msra.mxu0 0.0
      %365 = vmatprep.mubr.f32.mxu0 0.0
      %366 = vmatmul.mubr.f32.gmra.mxu0 %v278
      %v367 = vpop.f32.mrf.mxu0
      %v368 = vadd.f32 %v275, %v367
      %v369 = vpop.f32.mrf.mxu0
      %370 = vmatprep.mubr.f32.mxu0 0.0
      %371 = vmatmul.mubr.f32.gmra.mxu0 %v281
      %v372 = vpop.f32.mrf.mxu0
      %v373 = vadd.f32 %v275, %v372
      %v374 = vpop.f32.mrf.mxu0
      %375 = vmatprep.mubr.f32.mxu0 0.0
      %376 = vmatmul.mubr.f32.gmra.mxu0 %v284
      %v377 = vpop.f32.mrf.mxu0
      %v378 = vadd.f32 %v275, %v377
      %v379 = vpop.f32.mrf.mxu0
      %380 = vmatprep.mubr.f32.mxu0 0.0
      %381 = vmatmul.mubr.f32.gmra.mxu0 %v287
      %v382 = vpop.f32.mrf.mxu0
      %v383 = vadd.f32 %v275, %v382
      %v384 = vpop.f32.mrf.mxu0
      %385 = vmatprep.mubr.f32.mxu0 0.0
      %386 = vmatmul.mubr.f32.gmra.mxu0 %v290
      %v387 = vpop.f32.mrf.mxu0
      %v388 = vadd.f32 %v275, %v387
      %v389 = vpop.f32.mrf.mxu0
      %390 = vmatprep.mubr.f32.mxu0 0.0
      %391 = vmatmul.mubr.f32.gmra.mxu0 %v293
      %v392 = vpop.f32.mrf.mxu0
      %v393 = vadd.f32 %v275, %v392
      %v394 = vpop.f32.mrf.mxu0
      %395 = vmatprep.mubr.f32.mxu0 0.0
      %396 = vmatmul.mubr.f32.gmra.mxu0 %v296
      %v397 = vpop.f32.mrf.mxu0
      %v398 = vadd.f32 %v275, %v397
      %v399 = vpop.f32.mrf.mxu0
      %400 = vmatprep.mubr.f32.mxu0 0.0
      %401 = vmatmul.mubr.f32.gmra.mxu0 %v299
      %v402 = vpop.f32.mrf.mxu0
      %v403 = vadd.f32 %v275, %v402
      %v404 = vpop.f32.mrf.mxu0
      %405 = vdwg.mxu0
      %v406 = vmul.f32 %v368, 0.5
      %v407 = vmul.f32 %v373, 0.5
      %v408 = vmul.f32 %v378, 0.5
      %v409 = vmul.f32 %v383, 0.5
      %v410 = vmul.f32 %v388, 0.5
      %v411 = vmul.f32 %v393, 0.5
      %v412 = vmul.f32 %v398, 0.5
      %v413 = vmul.f32 %v403, 0.5
      %v414 = vmul.f32 %v368, 0.044715
      %v415 = vmul.f32 %v373, 0.044715
      %v416 = vmul.f32 %v378, 0.044715
      %v417 = vmul.f32 %v383, 0.044715
      %v418 = vmul.f32 %v388, 0.044715
      %v419 = vmul.f32 %v393, 0.044715
      %v420 = vmul.f32 %v398, 0.044715
      %v421 = vmul.f32 %v403, 0.044715
      %v422 = vmul.f32 %v414, %v368
      %v423 = vmul.f32 %v415, %v373
      %v424 = vmul.f32 %v416, %v378
      %v425 = vmul.f32 %v417, %v383
      %v426 = vmul.f32 %v418, %v388
      %v427 = vmul.f32 %v419, %v393
      %v428 = vmul.f32 %v420, %v398
      %v429 = vmul.f32 %v421, %v403
      %v430 = vmul.f32 %v422, %v368
      %v431 = vmul.f32 %v423, %v373
      %v432 = vmul.f32 %v424, %v378
      %v433 = vmul.f32 %v425, %v383
      %v434 = vmul.f32 %v426, %v388
      %v435 = vmul.f32 %v427, %v393
      %v436 = vmul.f32 %v428, %v398
      %v437 = vmul.f32 %v429, %v403
      %v438 = vadd.f32 %v368, %v430
      %v439 = vadd.f32 %v373, %v431
      %v440 = vadd.f32 %v378, %v432
      %v441 = vadd.f32 %v383, %v433
      %v442 = vadd.f32 %v388, %v434
      %v443 = vadd.f32 %v393, %v435
      %v444 = vadd.f32 %v398, %v436
      %v445 = vadd.f32 %v403, %v437
      %v446 = vmul.f32 %v438, 0.7978846
      %v447 = vmul.f32 %v439, 0.7978846
      %v448 = vmul.f32 %v440, 0.7978846
      %v449 = vmul.f32 %v441, 0.7978846
      %v450 = vmul.f32 %v442, 0.7978846
      %v451 = vmul.f32 %v443, 0.7978846
      %v452 = vmul.f32 %v444, 0.7978846
      %v453 = vmul.f32 %v445, 0.7978846
      %v454 = vtanh.pop %v446
      %v455 = vtanh.pop %v447
      %v456 = vtanh.pop %v448
      %v457 = vtanh.pop %v449
      %v458 = vtanh.pop %v450
      %v459 = vtanh.pop %v451
      %v460 = vtanh.pop %v452
      %v461 = vtanh.pop %v453
      %v462 = vadd.f32 %v454, 1.0
      %v463 = vadd.f32 %v455, 1.0
      %v464 = vadd.f32 %v456, 1.0
      %v465 = vadd.f32 %v457, 1.0
      %v466 = vadd.f32 %v458, 1.0
      %v467 = vadd.f32 %v459, 1.0
      %v468 = vadd.f32 %v460, 1.0
      %v469 = vadd.f32 %v461, 1.0
      %v470 = vmul.f32 %v406, %v462
      %v471 = vmul.f32 %v407, %v463
      %v472 = vmul.f32 %v408, %v464
      %v473 = vmul.f32 %v409, %v465
      %v474 = vmul.f32 %v410, %v466
      %v475 = vmul.f32 %v411, %v467
      %v476 = vmul.f32 %v412, %v468
      %v477 = vmul.f32 %v413, %v469
      %v478 = vlaneseq
      %v479 = vshrl.u32 %v478, 7
      %v480 = vsub.s32 0, %v479
      %v481 = vrot.slane %v261, %v480
      %vm482 = vcmask 523264
      %v484 = vsel %vm482, %v470, 0
      %v487 = vsel %vm482, %v471, 0
      %v490 = vsel %vm482, %v472, 0
      %v493 = vsel %vm482, %v473, 0
      %v496 = vsel %vm482, %v474, 0
      %v499 = vsel %vm482, %v475, 0
      %v502 = vsel %vm482, %v476, 0
      %v505 = vsel %vm482, %v477, 0
      %507 = vmatprep.subr.mxu0 0.0
      %508 = vmatpush1.msra.mxu0 0.0
      %509 = vmatprep.subr.mxu0 0.0
      %510 = vmatpush1.msra.mxu0 0.0
      %511 = vmatprep.subr.mxu0 0.0
      %512 = vmatpush1.msra.mxu0 0.0
      %513 = vmatprep.subr.mxu0 0.0
      %514 = vmatpush1.msra.mxu0 0.0
      %515 = vmatprep.subr.mxu0 0.0
      %516 = vmatpush1.msra.mxu0 0.0
      %517 = vmatprep.subr.mxu0 0.0
      %518 = vmatpush1.msra.mxu0 0.0
      %519 = vmatprep.subr.mxu0 0.0
      %520 = vmatpush1.msra.mxu0 0.0
      %521 = vmatprep.subr.mxu0 0.0
      %522 = vmatpush1.msra.mxu0 0.0
      %523 = vmatprep.subr.mxu0 0.0
      %524 = vmatpush1.msra.mxu0 %v224
      %525 = vmatprep.subr.mxu0 0.0
      %526 = vmatpush1.msra.mxu0 %v223
      %527 = vmatprep.subr.mxu0 0.0
      %528 = vmatpush1.msra.mxu0 %v222
      %529 = vmatprep.subr.mxu0 0.0
      %530 = vmatpush1.msra.mxu0 %v221
      %531 = vmatprep.subr.mxu0 0.0
      %532 = vmatpush1.msra.mxu0 %v220
      %533 = vmatprep.subr.mxu0 0.0
      %534 = vmatpush1.msra.mxu0 %v219
      %535 = vmatprep.subr.mxu0 0.0
      %536 = vmatpush1.msra.mxu0 %v218
      %537 = vmatprep.subr.mxu0 0.0
      %538 = vmatpush1.msra.mxu0 %v217
      %539 = vmatprep.subr.mxu0 0.0
      %540 = vmatpush2.msra.mxu0 0.0
      %541 = vmatprep.subr.mxu0 0.0
      %542 = vmatpush2.msra.mxu0 0.0
      %543 = vmatprep.subr.mxu0 0.0
      %544 = vmatpush2.msra.mxu0 0.0
      %545 = vmatprep.subr.mxu0 0.0
      %546 = vmatpush2.msra.mxu0 0.0
      %547 = vmatprep.subr.mxu0 0.0
      %548 = vmatpush2.msra.mxu0 0.0
      %549 = vmatprep.subr.mxu0 0.0
      %550 = vmatpush2.msra.mxu0 0.0
      %551 = vmatprep.subr.mxu0 0.0
      %552 = vmatpush2.msra.mxu0 0.0
      %553 = vmatprep.subr.mxu0 0.0
      %554 = vmatpush2.msra.mxu0 0.0
      %555 = vmatprep.subr.mxu0 0.0
      %556 = vmatpush2.msra.mxu0 0.0
      %557 = vmatprep.subr.mxu0 0.0
      %558 = vmatpush2.msra.mxu0 0.0
      %559 = vmatprep.subr.mxu0 0.0
      %560 = vmatpush2.msra.mxu0 0.0
      %561 = vmatprep.subr.mxu0 0.0
      %562 = vmatpush2.msra.mxu0 0.0
      %563 = vmatprep.subr.mxu0 0.0
      %564 = vmatpush2.msra.mxu0 0.0
      %565 = vmatprep.subr.mxu0 0.0
      %566 = vmatpush2.msra.mxu0 0.0
      %567 = vmatprep.subr.mxu0 0.0
      %568 = vmatpush2.msra.mxu0 0.0
      %569 = vmatprep.subr.mxu0 0.0
      %570 = vmatpush2.msra.mxu0 0.0
      %571 = vmatprep.mubr.f32.mxu0 0.0
      %572 = vmatmul.mubr.f32.gmra.mxu0 %v484
      %v573 = vpop.f32.mrf.mxu0
      %v574 = vadd.f32 %v481, %v573
      %v575 = vpop.f32.mrf.mxu0
      %576 = vmatprep.mubr.f32.mxu0 0.0
      %577 = vmatmul.mubr.f32.gmra.mxu0 %v487
      %v578 = vpop.f32.mrf.mxu0
      %v579 = vadd.f32 %v481, %v578
      %v580 = vpop.f32.mrf.mxu0
      %581 = vmatprep.mubr.f32.mxu0 0.0
      %582 = vmatmul.mubr.f32.gmra.mxu0 %v490
      %v583 = vpop.f32.mrf.mxu0
      %v584 = vadd.f32 %v481, %v583
      %v585 = vpop.f32.mrf.mxu0
      %586 = vmatprep.mubr.f32.mxu0 0.0
      %587 = vmatmul.mubr.f32.gmra.mxu0 %v493
      %v588 = vpop.f32.mrf.mxu0
      %v589 = vadd.f32 %v481, %v588
      %v590 = vpop.f32.mrf.mxu0
      %591 = vmatprep.mubr.f32.mxu0 0.0
      %592 = vmatmul.mubr.f32.gmra.mxu0 %v496
      %v593 = vpop.f32.mrf.mxu0
      %v594 = vadd.f32 %v481, %v593
      %v595 = vpop.f32.mrf.mxu0
      %596 = vmatprep.mubr.f32.mxu0 0.0
      %597 = vmatmul.mubr.f32.gmra.mxu0 %v499
      %v598 = vpop.f32.mrf.mxu0
      %v599 = vadd.f32 %v481, %v598
      %v600 = vpop.f32.mrf.mxu0
      %601 = vmatprep.mubr.f32.mxu0 0.0
      %602 = vmatmul.mubr.f32.gmra.mxu0 %v502
      %v603 = vpop.f32.mrf.mxu0
      %v604 = vadd.f32 %v481, %v603
      %v605 = vpop.f32.mrf.mxu0
      %606 = vmatprep.mubr.f32.mxu0 0.0
      %607 = vmatmul.mubr.f32.gmra.mxu0 %v505
      %v608 = vpop.f32.mrf.mxu0
      %v609 = vadd.f32 %v481, %v608
      %v610 = vpop.f32.mrf.mxu0
      %611 = vdwg.mxu0
      %v612 = vmul.f32 %v574, 0.5
      %v613 = vmul.f32 %v579, 0.5
      %v614 = vmul.f32 %v584, 0.5
      %v615 = vmul.f32 %v589, 0.5
      %v616 = vmul.f32 %v594, 0.5
      %v617 = vmul.f32 %v599, 0.5
      %v618 = vmul.f32 %v604, 0.5
      %v619 = vmul.f32 %v609, 0.5
      %v620 = vmul.f32 %v574, 0.044715
      %v621 = vmul.f32 %v579, 0.044715
      %v622 = vmul.f32 %v584, 0.044715
      %v623 = vmul.f32 %v589, 0.044715
      %v624 = vmul.f32 %v594, 0.044715
      %v625 = vmul.f32 %v599, 0.044715
      %v626 = vmul.f32 %v604, 0.044715
      %v627 = vmul.f32 %v609, 0.044715
      %v628 = vmul.f32 %v620, %v574
      %v629 = vmul.f32 %v621, %v579
      %v630 = vmul.f32 %v622, %v584
      %v631 = vmul.f32 %v623, %v589
      %v632 = vmul.f32 %v624, %v594
      %v633 = vmul.f32 %v625, %v599
      %v634 = vmul.f32 %v626, %v604
      %v635 = vmul.f32 %v627, %v609
      %v636 = vmul.f32 %v628, %v574
      %v637 = vmul.f32 %v629, %v579
      %v638 = vmul.f32 %v630, %v584
      %v639 = vmul.f32 %v631, %v589
      %v640 = vmul.f32 %v632, %v594
      %v641 = vmul.f32 %v633, %v599
      %v642 = vmul.f32 %v634, %v604
      %v643 = vmul.f32 %v635, %v609
      %v644 = vadd.f32 %v574, %v636
      %v645 = vadd.f32 %v579, %v637
      %v646 = vadd.f32 %v584, %v638
      %v647 = vadd.f32 %v589, %v639
      %v648 = vadd.f32 %v594, %v640
      %v649 = vadd.f32 %v599, %v641
      %v650 = vadd.f32 %v604, %v642
      %v651 = vadd.f32 %v609, %v643
      %v652 = vmul.f32 %v644, 0.7978846
      %v653 = vmul.f32 %v645, 0.7978846
      %v654 = vmul.f32 %v646, 0.7978846
      %v655 = vmul.f32 %v647, 0.7978846
      %v656 = vmul.f32 %v648, 0.7978846
      %v657 = vmul.f32 %v649, 0.7978846
      %v658 = vmul.f32 %v650, 0.7978846
      %v659 = vmul.f32 %v651, 0.7978846
      %v660 = vtanh.pop %v652
      %v661 = vtanh.pop %v653
      %v662 = vtanh.pop %v654
      %v663 = vtanh.pop %v655
      %v664 = vtanh.pop %v656
      %v665 = vtanh.pop %v657
      %v666 = vtanh.pop %v658
      %v667 = vtanh.pop %v659
      %v668 = vadd.f32 %v660, 1.0
      %v669 = vadd.f32 %v661, 1.0
      %v670 = vadd.f32 %v662, 1.0
      %v671 = vadd.f32 %v663, 1.0
      %v672 = vadd.f32 %v664, 1.0
      %v673 = vadd.f32 %v665, 1.0
      %v674 = vadd.f32 %v666, 1.0
      %v675 = vadd.f32 %v667, 1.0
      %v676 = vmul.f32 %v612, %v668
      %v677 = vmul.f32 %v613, %v669
      %v678 = vmul.f32 %v614, %v670
      %v679 = vmul.f32 %v615, %v671
      %v680 = vmul.f32 %v616, %v672
      %v681 = vmul.f32 %v617, %v673
      %v682 = vmul.f32 %v618, %v674
      %v683 = vmul.f32 %v619, %v675
      %v684 = vlaneseq
      %v685 = vshrl.u32 %v684, 7
      %v686 = vsub.s32 0, %v685
      %v687 = vrot.slane %v262, %v686
      %v689 = vsel %vm276, %v206, 0
      %v692 = vsel %vm276, %v207, 0
      %v695 = vsel %vm276, %v208, 0
      %v698 = vsel %vm276, %v209, 0
      %v701 = vsel %vm276, %v210, 0
      %v704 = vsel %vm276, %v211, 0
      %v707 = vsel %vm276, %v212, 0
      %v710 = vsel %vm276, %v213, 0
      %712 = vmatprep.subr.mxu0 0.0
      %713 = vmatpush1.msra.mxu0 0.0
      %714 = vmatprep.subr.mxu0 0.0
      %715 = vmatpush1.msra.mxu0 0.0
      %716 = vmatprep.subr.mxu0 0.0
      %717 = vmatpush1.msra.mxu0 0.0
      %718 = vmatprep.subr.mxu0 0.0
      %719 = vmatpush1.msra.mxu0 0.0
      %720 = vmatprep.subr.mxu0 0.0
      %721 = vmatpush1.msra.mxu0 0.0
      %722 = vmatprep.subr.mxu0 0.0
      %723 = vmatpush1.msra.mxu0 0.0
      %724 = vmatprep.subr.mxu0 0.0
      %725 = vmatpush1.msra.mxu0 0.0
      %726 = vmatprep.subr.mxu0 0.0
      %727 = vmatpush1.msra.mxu0 0.0
      %728 = vmatprep.subr.mxu0 0.0
      %729 = vmatpush1.msra.mxu0 0.0
      %730 = vmatprep.subr.mxu0 0.0
      %731 = vmatpush1.msra.mxu0 0.0
      %732 = vmatprep.subr.mxu0 0.0
      %733 = vmatpush1.msra.mxu0 0.0
      %734 = vmatprep.subr.mxu0 0.0
      %735 = vmatpush1.msra.mxu0 0.0
      %736 = vmatprep.subr.mxu0 0.0
      %737 = vmatpush1.msra.mxu0 0.0
      %738 = vmatprep.subr.mxu0 0.0
      %739 = vmatpush1.msra.mxu0 %v227
      %740 = vmatprep.subr.mxu0 0.0
      %741 = vmatpush1.msra.mxu0 %v226
      %742 = vmatprep.subr.mxu0 0.0
      %743 = vmatpush1.msra.mxu0 %v225
      %744 = vmatprep.subr.mxu0 0.0
      %745 = vmatpush2.msra.mxu0 0.0
      %746 = vmatprep.subr.mxu0 0.0
      %747 = vmatpush2.msra.mxu0 0.0
      %748 = vmatprep.subr.mxu0 0.0
      %749 = vmatpush2.msra.mxu0 0.0
      %750 = vmatprep.subr.mxu0 0.0
      %751 = vmatpush2.msra.mxu0 0.0
      %752 = vmatprep.subr.mxu0 0.0
      %753 = vmatpush2.msra.mxu0 0.0
      %754 = vmatprep.subr.mxu0 0.0
      %755 = vmatpush2.msra.mxu0 0.0
      %756 = vmatprep.subr.mxu0 0.0
      %757 = vmatpush2.msra.mxu0 0.0
      %758 = vmatprep.subr.mxu0 0.0
      %759 = vmatpush2.msra.mxu0 0.0
      %760 = vmatprep.subr.mxu0 0.0
      %761 = vmatpush2.msra.mxu0 0.0
      %762 = vmatprep.subr.mxu0 0.0
      %763 = vmatpush2.msra.mxu0 0.0
      %764 = vmatprep.subr.mxu0 0.0
      %765 = vmatpush2.msra.mxu0 0.0
      %766 = vmatprep.subr.mxu0 0.0
      %767 = vmatpush2.msra.mxu0 0.0
      %768 = vmatprep.subr.mxu0 0.0
      %769 = vmatpush2.msra.mxu0 0.0
      %770 = vmatprep.subr.mxu0 0.0
      %771 = vmatpush2.msra.mxu0 0.0
      %772 = vmatprep.subr.mxu0 0.0
      %773 = vmatpush2.msra.mxu0 0.0
      %774 = vmatprep.subr.mxu0 0.0
      %775 = vmatpush2.msra.mxu0 0.0
      %776 = vmatprep.mubr.f32.mxu0 0.0
      %777 = vmatmul.mubr.f32.gmra.mxu0 %v278
      %v778 = vpop.f32.mrf.mxu0
      %v779 = vadd.f32 %v687, %v778
      %v780 = vpop.f32.mrf.mxu0
      %781 = vmatprep.mubr.f32.mxu0 0.0
      %782 = vmatmul.mubr.f32.gmra.mxu0 %v281
      %v783 = vpop.f32.mrf.mxu0
      %v784 = vadd.f32 %v687, %v783
      %v785 = vpop.f32.mrf.mxu0
      %786 = vmatprep.mubr.f32.mxu0 0.0
      %787 = vmatmul.mubr.f32.gmra.mxu0 %v284
      %v788 = vpop.f32.mrf.mxu0
      %v789 = vadd.f32 %v687, %v788
      %v790 = vpop.f32.mrf.mxu0
      %791 = vmatprep.mubr.f32.mxu0 0.0
      %792 = vmatmul.mubr.f32.gmra.mxu0 %v287
      %v793 = vpop.f32.mrf.mxu0
      %v794 = vadd.f32 %v687, %v793
      %v795 = vpop.f32.mrf.mxu0
      %796 = vmatprep.mubr.f32.mxu0 0.0
      %797 = vmatmul.mubr.f32.gmra.mxu0 %v290
      %v798 = vpop.f32.mrf.mxu0
      %v799 = vadd.f32 %v687, %v798
      %v800 = vpop.f32.mrf.mxu0
      %801 = vmatprep.mubr.f32.mxu0 0.0
      %802 = vmatmul.mubr.f32.gmra.mxu0 %v293
      %v803 = vpop.f32.mrf.mxu0
      %v804 = vadd.f32 %v687, %v803
      %v805 = vpop.f32.mrf.mxu0
      %806 = vmatprep.mubr.f32.mxu0 0.0
      %807 = vmatmul.mubr.f32.gmra.mxu0 %v296
      %v808 = vpop.f32.mrf.mxu0
      %v809 = vadd.f32 %v687, %v808
      %v810 = vpop.f32.mrf.mxu0
      %811 = vmatprep.mubr.f32.mxu0 0.0
      %812 = vmatmul.mubr.f32.gmra.mxu0 %v299
      %v813 = vpop.f32.mrf.mxu0
      %v814 = vadd.f32 %v687, %v813
      %v815 = vpop.f32.mrf.mxu0
      %816 = vmatprep.mubr.f32.mxu0 0.0
      %817 = vmatmul.mubr.f32.gmra.mxu0 %v689
      %v818 = vpop.f32.mrf.mxu0
      %v819 = vadd.f32 %v687, %v818
      %v820 = vpop.f32.mrf.mxu0
      %821 = vmatprep.mubr.f32.mxu0 0.0
      %822 = vmatmul.mubr.f32.gmra.mxu0 %v692
      %v823 = vpop.f32.mrf.mxu0
      %v824 = vadd.f32 %v687, %v823
      %v825 = vpop.f32.mrf.mxu0
      %826 = vmatprep.mubr.f32.mxu0 0.0
      %827 = vmatmul.mubr.f32.gmra.mxu0 %v695
      %v828 = vpop.f32.mrf.mxu0
      %v829 = vadd.f32 %v687, %v828
      %v830 = vpop.f32.mrf.mxu0
      %831 = vmatprep.mubr.f32.mxu0 0.0
      %832 = vmatmul.mubr.f32.gmra.mxu0 %v698
      %v833 = vpop.f32.mrf.mxu0
      %v834 = vadd.f32 %v687, %v833
      %v835 = vpop.f32.mrf.mxu0
      %836 = vmatprep.mubr.f32.mxu0 0.0
      %837 = vmatmul.mubr.f32.gmra.mxu0 %v701
      %v838 = vpop.f32.mrf.mxu0
      %v839 = vadd.f32 %v687, %v838
      %v840 = vpop.f32.mrf.mxu0
      %841 = vmatprep.mubr.f32.mxu0 0.0
      %842 = vmatmul.mubr.f32.gmra.mxu0 %v704
      %v843 = vpop.f32.mrf.mxu0
      %v844 = vadd.f32 %v687, %v843
      %v845 = vpop.f32.mrf.mxu0
      %846 = vmatprep.mubr.f32.mxu0 0.0
      %847 = vmatmul.mubr.f32.gmra.mxu0 %v707
      %v848 = vpop.f32.mrf.mxu0
      %v849 = vadd.f32 %v687, %v848
      %v850 = vpop.f32.mrf.mxu0
      %851 = vmatprep.mubr.f32.mxu0 0.0
      %852 = vmatmul.mubr.f32.gmra.mxu0 %v710
      %v853 = vpop.f32.mrf.mxu0
      %v854 = vadd.f32 %v687, %v853
      %v855 = vpop.f32.mrf.mxu0
      %856 = vdwg.mxu0
      %v857 = vmul.f32 %v779, 0.5
      %v858 = vmul.f32 %v784, 0.5
      %v859 = vmul.f32 %v789, 0.5
      %v860 = vmul.f32 %v794, 0.5
      %v861 = vmul.f32 %v799, 0.5
      %v862 = vmul.f32 %v804, 0.5
      %v863 = vmul.f32 %v809, 0.5
      %v864 = vmul.f32 %v814, 0.5
      %v865 = vmul.f32 %v819, 0.5
      %v866 = vmul.f32 %v824, 0.5
      %v867 = vmul.f32 %v829, 0.5
      %v868 = vmul.f32 %v834, 0.5
      %v869 = vmul.f32 %v839, 0.5
      %v870 = vmul.f32 %v844, 0.5
      %v871 = vmul.f32 %v849, 0.5
      %v872 = vmul.f32 %v854, 0.5
      %v873 = vmul.f32 %v779, 0.044715
      %v874 = vmul.f32 %v784, 0.044715
      %v875 = vmul.f32 %v789, 0.044715
      %v876 = vmul.f32 %v794, 0.044715
      %v877 = vmul.f32 %v799, 0.044715
      %v878 = vmul.f32 %v804, 0.044715
      %v879 = vmul.f32 %v809, 0.044715
      %v880 = vmul.f32 %v814, 0.044715
      %v881 = vmul.f32 %v819, 0.044715
      %v882 = vmul.f32 %v824, 0.044715
      %v883 = vmul.f32 %v829, 0.044715
      %v884 = vmul.f32 %v834, 0.044715
      %v885 = vmul.f32 %v839, 0.044715
      %v886 = vmul.f32 %v844, 0.044715
      %v887 = vmul.f32 %v849, 0.044715
      %v888 = vmul.f32 %v854, 0.044715
      %v889 = vmul.f32 %v873, %v779
      %v890 = vmul.f32 %v874, %v784
      %v891 = vmul.f32 %v875, %v789
      %v892 = vmul.f32 %v876, %v794
      %v893 = vmul.f32 %v877, %v799
      %v894 = vmul.f32 %v878, %v804
      %v895 = vmul.f32 %v879, %v809
      %v896 = vmul.f32 %v880, %v814
      %v897 = vmul.f32 %v881, %v819
      %v898 = vmul.f32 %v882, %v824
      %v899 = vmul.f32 %v883, %v829
      %v900 = vmul.f32 %v884, %v834
      %v901 = vmul.f32 %v885, %v839
      %v902 = vmul.f32 %v886, %v844
      %v903 = vmul.f32 %v887, %v849
      %v904 = vmul.f32 %v888, %v854
      %v905 = vmul.f32 %v889, %v779
      %v906 = vmul.f32 %v890, %v784
      %v907 = vmul.f32 %v891, %v789
      %v908 = vmul.f32 %v892, %v794
      %v909 = vmul.f32 %v893, %v799
      %v910 = vmul.f32 %v894, %v804
      %v911 = vmul.f32 %v895, %v809
      %v912 = vmul.f32 %v896, %v814
      %v913 = vmul.f32 %v897, %v819
      %v914 = vmul.f32 %v898, %v824
      %v915 = vmul.f32 %v899, %v829
      %v916 = vmul.f32 %v900, %v834
      %v917 = vmul.f32 %v901, %v839
      %v918 = vmul.f32 %v902, %v844
      %v919 = vmul.f32 %v903, %v849
      %v920 = vmul.f32 %v904, %v854
      %v921 = vadd.f32 %v779, %v905
      %v922 = vadd.f32 %v784, %v906
      %v923 = vadd.f32 %v789, %v907
      %v924 = vadd.f32 %v794, %v908
      %v925 = vadd.f32 %v799, %v909
      %v926 = vadd.f32 %v804, %v910
      %v927 = vadd.f32 %v809, %v911
      %v928 = vadd.f32 %v814, %v912
      %v929 = vadd.f32 %v819, %v913
      %v930 = vadd.f32 %v824, %v914
      %v931 = vadd.f32 %v829, %v915
      %v932 = vadd.f32 %v834, %v916
      %v933 = vadd.f32 %v839, %v917
      %v934 = vadd.f32 %v844, %v918
      %v935 = vadd.f32 %v849, %v919
      %v936 = vadd.f32 %v854, %v920
      %v937 = vmul.f32 %v921, 0.7978846
      %v938 = vmul.f32 %v922, 0.7978846
      %v939 = vmul.f32 %v923, 0.7978846
      %v940 = vmul.f32 %v924, 0.7978846
      %v941 = vmul.f32 %v925, 0.7978846
      %v942 = vmul.f32 %v926, 0.7978846
      %v943 = vmul.f32 %v927, 0.7978846
      %v944 = vmul.f32 %v928, 0.7978846
      %v945 = vmul.f32 %v929, 0.7978846
      %v946 = vmul.f32 %v930, 0.7978846
      %v947 = vmul.f32 %v931, 0.7978846
      %v948 = vmul.f32 %v932, 0.7978846
      %v949 = vmul.f32 %v933, 0.7978846
      %v950 = vmul.f32 %v934, 0.7978846
      %v951 = vmul.f32 %v935, 0.7978846
      %v952 = vmul.f32 %v936, 0.7978846
      %v953 = vtanh.pop %v937
      %v954 = vtanh.pop %v938
      %v955 = vtanh.pop %v939
      %v956 = vtanh.pop %v940
      %v957 = vtanh.pop %v941
      %v958 = vtanh.pop %v942
      %v959 = vtanh.pop %v943
      %v960 = vtanh.pop %v944
      %v961 = vtanh.pop %v945
      %v962 = vtanh.pop %v946
      %v963 = vtanh.pop %v947
      %v964 = vtanh.pop %v948
      %v965 = vtanh.pop %v949
      %v966 = vtanh.pop %v950
      %v967 = vtanh.pop %v951
      %v968 = vtanh.pop %v952
      %v969 = vadd.f32 %v953, 1.0
      %v970 = vadd.f32 %v954, 1.0
      %v971 = vadd.f32 %v955, 1.0
      %v972 = vadd.f32 %v956, 1.0
      %v973 = vadd.f32 %v957, 1.0
      %v974 = vadd.f32 %v958, 1.0
      %v975 = vadd.f32 %v959, 1.0
      %v976 = vadd.f32 %v960, 1.0
      %v977 = vadd.f32 %v961, 1.0
      %v978 = vadd.f32 %v962, 1.0
      %v979 = vadd.f32 %v963, 1.0
      %v980 = vadd.f32 %v964, 1.0
      %v981 = vadd.f32 %v965, 1.0
      %v982 = vadd.f32 %v966, 1.0
      %v983 = vadd.f32 %v967, 1.0
      %v984 = vadd.f32 %v968, 1.0
      %v985 = vmul.f32 %v857, %v969
      %v986 = vmul.f32 %v858, %v970
      %v987 = vmul.f32 %v859, %v971
      %v988 = vmul.f32 %v860, %v972
      %v989 = vmul.f32 %v861, %v973
      %v990 = vmul.f32 %v862, %v974
      %v991 = vmul.f32 %v863, %v975
      %v992 = vmul.f32 %v864, %v976
      %v993 = vmul.f32 %v865, %v977
      %v994 = vmul.f32 %v866, %v978
      %v995 = vmul.f32 %v867, %v979
      %v996 = vmul.f32 %v868, %v980
      %v997 = vmul.f32 %v869, %v981
      %v998 = vmul.f32 %v870, %v982
      %v999 = vmul.f32 %v871, %v983
      %v1000 = vmul.f32 %v872, %v984
      %v1001 = vlaneseq
      %v1002 = vshrl.u32 %v1001, 7
      %v1003 = vsub.s32 0, %v1002
      %v1004 = vrot.slane %v263, %v1003
      %v1006 = vsel %vm482, %v985, 0
      %v1009 = vsel %vm482, %v986, 0
      %v1012 = vsel %vm482, %v987, 0
      %v1015 = vsel %vm482, %v988, 0
      %v1018 = vsel %vm482, %v989, 0
      %v1021 = vsel %vm482, %v990, 0
      %v1024 = vsel %vm482, %v991, 0
      %v1027 = vsel %vm482, %v992, 0
      %v1030 = vsel %vm482, %v993, 0
      %v1033 = vsel %vm482, %v994, 0
      %v1036 = vsel %vm482, %v995, 0
      %v1039 = vsel %vm482, %v996, 0
      %v1042 = vsel %vm482, %v997, 0
      %v1045 = vsel %vm482, %v998, 0
      %v1048 = vsel %vm482, %v999, 0
      %v1051 = vsel %vm482, %v1000, 0
      %1053 = vmatprep.subr.mxu0 0.0
      %1054 = vmatpush1.msra.mxu0 0.0
      %1055 = vmatprep.subr.mxu0 0.0
      %1056 = vmatpush1.msra.mxu0 0.0
      %1057 = vmatprep.subr.mxu0 0.0
      %1058 = vmatpush1.msra.mxu0 0.0
      %1059 = vmatprep.subr.mxu0 0.0
      %1060 = vmatpush1.msra.mxu0 0.0
      %1061 = vmatprep.subr.mxu0 0.0
      %1062 = vmatpush1.msra.mxu0 0.0
      %1063 = vmatprep.subr.mxu0 0.0
      %1064 = vmatpush1.msra.mxu0 0.0
      %1065 = vmatprep.subr.mxu0 0.0
      %1066 = vmatpush1.msra.mxu0 0.0
      %1067 = vmatprep.subr.mxu0 0.0
      %1068 = vmatpush1.msra.mxu0 0.0
      %1069 = vmatprep.subr.mxu0 0.0
      %1070 = vmatpush1.msra.mxu0 %v235
      %1071 = vmatprep.subr.mxu0 0.0
      %1072 = vmatpush1.msra.mxu0 %v234
      %1073 = vmatprep.subr.mxu0 0.0
      %1074 = vmatpush1.msra.mxu0 %v233
      %1075 = vmatprep.subr.mxu0 0.0
      %1076 = vmatpush1.msra.mxu0 %v232
      %1077 = vmatprep.subr.mxu0 0.0
      %1078 = vmatpush1.msra.mxu0 %v231
      %1079 = vmatprep.subr.mxu0 0.0
      %1080 = vmatpush1.msra.mxu0 %v230
      %1081 = vmatprep.subr.mxu0 0.0
      %1082 = vmatpush1.msra.mxu0 %v229
      %1083 = vmatprep.subr.mxu0 0.0
      %1084 = vmatpush1.msra.mxu0 %v228
      %1085 = vmatprep.subr.mxu0 0.0
      %1086 = vmatpush2.msra.mxu0 0.0
      %1087 = vmatprep.subr.mxu0 0.0
      %1088 = vmatpush2.msra.mxu0 0.0
      %1089 = vmatprep.subr.mxu0 0.0
      %1090 = vmatpush2.msra.mxu0 0.0
      %1091 = vmatprep.subr.mxu0 0.0
      %1092 = vmatpush2.msra.mxu0 0.0
      %1093 = vmatprep.subr.mxu0 0.0
      %1094 = vmatpush2.msra.mxu0 0.0
      %1095 = vmatprep.subr.mxu0 0.0
      %1096 = vmatpush2.msra.mxu0 0.0
      %1097 = vmatprep.subr.mxu0 0.0
      %1098 = vmatpush2.msra.mxu0 0.0
      %1099 = vmatprep.subr.mxu0 0.0
      %1100 = vmatpush2.msra.mxu0 0.0
      %1101 = vmatprep.subr.mxu0 0.0
      %1102 = vmatpush2.msra.mxu0 0.0
      %1103 = vmatprep.subr.mxu0 0.0
      %1104 = vmatpush2.msra.mxu0 0.0
      %1105 = vmatprep.subr.mxu0 0.0
      %1106 = vmatpush2.msra.mxu0 0.0
      %1107 = vmatprep.subr.mxu0 0.0
      %1108 = vmatpush2.msra.mxu0 0.0
      %1109 = vmatprep.subr.mxu0 0.0
      %1110 = vmatpush2.msra.mxu0 0.0
      %1111 = vmatprep.subr.mxu0 0.0
      %1112 = vmatpush2.msra.mxu0 0.0
      %1113 = vmatprep.subr.mxu0 0.0
      %1114 = vmatpush2.msra.mxu0 0.0
      %1115 = vmatprep.subr.mxu0 0.0
      %1116 = vmatpush2.msra.mxu0 0.0
      %1117 = vmatprep.mubr.f32.mxu0 0.0
      %1118 = vmatmul.mubr.f32.gmra.mxu0 %v1006
      %v1119 = vpop.f32.mrf.mxu0
      %v1120 = vadd.f32 %v1004, %v1119
      %v1121 = vpop.f32.mrf.mxu0
      %1122 = vmatprep.mubr.f32.mxu0 0.0
      %1123 = vmatmul.mubr.f32.gmra.mxu0 %v1009
      %v1124 = vpop.f32.mrf.mxu0
      %v1125 = vadd.f32 %v1004, %v1124
      %v1126 = vpop.f32.mrf.mxu0
      %1127 = vmatprep.mubr.f32.mxu0 0.0
      %1128 = vmatmul.mubr.f32.gmra.mxu0 %v1012
      %v1129 = vpop.f32.mrf.mxu0
      %v1130 = vadd.f32 %v1004, %v1129
      %v1131 = vpop.f32.mrf.mxu0
      %1132 = vmatprep.mubr.f32.mxu0 0.0
      %1133 = vmatmul.mubr.f32.gmra.mxu0 %v1015
      %v1134 = vpop.f32.mrf.mxu0
      %v1135 = vadd.f32 %v1004, %v1134
      %v1136 = vpop.f32.mrf.mxu0
      %1137 = vmatprep.mubr.f32.mxu0 0.0
      %1138 = vmatmul.mubr.f32.gmra.mxu0 %v1018
      %v1139 = vpop.f32.mrf.mxu0
      %v1140 = vadd.f32 %v1004, %v1139
      %v1141 = vpop.f32.mrf.mxu0
      %1142 = vmatprep.mubr.f32.mxu0 0.0
      %1143 = vmatmul.mubr.f32.gmra.mxu0 %v1021
      %v1144 = vpop.f32.mrf.mxu0
      %v1145 = vadd.f32 %v1004, %v1144
      %v1146 = vpop.f32.mrf.mxu0
      %1147 = vmatprep.mubr.f32.mxu0 0.0
      %1148 = vmatmul.mubr.f32.gmra.mxu0 %v1024
      %v1149 = vpop.f32.mrf.mxu0
      %v1150 = vadd.f32 %v1004, %v1149
      %v1151 = vpop.f32.mrf.mxu0
      %1152 = vmatprep.mubr.f32.mxu0 0.0
      %1153 = vmatmul.mubr.f32.gmra.mxu0 %v1027
      %v1154 = vpop.f32.mrf.mxu0
      %v1155 = vadd.f32 %v1004, %v1154
      %v1156 = vpop.f32.mrf.mxu0
      %1157 = vmatprep.mubr.f32.mxu0 0.0
      %1158 = vmatmul.mubr.f32.gmra.mxu0 %v1030
      %v1159 = vpop.f32.mrf.mxu0
      %v1160 = vadd.f32 %v1004, %v1159
      %v1161 = vpop.f32.mrf.mxu0
      %1162 = vmatprep.mubr.f32.mxu0 0.0
      %1163 = vmatmul.mubr.f32.gmra.mxu0 %v1033
      %v1164 = vpop.f32.mrf.mxu0
      %v1165 = vadd.f32 %v1004, %v1164
      %v1166 = vpop.f32.mrf.mxu0
      %1167 = vmatprep.mubr.f32.mxu0 0.0
      %1168 = vmatmul.mubr.f32.gmra.mxu0 %v1036
      %v1169 = vpop.f32.mrf.mxu0
      %v1170 = vadd.f32 %v1004, %v1169
      %v1171 = vpop.f32.mrf.mxu0
      %1172 = vmatprep.mubr.f32.mxu0 0.0
      %1173 = vmatmul.mubr.f32.gmra.mxu0 %v1039
      %v1174 = vpop.f32.mrf.mxu0
      %v1175 = vadd.f32 %v1004, %v1174
      %v1176 = vpop.f32.mrf.mxu0
      %1177 = vmatprep.mubr.f32.mxu0 0.0
      %1178 = vmatmul.mubr.f32.gmra.mxu0 %v1042
      %v1179 = vpop.f32.mrf.mxu0
      %v1180 = vadd.f32 %v1004, %v1179
      %v1181 = vpop.f32.mrf.mxu0
      %1182 = vmatprep.mubr.f32.mxu0 0.0
      %1183 = vmatmul.mubr.f32.gmra.mxu0 %v1045
      %v1184 = vpop.f32.mrf.mxu0
      %v1185 = vadd.f32 %v1004, %v1184
      %v1186 = vpop.f32.mrf.mxu0
      %1187 = vmatprep.mubr.f32.mxu0 0.0
      %1188 = vmatmul.mubr.f32.gmra.mxu0 %v1048
      %v1189 = vpop.f32.mrf.mxu0
      %v1190 = vadd.f32 %v1004, %v1189
      %v1191 = vpop.f32.mrf.mxu0
      %1192 = vmatprep.mubr.f32.mxu0 0.0
      %1193 = vmatmul.mubr.f32.gmra.mxu0 %v1051
      %v1194 = vpop.f32.mrf.mxu0
      %v1195 = vadd.f32 %v1004, %v1194
      %v1196 = vpop.f32.mrf.mxu0
      %1197 = vdwg.mxu0
      %v1198 = vmul.f32 %v1120, 0.5
      %v1199 = vmul.f32 %v1125, 0.5
      %v1200 = vmul.f32 %v1130, 0.5
      %v1201 = vmul.f32 %v1135, 0.5
      %v1202 = vmul.f32 %v1140, 0.5
      %v1203 = vmul.f32 %v1145, 0.5
      %v1204 = vmul.f32 %v1150, 0.5
      %v1205 = vmul.f32 %v1155, 0.5
      %v1206 = vmul.f32 %v1160, 0.5
      %v1207 = vmul.f32 %v1165, 0.5
      %v1208 = vmul.f32 %v1170, 0.5
      %v1209 = vmul.f32 %v1175, 0.5
      %v1210 = vmul.f32 %v1180, 0.5
      %v1211 = vmul.f32 %v1185, 0.5
      %v1212 = vmul.f32 %v1190, 0.5
      %v1213 = vmul.f32 %v1195, 0.5
      %v1214 = vmul.f32 %v1120, 0.044715
      %v1215 = vmul.f32 %v1125, 0.044715
      %v1216 = vmul.f32 %v1130, 0.044715
      %v1217 = vmul.f32 %v1135, 0.044715
      %v1218 = vmul.f32 %v1140, 0.044715
      %v1219 = vmul.f32 %v1145, 0.044715
      %v1220 = vmul.f32 %v1150, 0.044715
      %v1221 = vmul.f32 %v1155, 0.044715
      %v1222 = vmul.f32 %v1160, 0.044715
      %v1223 = vmul.f32 %v1165, 0.044715
      %v1224 = vmul.f32 %v1170, 0.044715
      %v1225 = vmul.f32 %v1175, 0.044715
      %v1226 = vmul.f32 %v1180, 0.044715
      %v1227 = vmul.f32 %v1185, 0.044715
      %v1228 = vmul.f32 %v1190, 0.044715
      %v1229 = vmul.f32 %v1195, 0.044715
      %v1230 = vmul.f32 %v1214, %v1120
      %v1231 = vmul.f32 %v1215, %v1125
      %v1232 = vmul.f32 %v1216, %v1130
      %v1233 = vmul.f32 %v1217, %v1135
      %v1234 = vmul.f32 %v1218, %v1140
      %v1235 = vmul.f32 %v1219, %v1145
      %v1236 = vmul.f32 %v1220, %v1150
      %v1237 = vmul.f32 %v1221, %v1155
      %v1238 = vmul.f32 %v1222, %v1160
      %v1239 = vmul.f32 %v1223, %v1165
      %v1240 = vmul.f32 %v1224, %v1170
      %v1241 = vmul.f32 %v1225, %v1175
      %v1242 = vmul.f32 %v1226, %v1180
      %v1243 = vmul.f32 %v1227, %v1185
      %v1244 = vmul.f32 %v1228, %v1190
      %v1245 = vmul.f32 %v1229, %v1195
      %v1246 = vmul.f32 %v1230, %v1120
      %v1247 = vmul.f32 %v1231, %v1125
      %v1248 = vmul.f32 %v1232, %v1130
      %v1249 = vmul.f32 %v1233, %v1135
      %v1250 = vmul.f32 %v1234, %v1140
      %v1251 = vmul.f32 %v1235, %v1145
      %v1252 = vmul.f32 %v1236, %v1150
      %v1253 = vmul.f32 %v1237, %v1155
      %v1254 = vmul.f32 %v1238, %v1160
      %v1255 = vmul.f32 %v1239, %v1165
      %v1256 = vmul.f32 %v1240, %v1170
      %v1257 = vmul.f32 %v1241, %v1175
      %v1258 = vmul.f32 %v1242, %v1180
      %v1259 = vmul.f32 %v1243, %v1185
      %v1260 = vmul.f32 %v1244, %v1190
      %v1261 = vmul.f32 %v1245, %v1195
      %v1262 = vadd.f32 %v1120, %v1246
      %v1263 = vadd.f32 %v1125, %v1247
      %v1264 = vadd.f32 %v1130, %v1248
      %v1265 = vadd.f32 %v1135, %v1249
      %v1266 = vadd.f32 %v1140, %v1250
      %v1267 = vadd.f32 %v1145, %v1251
      %v1268 = vadd.f32 %v1150, %v1252
      %v1269 = vadd.f32 %v1155, %v1253
      %v1270 = vadd.f32 %v1160, %v1254
      %v1271 = vadd.f32 %v1165, %v1255
      %v1272 = vadd.f32 %v1170, %v1256
      %v1273 = vadd.f32 %v1175, %v1257
      %v1274 = vadd.f32 %v1180, %v1258
      %v1275 = vadd.f32 %v1185, %v1259
      %v1276 = vadd.f32 %v1190, %v1260
      %v1277 = vadd.f32 %v1195, %v1261
      %v1278 = vmul.f32 %v1262, 0.7978846
      %v1279 = vmul.f32 %v1263, 0.7978846
      %v1280 = vmul.f32 %v1264, 0.7978846
      %v1281 = vmul.f32 %v1265, 0.7978846
      %v1282 = vmul.f32 %v1266, 0.7978846
      %v1283 = vmul.f32 %v1267, 0.7978846
      %v1284 = vmul.f32 %v1268, 0.7978846
      %v1285 = vmul.f32 %v1269, 0.7978846
      %v1286 = vmul.f32 %v1270, 0.7978846
      %v1287 = vmul.f32 %v1271, 0.7978846
      %v1288 = vmul.f32 %v1272, 0.7978846
      %v1289 = vmul.f32 %v1273, 0.7978846
      %v1290 = vmul.f32 %v1274, 0.7978846
      %v1291 = vmul.f32 %v1275, 0.7978846
      %v1292 = vmul.f32 %v1276, 0.7978846
      %v1293 = vmul.f32 %v1277, 0.7978846
      %v1294 = vtanh.pop %v1278
      %v1295 = vtanh.pop %v1279
      %v1296 = vtanh.pop %v1280
      %v1297 = vtanh.pop %v1281
      %v1298 = vtanh.pop %v1282
      %v1299 = vtanh.pop %v1283
      %v1300 = vtanh.pop %v1284
      %v1301 = vtanh.pop %v1285
      %v1302 = vtanh.pop %v1286
      %v1303 = vtanh.pop %v1287
      %v1304 = vtanh.pop %v1288
      %v1305 = vtanh.pop %v1289
      %v1306 = vtanh.pop %v1290
      %v1307 = vtanh.pop %v1291
      %v1308 = vtanh.pop %v1292
      %v1309 = vtanh.pop %v1293
      %v1310 = vadd.f32 %v1294, 1.0
      %v1311 = vadd.f32 %v1295, 1.0
      %v1312 = vadd.f32 %v1296, 1.0
      %v1313 = vadd.f32 %v1297, 1.0
      %v1314 = vadd.f32 %v1298, 1.0
      %v1315 = vadd.f32 %v1299, 1.0
      %v1316 = vadd.f32 %v1300, 1.0
      %v1317 = vadd.f32 %v1301, 1.0
      %v1318 = vadd.f32 %v1302, 1.0
      %v1319 = vadd.f32 %v1303, 1.0
      %v1320 = vadd.f32 %v1304, 1.0
      %v1321 = vadd.f32 %v1305, 1.0
      %v1322 = vadd.f32 %v1306, 1.0
      %v1323 = vadd.f32 %v1307, 1.0
      %v1324 = vadd.f32 %v1308, 1.0
      %v1325 = vadd.f32 %v1309, 1.0
      %v1326 = vmul.f32 %v1198, %v1310
      %v1327 = vmul.f32 %v1199, %v1311
      %v1328 = vmul.f32 %v1200, %v1312
      %v1329 = vmul.f32 %v1201, %v1313
      %v1330 = vmul.f32 %v1202, %v1314
      %v1331 = vmul.f32 %v1203, %v1315
      %v1332 = vmul.f32 %v1204, %v1316
      %v1333 = vmul.f32 %v1205, %v1317
      %v1334 = vmul.f32 %v1206, %v1318
      %v1335 = vmul.f32 %v1207, %v1319
      %v1336 = vmul.f32 %v1208, %v1320
      %v1337 = vmul.f32 %v1209, %v1321
      %v1338 = vmul.f32 %v1210, %v1322
      %v1339 = vmul.f32 %v1211, %v1323
      %v1340 = vmul.f32 %v1212, %v1324
      %v1341 = vmul.f32 %v1213, %v1325
      %v1342 = vsub.f32 %v993, %v985
      %v1343 = vsub.f32 %v994, %v986
      %v1344 = vsub.f32 %v995, %v987
      %v1345 = vsub.f32 %v996, %v988
      %v1346 = vsub.f32 %v997, %v989
      %v1347 = vsub.f32 %v998, %v990
      %v1348 = vsub.f32 %v999, %v991
      %v1349 = vsub.f32 %v1000, %v992
      %v1350 = vsub.f32 %v1334, %v1326
      %v1351 = vsub.f32 %v1335, %v1327
      %v1352 = vsub.f32 %v1336, %v1328
      %v1353 = vsub.f32 %v1337, %v1329
      %v1354 = vsub.f32 %v1338, %v1330
      %v1355 = vsub.f32 %v1339, %v1331
      %v1356 = vsub.f32 %v1340, %v1332
      %v1357 = vsub.f32 %v1341, %v1333
      %1358 = vrot.lane.b32.xlu0 %v470, 64
      %v1359 = vpop.permute.xlu0 %1358
      %1360 = vrot.lane.b32.xlu0 %v471, 64
      %v1361 = vpop.permute.xlu0 %1360
      %1362 = vrot.lane.b32.xlu0 %v472, 64
      %v1363 = vpop.permute.xlu0 %1362
      %1364 = vrot.lane.b32.xlu0 %v473, 64
      %v1365 = vpop.permute.xlu0 %1364
      %1366 = vrot.lane.b32.xlu0 %v474, 64
      %v1367 = vpop.permute.xlu0 %1366
      %1368 = vrot.lane.b32.xlu0 %v475, 64
      %v1369 = vpop.permute.xlu0 %1368
      %1370 = vrot.lane.b32.xlu0 %v476, 64
      %v1371 = vpop.permute.xlu0 %1370
      %1372 = vrot.lane.b32.xlu0 %v477, 64
      %v1373 = vpop.permute.xlu0 %1372
      %v1382 = vadd.f32 %v470, %v1359
      %v1383 = vadd.f32 %v471, %v1361
      %v1384 = vadd.f32 %v472, %v1363
      %v1385 = vadd.f32 %v473, %v1365
      %v1386 = vadd.f32 %v474, %v1367
      %v1387 = vadd.f32 %v475, %v1369
      %v1388 = vadd.f32 %v476, %v1371
      %v1389 = vadd.f32 %v477, %v1373
      %1398 = vrot.lane.b32.xlu0 %v1382, 64
      %v1399 = vpop.permute.xlu0 %1398
      %1400 = vrot.lane.b32.xlu0 %v1383, 64
      %v1401 = vpop.permute.xlu0 %1400
      %1402 = vrot.lane.b32.xlu0 %v1384, 64
      %v1403 = vpop.permute.xlu0 %1402
      %1404 = vrot.lane.b32.xlu0 %v1385, 64
      %v1405 = vpop.permute.xlu0 %1404
      %1406 = vrot.lane.b32.xlu0 %v1386, 64
      %v1407 = vpop.permute.xlu0 %1406
      %1408 = vrot.lane.b32.xlu0 %v1387, 64
      %v1409 = vpop.permute.xlu0 %1408
      %1410 = vrot.lane.b32.xlu0 %v1388, 64
      %v1411 = vpop.permute.xlu0 %1410
      %1412 = vrot.lane.b32.xlu0 %v1389, 64
      %v1413 = vpop.permute.xlu0 %1412
      %v1422 = vsel %vm482, %v1399, 0.0
      %1423 = vadd.xlane.f32.xlu0 %v1422
      %v1424 = vpop.xlane.xlu0 %1423
      %v1425 = vsel %vm482, %v1401, 0.0
      %1426 = vadd.xlane.f32.xlu0 %v1425
      %v1427 = vpop.xlane.xlu0 %1426
      %v1428 = vsel %vm482, %v1403, 0.0
      %1429 = vadd.xlane.f32.xlu0 %v1428
      %v1430 = vpop.xlane.xlu0 %1429
      %v1431 = vsel %vm482, %v1405, 0.0
      %1432 = vadd.xlane.f32.xlu0 %v1431
      %v1433 = vpop.xlane.xlu0 %1432
      %v1434 = vsel %vm482, %v1407, 0.0
      %1435 = vadd.xlane.f32.xlu0 %v1434
      %v1436 = vpop.xlane.xlu0 %1435
      %v1437 = vsel %vm482, %v1409, 0.0
      %1438 = vadd.xlane.f32.xlu0 %v1437
      %v1439 = vpop.xlane.xlu0 %1438
      %v1440 = vsel %vm482, %v1411, 0.0
      %1441 = vadd.xlane.f32.xlu0 %v1440
      %v1442 = vpop.xlane.xlu0 %1441
      %v1443 = vsel %vm482, %v1413, 0.0
      %1444 = vadd.xlane.f32.xlu0 %v1443
      %v1445 = vpop.xlane.xlu0 %1444
      %v1446 = vrcp.pop 64.0
      %v1447 = vmul.f32 %v1424, %v1446
      %v1448 = vmul.f32 %v1427, %v1446
      %v1449 = vmul.f32 %v1430, %v1446
      %v1450 = vmul.f32 %v1433, %v1446
      %v1451 = vmul.f32 %v1436, %v1446
      %v1452 = vmul.f32 %v1439, %v1446
      %v1453 = vmul.f32 %v1442, %v1446
      %v1454 = vmul.f32 %v1445, %v1446
      %v1455 = vsub.f32 %v1382, %v1447
      %v1456 = vsub.f32 %v1383, %v1448
      %v1457 = vsub.f32 %v1384, %v1449
      %v1458 = vsub.f32 %v1385, %v1450
      %v1459 = vsub.f32 %v1386, %v1451
      %v1460 = vsub.f32 %v1387, %v1452
      %v1461 = vsub.f32 %v1388, %v1453
      %v1462 = vsub.f32 %v1389, %v1454
      %v1463 = vmul.f32 %v1455, %v1455
      %v1464 = vmul.f32 %v1456, %v1456
      %v1465 = vmul.f32 %v1457, %v1457
      %v1466 = vmul.f32 %v1458, %v1458
      %v1467 = vmul.f32 %v1459, %v1459
      %v1468 = vmul.f32 %v1460, %v1460
      %v1469 = vmul.f32 %v1461, %v1461
      %v1470 = vmul.f32 %v1462, %v1462
      %1479 = vrot.lane.b32.xlu0 %v1463, 64
      %v1480 = vpop.permute.xlu0 %1479
      %1481 = vrot.lane.b32.xlu0 %v1464, 64
      %v1482 = vpop.permute.xlu0 %1481
      %1483 = vrot.lane.b32.xlu0 %v1465, 64
      %v1484 = vpop.permute.xlu0 %1483
      %1485 = vrot.lane.b32.xlu0 %v1466, 64
      %v1486 = vpop.permute.xlu0 %1485
      %1487 = vrot.lane.b32.xlu0 %v1467, 64
      %v1488 = vpop.permute.xlu0 %1487
      %1489 = vrot.lane.b32.xlu0 %v1468, 64
      %v1490 = vpop.permute.xlu0 %1489
      %1491 = vrot.lane.b32.xlu0 %v1469, 64
      %v1492 = vpop.permute.xlu0 %1491
      %1493 = vrot.lane.b32.xlu0 %v1470, 64
      %v1494 = vpop.permute.xlu0 %1493
      %v1503 = vsel %vm482, %v1480, 0.0
      %1504 = vadd.xlane.f32.xlu0 %v1503
      %v1505 = vpop.xlane.xlu0 %1504
      %v1506 = vsel %vm482, %v1482, 0.0
      %1507 = vadd.xlane.f32.xlu0 %v1506
      %v1508 = vpop.xlane.xlu0 %1507
      %v1509 = vsel %vm482, %v1484, 0.0
      %1510 = vadd.xlane.f32.xlu0 %v1509
      %v1511 = vpop.xlane.xlu0 %1510
      %v1512 = vsel %vm482, %v1486, 0.0
      %1513 = vadd.xlane.f32.xlu0 %v1512
      %v1514 = vpop.xlane.xlu0 %1513
      %v1515 = vsel %vm482, %v1488, 0.0
      %1516 = vadd.xlane.f32.xlu0 %v1515
      %v1517 = vpop.xlane.xlu0 %1516
      %v1518 = vsel %vm482, %v1490, 0.0
      %1519 = vadd.xlane.f32.xlu0 %v1518
      %v1520 = vpop.xlane.xlu0 %1519
      %v1521 = vsel %vm482, %v1492, 0.0
      %1522 = vadd.xlane.f32.xlu0 %v1521
      %v1523 = vpop.xlane.xlu0 %1522
      %v1524 = vsel %vm482, %v1494, 0.0
      %1525 = vadd.xlane.f32.xlu0 %v1524
      %v1526 = vpop.xlane.xlu0 %1525
      %v1527 = vmul.f32 %v1505, %v1446
      %v1528 = vmul.f32 %v1508, %v1446
      %v1529 = vmul.f32 %v1511, %v1446
      %v1530 = vmul.f32 %v1514, %v1446
      %v1531 = vmul.f32 %v1517, %v1446
      %v1532 = vmul.f32 %v1520, %v1446
      %v1533 = vmul.f32 %v1523, %v1446
      %v1534 = vmul.f32 %v1526, %v1446
      %v1535 = vadd.f32 %v1527, 1e-05
      %v1536 = vadd.f32 %v1528, 1e-05
      %v1537 = vadd.f32 %v1529, 1e-05
      %v1538 = vadd.f32 %v1530, 1e-05
      %v1539 = vadd.f32 %v1531, 1e-05
      %v1540 = vadd.f32 %v1532, 1e-05
      %v1541 = vadd.f32 %v1533, 1e-05
      %v1542 = vadd.f32 %v1534, 1e-05
      %v1543 = vrsqrt.pop %v1535
      %v1544 = vrsqrt.pop %v1536
      %v1545 = vrsqrt.pop %v1537
      %v1546 = vrsqrt.pop %v1538
      %v1547 = vrsqrt.pop %v1539
      %v1548 = vrsqrt.pop %v1540
      %v1549 = vrsqrt.pop %v1541
      %v1550 = vrsqrt.pop %v1542
      %v1551 = vmul.f32 %v1455, %v1543
      %v1552 = vmul.f32 %v1456, %v1544
      %v1553 = vmul.f32 %v1457, %v1545
      %v1554 = vmul.f32 %v1458, %v1546
      %v1555 = vmul.f32 %v1459, %v1547
      %v1556 = vmul.f32 %v1460, %v1548
      %v1557 = vmul.f32 %v1461, %v1549
      %v1558 = vmul.f32 %v1462, %v1550
      %v1559 = vlaneseq
      %v1560 = vshrl.u32 %v1559, 7
      %v1561 = vsub.s32 0, %v1560
      %v1562 = vrot.slane %v268, %v1561
      %1564 = vrot.lane.b32.xlu0 %v1562, 64
      %v1565 = vpop.permute.xlu0 %1564
      %v1567 = vmul.f32 %v1551, %v1565
      %v1568 = vmul.f32 %v1552, %v1565
      %v1569 = vmul.f32 %v1553, %v1565
      %v1570 = vmul.f32 %v1554, %v1565
      %v1571 = vmul.f32 %v1555, %v1565
      %v1572 = vmul.f32 %v1556, %v1565
      %v1573 = vmul.f32 %v1557, %v1565
      %v1574 = vmul.f32 %v1558, %v1565
      %v1575 = vlaneseq
      %v1576 = vshrl.u32 %v1575, 7
      %v1577 = vsub.s32 0, %v1576
      %v1578 = vrot.slane %v269, %v1577
      %1580 = vrot.lane.b32.xlu0 %v1578, 64
      %v1581 = vpop.permute.xlu0 %1580
      %v1583 = vadd.f32 %v1567, %v1581
      %v1584 = vadd.f32 %v1568, %v1581
      %v1585 = vadd.f32 %v1569, %v1581
      %v1586 = vadd.f32 %v1570, %v1581
      %v1587 = vadd.f32 %v1571, %v1581
      %v1588 = vadd.f32 %v1572, %v1581
      %v1589 = vadd.f32 %v1573, %v1581
      %v1590 = vadd.f32 %v1574, %v1581
      %v1591 = vlaneseq
      %v1592 = vshrl.u32 %v1591, 7
      %v1593 = vsub.s32 0, %v1592
      %v1594 = vrot.slane %v264, %v1593
      %1603 = vrot.lane.b32.xlu0 %v1583, 64
      %v1604 = vpop.permute.xlu0 %1603
      %1605 = vrot.lane.b32.xlu0 %v1584, 64
      %v1606 = vpop.permute.xlu0 %1605
      %1607 = vrot.lane.b32.xlu0 %v1585, 64
      %v1608 = vpop.permute.xlu0 %1607
      %1609 = vrot.lane.b32.xlu0 %v1586, 64
      %v1610 = vpop.permute.xlu0 %1609
      %1611 = vrot.lane.b32.xlu0 %v1587, 64
      %v1612 = vpop.permute.xlu0 %1611
      %1613 = vrot.lane.b32.xlu0 %v1588, 64
      %v1614 = vpop.permute.xlu0 %1613
      %1615 = vrot.lane.b32.xlu0 %v1589, 64
      %v1616 = vpop.permute.xlu0 %1615
      %1617 = vrot.lane.b32.xlu0 %v1590, 64
      %v1618 = vpop.permute.xlu0 %1617
      %v1619 = vsel %vm482, %v1604, 0
      %v1621 = vsel %vm482, %v1606, 0
      %v1623 = vsel %vm482, %v1608, 0
      %v1625 = vsel %vm482, %v1610, 0
      %v1627 = vsel %vm482, %v1612, 0
      %v1629 = vsel %vm482, %v1614, 0
      %v1631 = vsel %vm482, %v1616, 0
      %v1633 = vsel %vm482, %v1618, 0
      %1635 = vmatprep.subr.mxu0 0.0
      %1636 = vmatpush1.msra.mxu0 0.0
      %1637 = vmatprep.subr.mxu0 0.0
      %1638 = vmatpush1.msra.mxu0 0.0
      %1639 = vmatprep.subr.mxu0 0.0
      %1640 = vmatpush1.msra.mxu0 0.0
      %1641 = vmatprep.subr.mxu0 0.0
      %1642 = vmatpush1.msra.mxu0 0.0
      %1643 = vmatprep.subr.mxu0 0.0
      %1644 = vmatpush1.msra.mxu0 0.0
      %1645 = vmatprep.subr.mxu0 0.0
      %1646 = vmatpush1.msra.mxu0 0.0
      %1647 = vmatprep.subr.mxu0 0.0
      %1648 = vmatpush1.msra.mxu0 0.0
      %1649 = vmatprep.subr.mxu0 0.0
      %1650 = vmatpush1.msra.mxu0 0.0
      %1651 = vmatprep.subr.mxu0 0.0
      %1652 = vmatpush1.msra.mxu0 %v243
      %1653 = vmatprep.subr.mxu0 0.0
      %1654 = vmatpush1.msra.mxu0 %v242
      %1655 = vmatprep.subr.mxu0 0.0
      %1656 = vmatpush1.msra.mxu0 %v241
      %1657 = vmatprep.subr.mxu0 0.0
      %1658 = vmatpush1.msra.mxu0 %v240
      %1659 = vmatprep.subr.mxu0 0.0
      %1660 = vmatpush1.msra.mxu0 %v239
      %1661 = vmatprep.subr.mxu0 0.0
      %1662 = vmatpush1.msra.mxu0 %v238
      %1663 = vmatprep.subr.mxu0 0.0
      %1664 = vmatpush1.msra.mxu0 %v237
      %1665 = vmatprep.subr.mxu0 0.0
      %1666 = vmatpush1.msra.mxu0 %v236
      %1667 = vmatprep.subr.mxu0 0.0
      %1668 = vmatpush2.msra.mxu0 0.0
      %1669 = vmatprep.subr.mxu0 0.0
      %1670 = vmatpush2.msra.mxu0 0.0
      %1671 = vmatprep.subr.mxu0 0.0
      %1672 = vmatpush2.msra.mxu0 0.0
      %1673 = vmatprep.subr.mxu0 0.0
      %1674 = vmatpush2.msra.mxu0 0.0
      %1675 = vmatprep.subr.mxu0 0.0
      %1676 = vmatpush2.msra.mxu0 0.0
      %1677 = vmatprep.subr.mxu0 0.0
      %1678 = vmatpush2.msra.mxu0 0.0
      %1679 = vmatprep.subr.mxu0 0.0
      %1680 = vmatpush2.msra.mxu0 0.0
      %1681 = vmatprep.subr.mxu0 0.0
      %1682 = vmatpush2.msra.mxu0 0.0
      %1683 = vmatprep.subr.mxu0 0.0
      %1684 = vmatpush2.msra.mxu0 0.0
      %1685 = vmatprep.subr.mxu0 0.0
      %1686 = vmatpush2.msra.mxu0 0.0
      %1687 = vmatprep.subr.mxu0 0.0
      %1688 = vmatpush2.msra.mxu0 0.0
      %1689 = vmatprep.subr.mxu0 0.0
      %1690 = vmatpush2.msra.mxu0 0.0
      %1691 = vmatprep.subr.mxu0 0.0
      %1692 = vmatpush2.msra.mxu0 0.0
      %1693 = vmatprep.subr.mxu0 0.0
      %1694 = vmatpush2.msra.mxu0 0.0
      %1695 = vmatprep.subr.mxu0 0.0
      %1696 = vmatpush2.msra.mxu0 0.0
      %1697 = vmatprep.subr.mxu0 0.0
      %1698 = vmatpush2.msra.mxu0 0.0
      %1699 = vmatprep.mubr.f32.mxu0 0.0
      %1700 = vmatmul.mubr.f32.gmra.mxu0 %v1619
      %v1701 = vpop.f32.mrf.mxu0
      %v1702 = vadd.f32 %v1594, %v1701
      %v1703 = vpop.f32.mrf.mxu0
      %1704 = vmatprep.mubr.f32.mxu0 0.0
      %1705 = vmatmul.mubr.f32.gmra.mxu0 %v1621
      %v1706 = vpop.f32.mrf.mxu0
      %v1707 = vadd.f32 %v1594, %v1706
      %v1708 = vpop.f32.mrf.mxu0
      %1709 = vmatprep.mubr.f32.mxu0 0.0
      %1710 = vmatmul.mubr.f32.gmra.mxu0 %v1623
      %v1711 = vpop.f32.mrf.mxu0
      %v1712 = vadd.f32 %v1594, %v1711
      %v1713 = vpop.f32.mrf.mxu0
      %1714 = vmatprep.mubr.f32.mxu0 0.0
      %1715 = vmatmul.mubr.f32.gmra.mxu0 %v1625
      %v1716 = vpop.f32.mrf.mxu0
      %v1717 = vadd.f32 %v1594, %v1716
      %v1718 = vpop.f32.mrf.mxu0
      %1719 = vmatprep.mubr.f32.mxu0 0.0
      %1720 = vmatmul.mubr.f32.gmra.mxu0 %v1627
      %v1721 = vpop.f32.mrf.mxu0
      %v1722 = vadd.f32 %v1594, %v1721
      %v1723 = vpop.f32.mrf.mxu0
      %1724 = vmatprep.mubr.f32.mxu0 0.0
      %1725 = vmatmul.mubr.f32.gmra.mxu0 %v1629
      %v1726 = vpop.f32.mrf.mxu0
      %v1727 = vadd.f32 %v1594, %v1726
      %v1728 = vpop.f32.mrf.mxu0
      %1729 = vmatprep.mubr.f32.mxu0 0.0
      %1730 = vmatmul.mubr.f32.gmra.mxu0 %v1631
      %v1731 = vpop.f32.mrf.mxu0
      %v1732 = vadd.f32 %v1594, %v1731
      %v1733 = vpop.f32.mrf.mxu0
      %1734 = vmatprep.mubr.f32.mxu0 0.0
      %1735 = vmatmul.mubr.f32.gmra.mxu0 %v1633
      %v1736 = vpop.f32.mrf.mxu0
      %v1737 = vadd.f32 %v1594, %v1736
      %v1738 = vpop.f32.mrf.mxu0
      %1739 = vdwg.mxu0
      %1742 = vrot.lane.b32.xlu0 %v676, 64
      %v1743 = vpop.permute.xlu0 %1742
      %1744 = vrot.lane.b32.xlu0 %v677, 64
      %v1745 = vpop.permute.xlu0 %1744
      %v1748 = vmul.f32 %v676, %v1743
      %v1749 = vmul.f32 %v677, %v1745
      %1752 = vrot.lane.b32.xlu0 %v1748, 64
      %v1753 = vpop.permute.xlu0 %1752
      %1754 = vrot.lane.b32.xlu0 %v1749, 64
      %v1755 = vpop.permute.xlu0 %1754
      %v1758 = vsel %vm482, %v1753, 0.0
      %1759 = vadd.xlane.f32.xlu0 %v1758
      %v1760 = vpop.xlane.xlu0 %1759
      %v1761 = vsel %vm482, %v1755, 0.0
      %1762 = vadd.xlane.f32.xlu0 %v1761
      %v1763 = vpop.xlane.xlu0 %1762
      %1766 = vrot.lane.b32.xlu0 %v678, 64
      %v1767 = vpop.permute.xlu0 %1766
      %1768 = vrot.lane.b32.xlu0 %v679, 64
      %v1769 = vpop.permute.xlu0 %1768
      %v1772 = vmul.f32 %v676, %v1767
      %v1773 = vmul.f32 %v677, %v1769
      %1776 = vrot.lane.b32.xlu0 %v1772, 64
      %v1777 = vpop.permute.xlu0 %1776
      %1778 = vrot.lane.b32.xlu0 %v1773, 64
      %v1779 = vpop.permute.xlu0 %1778
      %v1782 = vsel %vm482, %v1777, 0.0
      %1783 = vadd.xlane.f32.xlu0 %v1782
      %v1784 = vpop.xlane.xlu0 %1783
      %v1785 = vsel %vm482, %v1779, 0.0
      %1786 = vadd.xlane.f32.xlu0 %v1785
      %v1787 = vpop.xlane.xlu0 %1786
      %1790 = vrot.lane.b32.xlu0 %v680, 64
      %v1791 = vpop.permute.xlu0 %1790
      %1792 = vrot.lane.b32.xlu0 %v681, 64
      %v1793 = vpop.permute.xlu0 %1792
      %v1796 = vmul.f32 %v676, %v1791
      %v1797 = vmul.f32 %v677, %v1793
      %1800 = vrot.lane.b32.xlu0 %v1796, 64
      %v1801 = vpop.permute.xlu0 %1800
      %1802 = vrot.lane.b32.xlu0 %v1797, 64
      %v1803 = vpop.permute.xlu0 %1802
      %v1806 = vsel %vm482, %v1801, 0.0
      %1807 = vadd.xlane.f32.xlu0 %v1806
      %v1808 = vpop.xlane.xlu0 %1807
      %v1809 = vsel %vm482, %v1803, 0.0
      %1810 = vadd.xlane.f32.xlu0 %v1809
      %v1811 = vpop.xlane.xlu0 %1810
      %1814 = vrot.lane.b32.xlu0 %v682, 64
      %v1815 = vpop.permute.xlu0 %1814
      %1816 = vrot.lane.b32.xlu0 %v683, 64
      %v1817 = vpop.permute.xlu0 %1816
      %v1820 = vmul.f32 %v676, %v1815
      %v1821 = vmul.f32 %v677, %v1817
      %1824 = vrot.lane.b32.xlu0 %v1820, 64
      %v1825 = vpop.permute.xlu0 %1824
      %1826 = vrot.lane.b32.xlu0 %v1821, 64
      %v1827 = vpop.permute.xlu0 %1826
      %v1830 = vsel %vm482, %v1825, 0.0
      %1831 = vadd.xlane.f32.xlu0 %v1830
      %v1832 = vpop.xlane.xlu0 %1831
      %v1833 = vsel %vm482, %v1827, 0.0
      %1834 = vadd.xlane.f32.xlu0 %v1833
      %v1835 = vpop.xlane.xlu0 %1834
      %vm1836 = vcmask 7168
      %v1837 = vsel %vm1836, %v1760, %v1784
      %v1838 = vsel %vm1836, %v1763, %v1787
      %vm1839 = vcmask 15360
      %v1840 = vsel %vm1839, %v1837, %v1808
      %v1841 = vsel %vm1839, %v1838, %v1811
      %vm1842 = vcmask 23552
      %v1843 = vsel %vm1842, %v1840, %v1832
      %v1844 = vsel %vm1842, %v1841, %v1835
      %v1845 = vmul.f32 %v1843, 0.125
      %v1846 = vmul.f32 %v1844, 0.125
      %vm1847 = vcmask 31744
      %v1848 = vsel %vm1847, %v1845, -inf
      %1849 = vmax.xlane.f32.xlu0 %v1848
      %v1850 = vpop.xlane.xlu0 %1849
      %v1851 = vsel %vm1847, %v1846, -inf
      %1852 = vmax.xlane.f32.xlu0 %v1851
      %v1853 = vpop.xlane.xlu0 %1852
      %v1854 = vsub.f32 %v1845, %v1850
      %v1855 = vsub.f32 %v1846, %v1853
      %v1856 = vmul.f32 %v1854, 1.442695
      %v1857 = vpow.pop %v1856
      %v1858 = vmul.f32 %v1855, 1.442695
      %v1859 = vpow.pop %v1858
      %v1860 = vsel %vm1847, %v1857, 0.0
      %1861 = vadd.xlane.f32.xlu0 %v1860
      %v1862 = vpop.xlane.xlu0 %1861
      %v1863 = vsel %vm1847, %v1859, 0.0
      %1864 = vadd.xlane.f32.xlu0 %v1863
      %v1865 = vpop.xlane.xlu0 %1864
      %v1866 = vrcp.pop %v1862
      %v1867 = vmul.f32 %v1857, %v1866
      %v1868 = vrcp.pop %v1865
      %v1869 = vmul.f32 %v1859, %v1868
      %1871 = vset.pattern.permute.xlu0 0
      %1872 = vperm.xlu0 %1871, %v1867
      %v1873 = vpop.permute.xlu0 %1872
      %1876 = vset.pattern.permute.xlu0 0
      %1877 = vperm.xlu0 %1876, %v1869
      %v1878 = vpop.permute.xlu0 %1877
      %v1880 = vmul.f32 %v1873, %v1326
      %v1881 = vmul.f32 %v1878, %v1327
      %v1882 = vadd.f32 %v1880, 0.0
      %v1883 = vadd.f32 %v1881, 0.0
      %1884 = vset.pattern.permute.xlu0 1
      %1885 = vperm.xlu0 %1884, %v1867
      %v1886 = vpop.permute.xlu0 %1885
      %1888 = vset.pattern.permute.xlu0 1
      %1889 = vperm.xlu0 %1888, %v1869
      %v1890 = vpop.permute.xlu0 %1889
      %v1892 = vmul.f32 %v1886, %v1328
      %v1893 = vmul.f32 %v1890, %v1329
      %v1894 = vadd.f32 %v1882, %v1892
      %v1895 = vadd.f32 %v1883, %v1893
      %1896 = vset.pattern.permute.xlu0 2
      %1897 = vperm.xlu0 %1896, %v1867
      %v1898 = vpop.permute.xlu0 %1897
      %1900 = vset.pattern.permute.xlu0 2
      %1901 = vperm.xlu0 %1900, %v1869
      %v1902 = vpop.permute.xlu0 %1901
      %v1904 = vmul.f32 %v1898, %v1330
      %v1905 = vmul.f32 %v1902, %v1331
      %v1906 = vadd.f32 %v1894, %v1904
      %v1907 = vadd.f32 %v1895, %v1905
      %1908 = vset.pattern.permute.xlu0 3
      %1909 = vperm.xlu0 %1908, %v1867
      %v1910 = vpop.permute.xlu0 %1909
      %1912 = vset.pattern.permute.xlu0 3
      %1913 = vperm.xlu0 %1912, %v1869
      %v1914 = vpop.permute.xlu0 %1913
      %v1916 = vmul.f32 %v1910, %v1332
      %v1917 = vmul.f32 %v1914, %v1333
      %v1918 = vadd.f32 %v1906, %v1916
      %v1919 = vadd.f32 %v1907, %v1917
      %v1920 = vadd.f32 %v985, %v1918
      %v1921 = vadd.f32 %v986, %v1919
      %v1922 = vmul.f32 %v1873, %v1350
      %v1923 = vmul.f32 %v1878, %v1351
      %v1924 = vadd.f32 %v1920, %v1922
      %v1925 = vadd.f32 %v1921, %v1923
      %v1926 = vadd.f32 %v1924, %v1342
      %v1927 = vadd.f32 %v1925, %v1343
      %v1928 = vsel %vm1836, %v1867, 0.0
      %v1929 = vsel %vm1836, %v1869, 0.0
      %v1930 = vadd.f32 %v987, %v1918
      %v1931 = vadd.f32 %v988, %v1919
      %v1932 = vmul.f32 %v1886, %v1352
      %v1933 = vmul.f32 %v1890, %v1353
      %v1934 = vadd.f32 %v1930, %v1932
      %v1935 = vadd.f32 %v1931, %v1933
      %1936 = vrot.lane.b32.xlu0 %v1867, 127
      %v1937 = vpop.permute.xlu0 %1936
      %1938 = vrot.lane.b32.xlu0 %v1869, 127
      %v1939 = vpop.permute.xlu0 %1938
      %v1942 = vsel %vm1836, %v1937, 0.0
      %v1943 = vsel %vm1836, %v1939, 0.0
      %v1944 = vadd.f32 %v989, %v1918
      %v1945 = vadd.f32 %v990, %v1919
      %v1946 = vmul.f32 %v1898, %v1354
      %v1947 = vmul.f32 %v1902, %v1355
      %v1948 = vadd.f32 %v1944, %v1946
      %v1949 = vadd.f32 %v1945, %v1947
      %1950 = vrot.lane.b32.xlu0 %v1867, 126
      %v1951 = vpop.permute.xlu0 %1950
      %1952 = vrot.lane.b32.xlu0 %v1869, 126
      %v1953 = vpop.permute.xlu0 %1952
      %v1956 = vsel %vm1836, %v1951, 0.0
      %v1957 = vsel %vm1836, %v1953, 0.0
      %v1958 = vadd.f32 %v991, %v1918
      %v1959 = vadd.f32 %v992, %v1919
      %v1960 = vmul.f32 %v1910, %v1356
      %v1961 = vmul.f32 %v1914, %v1357
      %v1962 = vadd.f32 %v1958, %v1960
      %v1963 = vadd.f32 %v1959, %v1961
      %1964 = vrot.lane.b32.xlu0 %v1867, 125
      %v1965 = vpop.permute.xlu0 %1964
      %1966 = vrot.lane.b32.xlu0 %v1869, 125
      %v1967 = vpop.permute.xlu0 %1966
      %v1970 = vsel %vm1836, %v1965, 0.0
      %v1971 = vsel %vm1836, %v1967, 0.0
      %v1972 = vmul.f32 %v678, %v1743
      %v1973 = vmul.f32 %v679, %v1745
      %1976 = vrot.lane.b32.xlu0 %v1972, 64
      %v1977 = vpop.permute.xlu0 %1976
      %1978 = vrot.lane.b32.xlu0 %v1973, 64
      %v1979 = vpop.permute.xlu0 %1978
      %v1982 = vsel %vm482, %v1977, 0.0
      %1983 = vadd.xlane.f32.xlu0 %v1982
      %v1984 = vpop.xlane.xlu0 %1983
      %v1985 = vsel %vm482, %v1979, 0.0
      %1986 = vadd.xlane.f32.xlu0 %v1985
      %v1987 = vpop.xlane.xlu0 %1986
      %v1988 = vmul.f32 %v678, %v1767
      %v1989 = vmul.f32 %v679, %v1769
      %1992 = vrot.lane.b32.xlu0 %v1988, 64
      %v1993 = vpop.permute.xlu0 %1992
      %1994 = vrot.lane.b32.xlu0 %v1989, 64
      %v1995 = vpop.permute.xlu0 %1994
      %v1998 = vsel %vm482, %v1993, 0.0
      %1999 = vadd.xlane.f32.xlu0 %v1998
      %v2000 = vpop.xlane.xlu0 %1999
      %v2001 = vsel %vm482, %v1995, 0.0
      %2002 = vadd.xlane.f32.xlu0 %v2001
      %v2003 = vpop.xlane.xlu0 %2002
      %v2004 = vmul.f32 %v678, %v1791
      %v2005 = vmul.f32 %v679, %v1793
      %2008 = vrot.lane.b32.xlu0 %v2004, 64
      %v2009 = vpop.permute.xlu0 %2008
      %2010 = vrot.lane.b32.xlu0 %v2005, 64
      %v2011 = vpop.permute.xlu0 %2010
      %v2014 = vsel %vm482, %v2009, 0.0
      %2015 = vadd.xlane.f32.xlu0 %v2014
      %v2016 = vpop.xlane.xlu0 %2015
      %v2017 = vsel %vm482, %v2011, 0.0
      %2018 = vadd.xlane.f32.xlu0 %v2017
      %v2019 = vpop.xlane.xlu0 %2018
      %v2020 = vmul.f32 %v678, %v1815
      %v2021 = vmul.f32 %v679, %v1817
      %2024 = vrot.lane.b32.xlu0 %v2020, 64
      %v2025 = vpop.permute.xlu0 %2024
      %2026 = vrot.lane.b32.xlu0 %v2021, 64
      %v2027 = vpop.permute.xlu0 %2026
      %v2030 = vsel %vm482, %v2025, 0.0
      %2031 = vadd.xlane.f32.xlu0 %v2030
      %v2032 = vpop.xlane.xlu0 %2031
      %v2033 = vsel %vm482, %v2027, 0.0
      %2034 = vadd.xlane.f32.xlu0 %v2033
      %v2035 = vpop.xlane.xlu0 %2034
      %v2036 = vsel %vm1836, %v1984, %v2000
      %v2037 = vsel %vm1836, %v1987, %v2003
      %v2038 = vsel %vm1839, %v2036, %v2016
      %v2039 = vsel %vm1839, %v2037, %v2019
      %v2040 = vsel %vm1842, %v2038, %v2032
      %v2041 = vsel %vm1842, %v2039, %v2035
      %v2042 = vmul.f32 %v2040, 0.125
      %v2043 = vmul.f32 %v2041, 0.125
      %v2044 = vsel %vm1847, %v2042, -inf
      %2045 = vmax.xlane.f32.xlu0 %v2044
      %v2046 = vpop.xlane.xlu0 %2045
      %v2047 = vsel %vm1847, %v2043, -inf
      %2048 = vmax.xlane.f32.xlu0 %v2047
      %v2049 = vpop.xlane.xlu0 %2048
      %v2050 = vsub.f32 %v2042, %v2046
      %v2051 = vsub.f32 %v2043, %v2049
      %v2052 = vmul.f32 %v2050, 1.442695
      %v2053 = vpow.pop %v2052
      %v2054 = vmul.f32 %v2051, 1.442695
      %v2055 = vpow.pop %v2054
      %v2056 = vsel %vm1847, %v2053, 0.0
      %2057 = vadd.xlane.f32.xlu0 %v2056
      %v2058 = vpop.xlane.xlu0 %2057
      %v2059 = vsel %vm1847, %v2055, 0.0
      %2060 = vadd.xlane.f32.xlu0 %v2059
      %v2061 = vpop.xlane.xlu0 %2060
      %v2062 = vrcp.pop %v2058
      %v2063 = vmul.f32 %v2053, %v2062
      %v2064 = vrcp.pop %v2061
      %v2065 = vmul.f32 %v2055, %v2064
      %2067 = vset.pattern.permute.xlu0 0
      %2068 = vperm.xlu0 %2067, %v2063
      %v2069 = vpop.permute.xlu0 %2068
      %2072 = vset.pattern.permute.xlu0 0
      %2073 = vperm.xlu0 %2072, %v2065
      %v2074 = vpop.permute.xlu0 %2073
      %v2076 = vmul.f32 %v2069, %v1326
      %v2077 = vmul.f32 %v2074, %v1327
      %v2078 = vadd.f32 %v2076, 0.0
      %v2079 = vadd.f32 %v2077, 0.0
      %2080 = vset.pattern.permute.xlu0 1
      %2081 = vperm.xlu0 %2080, %v2063
      %v2082 = vpop.permute.xlu0 %2081
      %2084 = vset.pattern.permute.xlu0 1
      %2085 = vperm.xlu0 %2084, %v2065
      %v2086 = vpop.permute.xlu0 %2085
      %v2088 = vmul.f32 %v2082, %v1328
      %v2089 = vmul.f32 %v2086, %v1329
      %v2090 = vadd.f32 %v2078, %v2088
      %v2091 = vadd.f32 %v2079, %v2089
      %2092 = vset.pattern.permute.xlu0 2
      %2093 = vperm.xlu0 %2092, %v2063
      %v2094 = vpop.permute.xlu0 %2093
      %2096 = vset.pattern.permute.xlu0 2
      %2097 = vperm.xlu0 %2096, %v2065
      %v2098 = vpop.permute.xlu0 %2097
      %v2100 = vmul.f32 %v2094, %v1330
      %v2101 = vmul.f32 %v2098, %v1331
      %v2102 = vadd.f32 %v2090, %v2100
      %v2103 = vadd.f32 %v2091, %v2101
      %2104 = vset.pattern.permute.xlu0 3
      %2105 = vperm.xlu0 %2104, %v2063
      %v2106 = vpop.permute.xlu0 %2105
      %2108 = vset.pattern.permute.xlu0 3
      %2109 = vperm.xlu0 %2108, %v2065
      %v2110 = vpop.permute.xlu0 %2109
      %v2112 = vmul.f32 %v2106, %v1332
      %v2113 = vmul.f32 %v2110, %v1333
      %v2114 = vadd.f32 %v2102, %v2112
      %v2115 = vadd.f32 %v2103, %v2113
      %v2116 = vadd.f32 %v985, %v2114
      %v2117 = vadd.f32 %v986, %v2115
      %v2118 = vmul.f32 %v2069, %v1350
      %v2119 = vmul.f32 %v2074, %v1351
      %v2120 = vadd.f32 %v2116, %v2118
      %v2121 = vadd.f32 %v2117, %v2119
      %v2122 = vsel %vm1836, %v2063, 0.0
      %v2123 = vsel %vm1836, %v2065, 0.0
      %v2124 = vadd.f32 %v987, %v2114
      %v2125 = vadd.f32 %v988, %v2115
      %v2126 = vmul.f32 %v2082, %v1352
      %v2127 = vmul.f32 %v2086, %v1353
      %v2128 = vadd.f32 %v2124, %v2126
      %v2129 = vadd.f32 %v2125, %v2127
      %v2130 = vadd.f32 %v2128, %v1344
      %v2131 = vadd.f32 %v2129, %v1345
      %2132 = vrot.lane.b32.xlu0 %v2063, 127
      %v2133 = vpop.permute.xlu0 %2132
      %2134 = vrot.lane.b32.xlu0 %v2065, 127
      %v2135 = vpop.permute.xlu0 %2134
      %v2138 = vsel %vm1836, %v2133, 0.0
      %v2139 = vsel %vm1836, %v2135, 0.0
      %v2140 = vadd.f32 %v989, %v2114
      %v2141 = vadd.f32 %v990, %v2115
      %v2142 = vmul.f32 %v2094, %v1354
      %v2143 = vmul.f32 %v2098, %v1355
      %v2144 = vadd.f32 %v2140, %v2142
      %v2145 = vadd.f32 %v2141, %v2143
      %2146 = vrot.lane.b32.xlu0 %v2063, 126
      %v2147 = vpop.permute.xlu0 %2146
      %2148 = vrot.lane.b32.xlu0 %v2065, 126
      %v2149 = vpop.permute.xlu0 %2148
      %v2152 = vsel %vm1836, %v2147, 0.0
      %v2153 = vsel %vm1836, %v2149, 0.0
      %v2154 = vadd.f32 %v991, %v2114
      %v2155 = vadd.f32 %v992, %v2115
      %v2156 = vmul.f32 %v2106, %v1356
      %v2157 = vmul.f32 %v2110, %v1357
      %v2158 = vadd.f32 %v2154, %v2156
      %v2159 = vadd.f32 %v2155, %v2157
      %2160 = vrot.lane.b32.xlu0 %v2063, 125
      %v2161 = vpop.permute.xlu0 %2160
      %2162 = vrot.lane.b32.xlu0 %v2065, 125
      %v2163 = vpop.permute.xlu0 %2162
      %v2166 = vsel %vm1836, %v2161, 0.0
      %v2167 = vsel %vm1836, %v2163, 0.0
      %v2168 = vmul.f32 %v680, %v1743
      %v2169 = vmul.f32 %v681, %v1745
      %2172 = vrot.lane.b32.xlu0 %v2168, 64
      %v2173 = vpop.permute.xlu0 %2172
      %2174 = vrot.lane.b32.xlu0 %v2169, 64
      %v2175 = vpop.permute.xlu0 %2174
      %v2178 = vsel %vm482, %v2173, 0.0
      %2179 = vadd.xlane.f32.xlu0 %v2178
      %v2180 = vpop.xlane.xlu0 %2179
      %v2181 = vsel %vm482, %v2175, 0.0
      %2182 = vadd.xlane.f32.xlu0 %v2181
      %v2183 = vpop.xlane.xlu0 %2182
      %v2184 = vmul.f32 %v680, %v1767
      %v2185 = vmul.f32 %v681, %v1769
      %2188 = vrot.lane.b32.xlu0 %v2184, 64
      %v2189 = vpop.permute.xlu0 %2188
      %2190 = vrot.lane.b32.xlu0 %v2185, 64
      %v2191 = vpop.permute.xlu0 %2190
      %v2194 = vsel %vm482, %v2189, 0.0
      %2195 = vadd.xlane.f32.xlu0 %v2194
      %v2196 = vpop.xlane.xlu0 %2195
      %v2197 = vsel %vm482, %v2191, 0.0
      %2198 = vadd.xlane.f32.xlu0 %v2197
      %v2199 = vpop.xlane.xlu0 %2198
      %v2200 = vmul.f32 %v680, %v1791
      %v2201 = vmul.f32 %v681, %v1793
      %2204 = vrot.lane.b32.xlu0 %v2200, 64
      %v2205 = vpop.permute.xlu0 %2204
      %2206 = vrot.lane.b32.xlu0 %v2201, 64
      %v2207 = vpop.permute.xlu0 %2206
      %v2210 = vsel %vm482, %v2205, 0.0
      %2211 = vadd.xlane.f32.xlu0 %v2210
      %v2212 = vpop.xlane.xlu0 %2211
      %v2213 = vsel %vm482, %v2207, 0.0
      %2214 = vadd.xlane.f32.xlu0 %v2213
      %v2215 = vpop.xlane.xlu0 %2214
      %v2216 = vmul.f32 %v680, %v1815
      %v2217 = vmul.f32 %v681, %v1817
      %2220 = vrot.lane.b32.xlu0 %v2216, 64
      %v2221 = vpop.permute.xlu0 %2220
      %2222 = vrot.lane.b32.xlu0 %v2217, 64
      %v2223 = vpop.permute.xlu0 %2222
      %v2226 = vsel %vm482, %v2221, 0.0
      %2227 = vadd.xlane.f32.xlu0 %v2226
      %v2228 = vpop.xlane.xlu0 %2227
      %v2229 = vsel %vm482, %v2223, 0.0
      %2230 = vadd.xlane.f32.xlu0 %v2229
      %v2231 = vpop.xlane.xlu0 %2230
      %v2232 = vsel %vm1836, %v2180, %v2196
      %v2233 = vsel %vm1836, %v2183, %v2199
      %v2234 = vsel %vm1839, %v2232, %v2212
      %v2235 = vsel %vm1839, %v2233, %v2215
      %v2236 = vsel %vm1842, %v2234, %v2228
      %v2237 = vsel %vm1842, %v2235, %v2231
      %v2238 = vmul.f32 %v2236, 0.125
      %v2239 = vmul.f32 %v2237, 0.125
      %v2240 = vsel %vm1847, %v2238, -inf
      %2241 = vmax.xlane.f32.xlu0 %v2240
      %v2242 = vpop.xlane.xlu0 %2241
      %v2243 = vsel %vm1847, %v2239, -inf
      %2244 = vmax.xlane.f32.xlu0 %v2243
      %v2245 = vpop.xlane.xlu0 %2244
      %v2246 = vsub.f32 %v2238, %v2242
      %v2247 = vsub.f32 %v2239, %v2245
      %v2248 = vmul.f32 %v2246, 1.442695
      %v2249 = vpow.pop %v2248
      %v2250 = vmul.f32 %v2247, 1.442695
      %v2251 = vpow.pop %v2250
      %v2252 = vsel %vm1847, %v2249, 0.0
      %2253 = vadd.xlane.f32.xlu0 %v2252
      %v2254 = vpop.xlane.xlu0 %2253
      %v2255 = vsel %vm1847, %v2251, 0.0
      %2256 = vadd.xlane.f32.xlu0 %v2255
      %v2257 = vpop.xlane.xlu0 %2256
      %v2258 = vrcp.pop %v2254
      %v2259 = vmul.f32 %v2249, %v2258
      %v2260 = vrcp.pop %v2257
      %v2261 = vmul.f32 %v2251, %v2260
      %2263 = vset.pattern.permute.xlu0 0
      %2264 = vperm.xlu0 %2263, %v2259
      %v2265 = vpop.permute.xlu0 %2264
      %2268 = vset.pattern.permute.xlu0 0
      %2269 = vperm.xlu0 %2268, %v2261
      %v2270 = vpop.permute.xlu0 %2269
      %v2272 = vmul.f32 %v2265, %v1326
      %v2273 = vmul.f32 %v2270, %v1327
      %v2274 = vadd.f32 %v2272, 0.0
      %v2275 = vadd.f32 %v2273, 0.0
      %2276 = vset.pattern.permute.xlu0 1
      %2277 = vperm.xlu0 %2276, %v2259
      %v2278 = vpop.permute.xlu0 %2277
      %2280 = vset.pattern.permute.xlu0 1
      %2281 = vperm.xlu0 %2280, %v2261
      %v2282 = vpop.permute.xlu0 %2281
      %v2284 = vmul.f32 %v2278, %v1328
      %v2285 = vmul.f32 %v2282, %v1329
      %v2286 = vadd.f32 %v2274, %v2284
      %v2287 = vadd.f32 %v2275, %v2285
      %2288 = vset.pattern.permute.xlu0 2
      %2289 = vperm.xlu0 %2288, %v2259
      %v2290 = vpop.permute.xlu0 %2289
      %2292 = vset.pattern.permute.xlu0 2
      %2293 = vperm.xlu0 %2292, %v2261
      %v2294 = vpop.permute.xlu0 %2293
      %v2296 = vmul.f32 %v2290, %v1330
      %v2297 = vmul.f32 %v2294, %v1331
      %v2298 = vadd.f32 %v2286, %v2296
      %v2299 = vadd.f32 %v2287, %v2297
      %2300 = vset.pattern.permute.xlu0 3
      %2301 = vperm.xlu0 %2300, %v2259
      %v2302 = vpop.permute.xlu0 %2301
      %2304 = vset.pattern.permute.xlu0 3
      %2305 = vperm.xlu0 %2304, %v2261
      %v2306 = vpop.permute.xlu0 %2305
      %v2308 = vmul.f32 %v2302, %v1332
      %v2309 = vmul.f32 %v2306, %v1333
      %v2310 = vadd.f32 %v2298, %v2308
      %v2311 = vadd.f32 %v2299, %v2309
      %v2312 = vadd.f32 %v985, %v2310
      %v2313 = vadd.f32 %v986, %v2311
      %v2314 = vmul.f32 %v2265, %v1350
      %v2315 = vmul.f32 %v2270, %v1351
      %v2316 = vadd.f32 %v2312, %v2314
      %v2317 = vadd.f32 %v2313, %v2315
      %v2318 = vsel %vm1836, %v2259, 0.0
      %v2319 = vsel %vm1836, %v2261, 0.0
      %v2320 = vadd.f32 %v987, %v2310
      %v2321 = vadd.f32 %v988, %v2311
      %v2322 = vmul.f32 %v2278, %v1352
      %v2323 = vmul.f32 %v2282, %v1353
      %v2324 = vadd.f32 %v2320, %v2322
      %v2325 = vadd.f32 %v2321, %v2323
      %2326 = vrot.lane.b32.xlu0 %v2259, 127
      %v2327 = vpop.permute.xlu0 %2326
      %2328 = vrot.lane.b32.xlu0 %v2261, 127
      %v2329 = vpop.permute.xlu0 %2328
      %v2332 = vsel %vm1836, %v2327, 0.0
      %v2333 = vsel %vm1836, %v2329, 0.0
      %v2334 = vadd.f32 %v989, %v2310
      %v2335 = vadd.f32 %v990, %v2311
      %v2336 = vmul.f32 %v2290, %v1354
      %v2337 = vmul.f32 %v2294, %v1355
      %v2338 = vadd.f32 %v2334, %v2336
      %v2339 = vadd.f32 %v2335, %v2337
      %v2340 = vadd.f32 %v2338, %v1346
      %v2341 = vadd.f32 %v2339, %v1347
      %2342 = vrot.lane.b32.xlu0 %v2259, 126
      %v2343 = vpop.permute.xlu0 %2342
      %2344 = vrot.lane.b32.xlu0 %v2261, 126
      %v2345 = vpop.permute.xlu0 %2344
      %v2348 = vsel %vm1836, %v2343, 0.0
      %v2349 = vsel %vm1836, %v2345, 0.0
      %v2350 = vadd.f32 %v991, %v2310
      %v2351 = vadd.f32 %v992, %v2311
      %v2352 = vmul.f32 %v2302, %v1356
      %v2353 = vmul.f32 %v2306, %v1357
      %v2354 = vadd.f32 %v2350, %v2352
      %v2355 = vadd.f32 %v2351, %v2353
      %2356 = vrot.lane.b32.xlu0 %v2259, 125
      %v2357 = vpop.permute.xlu0 %2356
      %2358 = vrot.lane.b32.xlu0 %v2261, 125
      %v2359 = vpop.permute.xlu0 %2358
      %v2362 = vsel %vm1836, %v2357, 0.0
      %v2363 = vsel %vm1836, %v2359, 0.0
      %v2364 = vmul.f32 %v682, %v1743
      %v2365 = vmul.f32 %v683, %v1745
      %2368 = vrot.lane.b32.xlu0 %v2364, 64
      %v2369 = vpop.permute.xlu0 %2368
      %2370 = vrot.lane.b32.xlu0 %v2365, 64
      %v2371 = vpop.permute.xlu0 %2370
      %v2374 = vsel %vm482, %v2369, 0.0
      %2375 = vadd.xlane.f32.xlu0 %v2374
      %v2376 = vpop.xlane.xlu0 %2375
      %v2377 = vsel %vm482, %v2371, 0.0
      %2378 = vadd.xlane.f32.xlu0 %v2377
      %v2379 = vpop.xlane.xlu0 %2378
      %v2380 = vmul.f32 %v682, %v1767
      %v2381 = vmul.f32 %v683, %v1769
      %2384 = vrot.lane.b32.xlu0 %v2380, 64
      %v2385 = vpop.permute.xlu0 %2384
      %2386 = vrot.lane.b32.xlu0 %v2381, 64
      %v2387 = vpop.permute.xlu0 %2386
      %v2390 = vsel %vm482, %v2385, 0.0
      %2391 = vadd.xlane.f32.xlu0 %v2390
      %v2392 = vpop.xlane.xlu0 %2391
      %v2393 = vsel %vm482, %v2387, 0.0
      %2394 = vadd.xlane.f32.xlu0 %v2393
      %v2395 = vpop.xlane.xlu0 %2394
      %v2396 = vmul.f32 %v682, %v1791
      %v2397 = vmul.f32 %v683, %v1793
      %2400 = vrot.lane.b32.xlu0 %v2396, 64
      %v2401 = vpop.permute.xlu0 %2400
      %2402 = vrot.lane.b32.xlu0 %v2397, 64
      %v2403 = vpop.permute.xlu0 %2402
      %v2406 = vsel %vm482, %v2401, 0.0
      %2407 = vadd.xlane.f32.xlu0 %v2406
      %v2408 = vpop.xlane.xlu0 %2407
      %v2409 = vsel %vm482, %v2403, 0.0
      %2410 = vadd.xlane.f32.xlu0 %v2409
      %v2411 = vpop.xlane.xlu0 %2410
      %v2412 = vmul.f32 %v682, %v1815
      %v2413 = vmul.f32 %v683, %v1817
      %2416 = vrot.lane.b32.xlu0 %v2412, 64
      %v2417 = vpop.permute.xlu0 %2416
      %2418 = vrot.lane.b32.xlu0 %v2413, 64
      %v2419 = vpop.permute.xlu0 %2418
      %v2422 = vsel %vm482, %v2417, 0.0
      %2423 = vadd.xlane.f32.xlu0 %v2422
      %v2424 = vpop.xlane.xlu0 %2423
      %v2425 = vsel %vm482, %v2419, 0.0
      %2426 = vadd.xlane.f32.xlu0 %v2425
      %v2427 = vpop.xlane.xlu0 %2426
      %v2428 = vsel %vm1836, %v2376, %v2392
      %v2429 = vsel %vm1836, %v2379, %v2395
      %v2430 = vsel %vm1839, %v2428, %v2408
      %v2431 = vsel %vm1839, %v2429, %v2411
      %v2432 = vsel %vm1842, %v2430, %v2424
      %v2433 = vsel %vm1842, %v2431, %v2427
      %v2434 = vmul.f32 %v2432, 0.125
      %v2435 = vmul.f32 %v2433, 0.125
      %v2436 = vsel %vm1847, %v2434, -inf
      %2437 = vmax.xlane.f32.xlu0 %v2436
      %v2438 = vpop.xlane.xlu0 %2437
      %v2439 = vsel %vm1847, %v2435, -inf
      %2440 = vmax.xlane.f32.xlu0 %v2439
      %v2441 = vpop.xlane.xlu0 %2440
      %v2442 = vsub.f32 %v2434, %v2438
      %v2443 = vsub.f32 %v2435, %v2441
      %v2444 = vmul.f32 %v2442, 1.442695
      %v2445 = vpow.pop %v2444
      %v2446 = vmul.f32 %v2443, 1.442695
      %v2447 = vpow.pop %v2446
      %v2448 = vsel %vm1847, %v2445, 0.0
      %2449 = vadd.xlane.f32.xlu0 %v2448
      %v2450 = vpop.xlane.xlu0 %2449
      %v2451 = vsel %vm1847, %v2447, 0.0
      %2452 = vadd.xlane.f32.xlu0 %v2451
      %v2453 = vpop.xlane.xlu0 %2452
      %v2454 = vrcp.pop %v2450
      %v2455 = vmul.f32 %v2445, %v2454
      %v2456 = vrcp.pop %v2453
      %v2457 = vmul.f32 %v2447, %v2456
      %2459 = vset.pattern.permute.xlu0 0
      %2460 = vperm.xlu0 %2459, %v2455
      %v2461 = vpop.permute.xlu0 %2460
      %2464 = vset.pattern.permute.xlu0 0
      %2465 = vperm.xlu0 %2464, %v2457
      %v2466 = vpop.permute.xlu0 %2465
      %v2468 = vmul.f32 %v2461, %v1326
      %v2469 = vmul.f32 %v2466, %v1327
      %v2470 = vadd.f32 %v2468, 0.0
      %v2471 = vadd.f32 %v2469, 0.0
      %2472 = vset.pattern.permute.xlu0 1
      %2473 = vperm.xlu0 %2472, %v2455
      %v2474 = vpop.permute.xlu0 %2473
      %2476 = vset.pattern.permute.xlu0 1
      %2477 = vperm.xlu0 %2476, %v2457
      %v2478 = vpop.permute.xlu0 %2477
      %v2480 = vmul.f32 %v2474, %v1328
      %v2481 = vmul.f32 %v2478, %v1329
      %v2482 = vadd.f32 %v2470, %v2480
      %v2483 = vadd.f32 %v2471, %v2481
      %2484 = vset.pattern.permute.xlu0 2
      %2485 = vperm.xlu0 %2484, %v2455
      %v2486 = vpop.permute.xlu0 %2485
      %2488 = vset.pattern.permute.xlu0 2
      %2489 = vperm.xlu0 %2488, %v2457
      %v2490 = vpop.permute.xlu0 %2489
      %v2492 = vmul.f32 %v2486, %v1330
      %v2493 = vmul.f32 %v2490, %v1331
      %v2494 = vadd.f32 %v2482, %v2492
      %v2495 = vadd.f32 %v2483, %v2493
      %2496 = vset.pattern.permute.xlu0 3
      %2497 = vperm.xlu0 %2496, %v2455
      %v2498 = vpop.permute.xlu0 %2497
      %2500 = vset.pattern.permute.xlu0 3
      %2501 = vperm.xlu0 %2500, %v2457
      %v2502 = vpop.permute.xlu0 %2501
      %v2504 = vmul.f32 %v2498, %v1332
      %v2505 = vmul.f32 %v2502, %v1333
      %v2506 = vadd.f32 %v2494, %v2504
      %v2507 = vadd.f32 %v2495, %v2505
      %v2508 = vadd.f32 %v985, %v2506
      %v2509 = vadd.f32 %v986, %v2507
      %v2510 = vmul.f32 %v2461, %v1350
      %v2511 = vmul.f32 %v2466, %v1351
      %v2512 = vadd.f32 %v2508, %v2510
      %v2513 = vadd.f32 %v2509, %v2511
      %v2514 = vsel %vm1836, %v2455, 0.0
      %v2515 = vsel %vm1836, %v2457, 0.0
      %v2516 = vadd.f32 %v987, %v2506
      %v2517 = vadd.f32 %v988, %v2507
      %v2518 = vmul.f32 %v2474, %v1352
      %v2519 = vmul.f32 %v2478, %v1353
      %v2520 = vadd.f32 %v2516, %v2518
      %v2521 = vadd.f32 %v2517, %v2519
      %2522 = vrot.lane.b32.xlu0 %v2455, 127
      %v2523 = vpop.permute.xlu0 %2522
      %2524 = vrot.lane.b32.xlu0 %v2457, 127
      %v2525 = vpop.permute.xlu0 %2524
      %v2528 = vsel %vm1836, %v2523, 0.0
      %v2529 = vsel %vm1836, %v2525, 0.0
      %v2530 = vadd.f32 %v989, %v2506
      %v2531 = vadd.f32 %v990, %v2507
      %v2532 = vmul.f32 %v2486, %v1354
      %v2533 = vmul.f32 %v2490, %v1355
      %v2534 = vadd.f32 %v2530, %v2532
      %v2535 = vadd.f32 %v2531, %v2533
      %2536 = vrot.lane.b32.xlu0 %v2455, 126
      %v2537 = vpop.permute.xlu0 %2536
      %2538 = vrot.lane.b32.xlu0 %v2457, 126
      %v2539 = vpop.permute.xlu0 %2538
      %v2542 = vsel %vm1836, %v2537, 0.0
      %v2543 = vsel %vm1836, %v2539, 0.0
      %v2544 = vadd.f32 %v991, %v2506
      %v2545 = vadd.f32 %v992, %v2507
      %v2546 = vmul.f32 %v2498, %v1356
      %v2547 = vmul.f32 %v2502, %v1357
      %v2548 = vadd.f32 %v2544, %v2546
      %v2549 = vadd.f32 %v2545, %v2547
      %v2550 = vadd.f32 %v2548, %v1348
      %v2551 = vadd.f32 %v2549, %v1349
      %2552 = vrot.lane.b32.xlu0 %v2455, 125
      %v2553 = vpop.permute.xlu0 %2552
      %2554 = vrot.lane.b32.xlu0 %v2457, 125
      %v2555 = vpop.permute.xlu0 %2554
      %v2558 = vsel %vm1836, %v2553, 0.0
      %v2559 = vsel %vm1836, %v2555, 0.0
      %v2560 = vsel %vm482, %v1926, 0.0
      %2561 = vadd.xlane.f32.xlu0 %v2560
      %v2562 = vpop.xlane.xlu0 %2561
      %v2563 = vsel %vm482, %v1927, 0.0
      %2564 = vadd.xlane.f32.xlu0 %v2563
      %v2565 = vpop.xlane.xlu0 %2564
      %v2566 = vsel %vm482, %v1934, 0.0
      %2567 = vadd.xlane.f32.xlu0 %v2566
      %v2568 = vpop.xlane.xlu0 %2567
      %v2569 = vsel %vm482, %v1935, 0.0
      %2570 = vadd.xlane.f32.xlu0 %v2569
      %v2571 = vpop.xlane.xlu0 %2570
      %v2572 = vsel %vm482, %v1948, 0.0
      %2573 = vadd.xlane.f32.xlu0 %v2572
      %v2574 = vpop.xlane.xlu0 %2573
      %v2575 = vsel %vm482, %v1949, 0.0
      %2576 = vadd.xlane.f32.xlu0 %v2575
      %v2577 = vpop.xlane.xlu0 %2576
      %v2578 = vsel %vm482, %v1962, 0.0
      %2579 = vadd.xlane.f32.xlu0 %v2578
      %v2580 = vpop.xlane.xlu0 %2579
      %v2581 = vsel %vm482, %v1963, 0.0
      %2582 = vadd.xlane.f32.xlu0 %v2581
      %v2583 = vpop.xlane.xlu0 %2582
      %v2584 = vsel %vm482, %v2120, 0.0
      %2585 = vadd.xlane.f32.xlu0 %v2584
      %v2586 = vpop.xlane.xlu0 %2585
      %v2587 = vsel %vm482, %v2121, 0.0
      %2588 = vadd.xlane.f32.xlu0 %v2587
      %v2589 = vpop.xlane.xlu0 %2588
      %v2590 = vsel %vm482, %v2130, 0.0
      %2591 = vadd.xlane.f32.xlu0 %v2590
      %v2592 = vpop.xlane.xlu0 %2591
      %v2593 = vsel %vm482, %v2131, 0.0
      %2594 = vadd.xlane.f32.xlu0 %v2593
      %v2595 = vpop.xlane.xlu0 %2594
      %v2596 = vsel %vm482, %v2144, 0.0
      %2597 = vadd.xlane.f32.xlu0 %v2596
      %v2598 = vpop.xlane.xlu0 %2597
      %v2599 = vsel %vm482, %v2145, 0.0
      %2600 = vadd.xlane.f32.xlu0 %v2599
      %v2601 = vpop.xlane.xlu0 %2600
      %v2602 = vsel %vm482, %v2158, 0.0
      %2603 = vadd.xlane.f32.xlu0 %v2602
      %v2604 = vpop.xlane.xlu0 %2603
      %v2605 = vsel %vm482, %v2159, 0.0
      %2606 = vadd.xlane.f32.xlu0 %v2605
      %v2607 = vpop.xlane.xlu0 %2606
      %v2608 = vsel %vm482, %v2316, 0.0
      %2609 = vadd.xlane.f32.xlu0 %v2608
      %v2610 = vpop.xlane.xlu0 %2609
      %v2611 = vsel %vm482, %v2317, 0.0
      %2612 = vadd.xlane.f32.xlu0 %v2611
      %v2613 = vpop.xlane.xlu0 %2612
      %v2614 = vsel %vm482, %v2324, 0.0
      %2615 = vadd.xlane.f32.xlu0 %v2614
      %v2616 = vpop.xlane.xlu0 %2615
      %v2617 = vsel %vm482, %v2325, 0.0
      %2618 = vadd.xlane.f32.xlu0 %v2617
      %v2619 = vpop.xlane.xlu0 %2618
      %v2620 = vsel %vm482, %v2340, 0.0
      %2621 = vadd.xlane.f32.xlu0 %v2620
      %v2622 = vpop.xlane.xlu0 %2621
      %v2623 = vsel %vm482, %v2341, 0.0
      %2624 = vadd.xlane.f32.xlu0 %v2623
      %v2625 = vpop.xlane.xlu0 %2624
      %v2626 = vsel %vm482, %v2354, 0.0
      %2627 = vadd.xlane.f32.xlu0 %v2626
      %v2628 = vpop.xlane.xlu0 %2627
      %v2629 = vsel %vm482, %v2355, 0.0
      %2630 = vadd.xlane.f32.xlu0 %v2629
      %v2631 = vpop.xlane.xlu0 %2630
      %v2632 = vsel %vm482, %v2512, 0.0
      %2633 = vadd.xlane.f32.xlu0 %v2632
      %v2634 = vpop.xlane.xlu0 %2633
      %v2635 = vsel %vm482, %v2513, 0.0
      %2636 = vadd.xlane.f32.xlu0 %v2635
      %v2637 = vpop.xlane.xlu0 %2636
      %v2638 = vsel %vm482, %v2520, 0.0
      %2639 = vadd.xlane.f32.xlu0 %v2638
      %v2640 = vpop.xlane.xlu0 %2639
      %v2641 = vsel %vm482, %v2521, 0.0
      %2642 = vadd.xlane.f32.xlu0 %v2641
      %v2643 = vpop.xlane.xlu0 %2642
      %v2644 = vsel %vm482, %v2534, 0.0
      %2645 = vadd.xlane.f32.xlu0 %v2644
      %v2646 = vpop.xlane.xlu0 %2645
      %v2647 = vsel %vm482, %v2535, 0.0
      %2648 = vadd.xlane.f32.xlu0 %v2647
      %v2649 = vpop.xlane.xlu0 %2648
      %v2650 = vsel %vm482, %v2550, 0.0
      %2651 = vadd.xlane.f32.xlu0 %v2650
      %v2652 = vpop.xlane.xlu0 %2651
      %v2653 = vsel %vm482, %v2551, 0.0
      %2654 = vadd.xlane.f32.xlu0 %v2653
      %v2655 = vpop.xlane.xlu0 %2654
      %v2656 = vmul.f32 %v2562, %v1446
      %v2657 = vmul.f32 %v2565, %v1446
      %v2658 = vmul.f32 %v2568, %v1446
      %v2659 = vmul.f32 %v2571, %v1446
      %v2660 = vmul.f32 %v2574, %v1446
      %v2661 = vmul.f32 %v2577, %v1446
      %v2662 = vmul.f32 %v2580, %v1446
      %v2663 = vmul.f32 %v2583, %v1446
      %v2664 = vmul.f32 %v2586, %v1446
      %v2665 = vmul.f32 %v2589, %v1446
      %v2666 = vmul.f32 %v2592, %v1446
      %v2667 = vmul.f32 %v2595, %v1446
      %v2668 = vmul.f32 %v2598, %v1446
      %v2669 = vmul.f32 %v2601, %v1446
      %v2670 = vmul.f32 %v2604, %v1446
      %v2671 = vmul.f32 %v2607, %v1446
      %v2672 = vmul.f32 %v2610, %v1446
      %v2673 = vmul.f32 %v2613, %v1446
      %v2674 = vmul.f32 %v2616, %v1446
      %v2675 = vmul.f32 %v2619, %v1446
      %v2676 = vmul.f32 %v2622, %v1446
      %v2677 = vmul.f32 %v2625, %v1446
      %v2678 = vmul.f32 %v2628, %v1446
      %v2679 = vmul.f32 %v2631, %v1446
      %v2680 = vmul.f32 %v2634, %v1446
      %v2681 = vmul.f32 %v2637, %v1446
      %v2682 = vmul.f32 %v2640, %v1446
      %v2683 = vmul.f32 %v2643, %v1446
      %v2684 = vmul.f32 %v2646, %v1446
      %v2685 = vmul.f32 %v2649, %v1446
      %v2686 = vmul.f32 %v2652, %v1446
      %v2687 = vmul.f32 %v2655, %v1446
      %v2688 = vsub.f32 %v1926, %v2656
      %v2689 = vsub.f32 %v1927, %v2657
      %v2690 = vsub.f32 %v1934, %v2658
      %v2691 = vsub.f32 %v1935, %v2659
      %v2692 = vsub.f32 %v1948, %v2660
      %v2693 = vsub.f32 %v1949, %v2661
      %v2694 = vsub.f32 %v1962, %v2662
      %v2695 = vsub.f32 %v1963, %v2663
      %v2696 = vsub.f32 %v2120, %v2664
      %v2697 = vsub.f32 %v2121, %v2665
      %v2698 = vsub.f32 %v2130, %v2666
      %v2699 = vsub.f32 %v2131, %v2667
      %v2700 = vsub.f32 %v2144, %v2668
      %v2701 = vsub.f32 %v2145, %v2669
      %v2702 = vsub.f32 %v2158, %v2670
      %v2703 = vsub.f32 %v2159, %v2671
      %v2704 = vsub.f32 %v2316, %v2672
      %v2705 = vsub.f32 %v2317, %v2673
      %v2706 = vsub.f32 %v2324, %v2674
      %v2707 = vsub.f32 %v2325, %v2675
      %v2708 = vsub.f32 %v2340, %v2676
      %v2709 = vsub.f32 %v2341, %v2677
      %v2710 = vsub.f32 %v2354, %v2678
      %v2711 = vsub.f32 %v2355, %v2679
      %v2712 = vsub.f32 %v2512, %v2680
      %v2713 = vsub.f32 %v2513, %v2681
      %v2714 = vsub.f32 %v2520, %v2682
      %v2715 = vsub.f32 %v2521, %v2683
      %v2716 = vsub.f32 %v2534, %v2684
      %v2717 = vsub.f32 %v2535, %v2685
      %v2718 = vsub.f32 %v2550, %v2686
      %v2719 = vsub.f32 %v2551, %v2687
      %v2720 = vmul.f32 %v2688, %v2688
      %v2721 = vmul.f32 %v2689, %v2689
      %v2722 = vmul.f32 %v2690, %v2690
      %v2723 = vmul.f32 %v2691, %v2691
      %v2724 = vmul.f32 %v2692, %v2692
      %v2725 = vmul.f32 %v2693, %v2693
      %v2726 = vmul.f32 %v2694, %v2694
      %v2727 = vmul.f32 %v2695, %v2695
      %v2728 = vmul.f32 %v2696, %v2696
      %v2729 = vmul.f32 %v2697, %v2697
      %v2730 = vmul.f32 %v2698, %v2698
      %v2731 = vmul.f32 %v2699, %v2699
      %v2732 = vmul.f32 %v2700, %v2700
      %v2733 = vmul.f32 %v2701, %v2701
      %v2734 = vmul.f32 %v2702, %v2702
      %v2735 = vmul.f32 %v2703, %v2703
      %v2736 = vmul.f32 %v2704, %v2704
      %v2737 = vmul.f32 %v2705, %v2705
      %v2738 = vmul.f32 %v2706, %v2706
      %v2739 = vmul.f32 %v2707, %v2707
      %v2740 = vmul.f32 %v2708, %v2708
      %v2741 = vmul.f32 %v2709, %v2709
      %v2742 = vmul.f32 %v2710, %v2710
      %v2743 = vmul.f32 %v2711, %v2711
      %v2744 = vmul.f32 %v2712, %v2712
      %v2745 = vmul.f32 %v2713, %v2713
      %v2746 = vmul.f32 %v2714, %v2714
      %v2747 = vmul.f32 %v2715, %v2715
      %v2748 = vmul.f32 %v2716, %v2716
      %v2749 = vmul.f32 %v2717, %v2717
      %v2750 = vmul.f32 %v2718, %v2718
      %v2751 = vmul.f32 %v2719, %v2719
      %v2752 = vsel %vm482, %v2720, 0.0
      %2753 = vadd.xlane.f32.xlu0 %v2752
      %v2754 = vpop.xlane.xlu0 %2753
      %v2755 = vsel %vm482, %v2721, 0.0
      %2756 = vadd.xlane.f32.xlu0 %v2755
      %v2757 = vpop.xlane.xlu0 %2756
      %v2758 = vsel %vm482, %v2722, 0.0
      %2759 = vadd.xlane.f32.xlu0 %v2758
      %v2760 = vpop.xlane.xlu0 %2759
      %v2761 = vsel %vm482, %v2723, 0.0
      %2762 = vadd.xlane.f32.xlu0 %v2761
      %v2763 = vpop.xlane.xlu0 %2762
      %v2764 = vsel %vm482, %v2724, 0.0
      %2765 = vadd.xlane.f32.xlu0 %v2764
      %v2766 = vpop.xlane.xlu0 %2765
      %v2767 = vsel %vm482, %v2725, 0.0
      %2768 = vadd.xlane.f32.xlu0 %v2767
      %v2769 = vpop.xlane.xlu0 %2768
      %v2770 = vsel %vm482, %v2726, 0.0
      %2771 = vadd.xlane.f32.xlu0 %v2770
      %v2772 = vpop.xlane.xlu0 %2771
      %v2773 = vsel %vm482, %v2727, 0.0
      %2774 = vadd.xlane.f32.xlu0 %v2773
      %v2775 = vpop.xlane.xlu0 %2774
      %v2776 = vsel %vm482, %v2728, 0.0
      %2777 = vadd.xlane.f32.xlu0 %v2776
      %v2778 = vpop.xlane.xlu0 %2777
      %v2779 = vsel %vm482, %v2729, 0.0
      %2780 = vadd.xlane.f32.xlu0 %v2779
      %v2781 = vpop.xlane.xlu0 %2780
      %v2782 = vsel %vm482, %v2730, 0.0
      %2783 = vadd.xlane.f32.xlu0 %v2782
      %v2784 = vpop.xlane.xlu0 %2783
      %v2785 = vsel %vm482, %v2731, 0.0
      %2786 = vadd.xlane.f32.xlu0 %v2785
      %v2787 = vpop.xlane.xlu0 %2786
      %v2788 = vsel %vm482, %v2732, 0.0
      %2789 = vadd.xlane.f32.xlu0 %v2788
      %v2790 = vpop.xlane.xlu0 %2789
      %v2791 = vsel %vm482, %v2733, 0.0
      %2792 = vadd.xlane.f32.xlu0 %v2791
      %v2793 = vpop.xlane.xlu0 %2792
      %v2794 = vsel %vm482, %v2734, 0.0
      %2795 = vadd.xlane.f32.xlu0 %v2794
      %v2796 = vpop.xlane.xlu0 %2795
      %v2797 = vsel %vm482, %v2735, 0.0
      %2798 = vadd.xlane.f32.xlu0 %v2797
      %v2799 = vpop.xlane.xlu0 %2798
      %v2800 = vsel %vm482, %v2736, 0.0
      %2801 = vadd.xlane.f32.xlu0 %v2800
      %v2802 = vpop.xlane.xlu0 %2801
      %v2803 = vsel %vm482, %v2737, 0.0
      %2804 = vadd.xlane.f32.xlu0 %v2803
      %v2805 = vpop.xlane.xlu0 %2804
      %v2806 = vsel %vm482, %v2738, 0.0
      %2807 = vadd.xlane.f32.xlu0 %v2806
      %v2808 = vpop.xlane.xlu0 %2807
      %v2809 = vsel %vm482, %v2739, 0.0
      %2810 = vadd.xlane.f32.xlu0 %v2809
      %v2811 = vpop.xlane.xlu0 %2810
      %v2812 = vsel %vm482, %v2740, 0.0
      %2813 = vadd.xlane.f32.xlu0 %v2812
      %v2814 = vpop.xlane.xlu0 %2813
      %v2815 = vsel %vm482, %v2741, 0.0
      %2816 = vadd.xlane.f32.xlu0 %v2815
      %v2817 = vpop.xlane.xlu0 %2816
      %v2818 = vsel %vm482, %v2742, 0.0
      %2819 = vadd.xlane.f32.xlu0 %v2818
      %v2820 = vpop.xlane.xlu0 %2819
      %v2821 = vsel %vm482, %v2743, 0.0
      %2822 = vadd.xlane.f32.xlu0 %v2821
      %v2823 = vpop.xlane.xlu0 %2822
      %v2824 = vsel %vm482, %v2744, 0.0
      %2825 = vadd.xlane.f32.xlu0 %v2824
      %v2826 = vpop.xlane.xlu0 %2825
      %v2827 = vsel %vm482, %v2745, 0.0
      %2828 = vadd.xlane.f32.xlu0 %v2827
      %v2829 = vpop.xlane.xlu0 %2828
      %v2830 = vsel %vm482, %v2746, 0.0
      %2831 = vadd.xlane.f32.xlu0 %v2830
      %v2832 = vpop.xlane.xlu0 %2831
      %v2833 = vsel %vm482, %v2747, 0.0
      %2834 = vadd.xlane.f32.xlu0 %v2833
      %v2835 = vpop.xlane.xlu0 %2834
      %v2836 = vsel %vm482, %v2748, 0.0
      %2837 = vadd.xlane.f32.xlu0 %v2836
      %v2838 = vpop.xlane.xlu0 %2837
      %v2839 = vsel %vm482, %v2749, 0.0
      %2840 = vadd.xlane.f32.xlu0 %v2839
      %v2841 = vpop.xlane.xlu0 %2840
      %v2842 = vsel %vm482, %v2750, 0.0
      %2843 = vadd.xlane.f32.xlu0 %v2842
      %v2844 = vpop.xlane.xlu0 %2843
      %v2845 = vsel %vm482, %v2751, 0.0
      %2846 = vadd.xlane.f32.xlu0 %v2845
      %v2847 = vpop.xlane.xlu0 %2846
      %v2848 = vmul.f32 %v2754, %v1446
      %v2849 = vmul.f32 %v2757, %v1446
      %v2850 = vmul.f32 %v2760, %v1446
      %v2851 = vmul.f32 %v2763, %v1446
      %v2852 = vmul.f32 %v2766, %v1446
      %v2853 = vmul.f32 %v2769, %v1446
      %v2854 = vmul.f32 %v2772, %v1446
      %v2855 = vmul.f32 %v2775, %v1446
      %v2856 = vmul.f32 %v2778, %v1446
      %v2857 = vmul.f32 %v2781, %v1446
      %v2858 = vmul.f32 %v2784, %v1446
      %v2859 = vmul.f32 %v2787, %v1446
      %v2860 = vmul.f32 %v2790, %v1446
      %v2861 = vmul.f32 %v2793, %v1446
      %v2862 = vmul.f32 %v2796, %v1446
      %v2863 = vmul.f32 %v2799, %v1446
      %v2864 = vmul.f32 %v2802, %v1446
      %v2865 = vmul.f32 %v2805, %v1446
      %v2866 = vmul.f32 %v2808, %v1446
      %v2867 = vmul.f32 %v2811, %v1446
      %v2868 = vmul.f32 %v2814, %v1446
      %v2869 = vmul.f32 %v2817, %v1446
      %v2870 = vmul.f32 %v2820, %v1446
      %v2871 = vmul.f32 %v2823, %v1446
      %v2872 = vmul.f32 %v2826, %v1446
      %v2873 = vmul.f32 %v2829, %v1446
      %v2874 = vmul.f32 %v2832, %v1446
      %v2875 = vmul.f32 %v2835, %v1446
      %v2876 = vmul.f32 %v2838, %v1446
      %v2877 = vmul.f32 %v2841, %v1446
      %v2878 = vmul.f32 %v2844, %v1446
      %v2879 = vmul.f32 %v2847, %v1446
      %v2880 = vadd.f32 %v2848, 1e-05
      %v2881 = vadd.f32 %v2849, 1e-05
      %v2882 = vadd.f32 %v2850, 1e-05
      %v2883 = vadd.f32 %v2851, 1e-05
      %v2884 = vadd.f32 %v2852, 1e-05
      %v2885 = vadd.f32 %v2853, 1e-05
      %v2886 = vadd.f32 %v2854, 1e-05
      %v2887 = vadd.f32 %v2855, 1e-05
      %v2888 = vadd.f32 %v2856, 1e-05
      %v2889 = vadd.f32 %v2857, 1e-05
      %v2890 = vadd.f32 %v2858, 1e-05
      %v2891 = vadd.f32 %v2859, 1e-05
      %v2892 = vadd.f32 %v2860, 1e-05
      %v2893 = vadd.f32 %v2861, 1e-05
      %v2894 = vadd.f32 %v2862, 1e-05
      %v2895 = vadd.f32 %v2863, 1e-05
      %v2896 = vadd.f32 %v2864, 1e-05
      %v2897 = vadd.f32 %v2865, 1e-05
      %v2898 = vadd.f32 %v2866, 1e-05
      %v2899 = vadd.f32 %v2867, 1e-05
      %v2900 = vadd.f32 %v2868, 1e-05
      %v2901 = vadd.f32 %v2869, 1e-05
      %v2902 = vadd.f32 %v2870, 1e-05
      %v2903 = vadd.f32 %v2871, 1e-05
      %v2904 = vadd.f32 %v2872, 1e-05
      %v2905 = vadd.f32 %v2873, 1e-05
      %v2906 = vadd.f32 %v2874, 1e-05
      %v2907 = vadd.f32 %v2875, 1e-05
      %v2908 = vadd.f32 %v2876, 1e-05
      %v2909 = vadd.f32 %v2877, 1e-05
      %v2910 = vadd.f32 %v2878, 1e-05
      %v2911 = vadd.f32 %v2879, 1e-05
      %v2912 = vrsqrt.pop %v2880
      %v2913 = vrsqrt.pop %v2881
      %v2914 = vrsqrt.pop %v2882
      %v2915 = vrsqrt.pop %v2883
      %v2916 = vrsqrt.pop %v2884
      %v2917 = vrsqrt.pop %v2885
      %v2918 = vrsqrt.pop %v2886
      %v2919 = vrsqrt.pop %v2887
      %v2920 = vrsqrt.pop %v2888
      %v2921 = vrsqrt.pop %v2889
      %v2922 = vrsqrt.pop %v2890
      %v2923 = vrsqrt.pop %v2891
      %v2924 = vrsqrt.pop %v2892
      %v2925 = vrsqrt.pop %v2893
      %v2926 = vrsqrt.pop %v2894
      %v2927 = vrsqrt.pop %v2895
      %v2928 = vrsqrt.pop %v2896
      %v2929 = vrsqrt.pop %v2897
      %v2930 = vrsqrt.pop %v2898
      %v2931 = vrsqrt.pop %v2899
      %v2932 = vrsqrt.pop %v2900
      %v2933 = vrsqrt.pop %v2901
      %v2934 = vrsqrt.pop %v2902
      %v2935 = vrsqrt.pop %v2903
      %v2936 = vrsqrt.pop %v2904
      %v2937 = vrsqrt.pop %v2905
      %v2938 = vrsqrt.pop %v2906
      %v2939 = vrsqrt.pop %v2907
      %v2940 = vrsqrt.pop %v2908
      %v2941 = vrsqrt.pop %v2909
      %v2942 = vrsqrt.pop %v2910
      %v2943 = vrsqrt.pop %v2911
      %v2944 = vmul.f32 %v2688, %v2912
      %v2945 = vmul.f32 %v2689, %v2913
      %v2946 = vmul.f32 %v2690, %v2914
      %v2947 = vmul.f32 %v2691, %v2915
      %v2948 = vmul.f32 %v2692, %v2916
      %v2949 = vmul.f32 %v2693, %v2917
      %v2950 = vmul.f32 %v2694, %v2918
      %v2951 = vmul.f32 %v2695, %v2919
      %v2952 = vmul.f32 %v2696, %v2920
      %v2953 = vmul.f32 %v2697, %v2921
      %v2954 = vmul.f32 %v2698, %v2922
      %v2955 = vmul.f32 %v2699, %v2923
      %v2956 = vmul.f32 %v2700, %v2924
      %v2957 = vmul.f32 %v2701, %v2925
      %v2958 = vmul.f32 %v2702, %v2926
      %v2959 = vmul.f32 %v2703, %v2927
      %v2960 = vmul.f32 %v2704, %v2928
      %v2961 = vmul.f32 %v2705, %v2929
      %v2962 = vmul.f32 %v2706, %v2930
      %v2963 = vmul.f32 %v2707, %v2931
      %v2964 = vmul.f32 %v2708, %v2932
      %v2965 = vmul.f32 %v2709, %v2933
      %v2966 = vmul.f32 %v2710, %v2934
      %v2967 = vmul.f32 %v2711, %v2935
      %v2968 = vmul.f32 %v2712, %v2936
      %v2969 = vmul.f32 %v2713, %v2937
      %v2970 = vmul.f32 %v2714, %v2938
      %v2971 = vmul.f32 %v2715, %v2939
      %v2972 = vmul.f32 %v2716, %v2940
      %v2973 = vmul.f32 %v2717, %v2941
      %v2974 = vmul.f32 %v2718, %v2942
      %v2975 = vmul.f32 %v2719, %v2943
      %v2976 = vlaneseq
      %v2977 = vshrl.u32 %v2976, 7
      %v2978 = vsub.s32 0, %v2977
      %v2979 = vrot.slane %v266, %v2978
      %v2980 = vmul.f32 %v2944, %v2979
      %v2981 = vmul.f32 %v2945, %v2979
      %v2982 = vmul.f32 %v2946, %v2979
      %v2983 = vmul.f32 %v2947, %v2979
      %v2984 = vmul.f32 %v2948, %v2979
      %v2985 = vmul.f32 %v2949, %v2979
      %v2986 = vmul.f32 %v2950, %v2979
      %v2987 = vmul.f32 %v2951, %v2979
      %v2988 = vmul.f32 %v2952, %v2979
      %v2989 = vmul.f32 %v2953, %v2979
      %v2990 = vmul.f32 %v2954, %v2979
      %v2991 = vmul.f32 %v2955, %v2979
      %v2992 = vmul.f32 %v2956, %v2979
      %v2993 = vmul.f32 %v2957, %v2979
      %v2994 = vmul.f32 %v2958, %v2979
      %v2995 = vmul.f32 %v2959, %v2979
      %v2996 = vmul.f32 %v2960, %v2979
      %v2997 = vmul.f32 %v2961, %v2979
      %v2998 = vmul.f32 %v2962, %v2979
      %v2999 = vmul.f32 %v2963, %v2979
      %v3000 = vmul.f32 %v2964, %v2979
      %v3001 = vmul.f32 %v2965, %v2979
      %v3002 = vmul.f32 %v2966, %v2979
      %v3003 = vmul.f32 %v2967, %v2979
      %v3004 = vmul.f32 %v2968, %v2979
      %v3005 = vmul.f32 %v2969, %v2979
      %v3006 = vmul.f32 %v2970, %v2979
      %v3007 = vmul.f32 %v2971, %v2979
      %v3008 = vmul.f32 %v2972, %v2979
      %v3009 = vmul.f32 %v2973, %v2979
      %v3010 = vmul.f32 %v2974, %v2979
      %v3011 = vmul.f32 %v2975, %v2979
      %v3012 = vlaneseq
      %v3013 = vshrl.u32 %v3012, 7
      %v3014 = vsub.s32 0, %v3013
      %v3015 = vrot.slane %v267, %v3014
      %v3016 = vadd.f32 %v2980, %v3015
      %v3017 = vadd.f32 %v2981, %v3015
      %v3018 = vadd.f32 %v2982, %v3015
      %v3019 = vadd.f32 %v2983, %v3015
      %v3020 = vadd.f32 %v2984, %v3015
      %v3021 = vadd.f32 %v2985, %v3015
      %v3022 = vadd.f32 %v2986, %v3015
      %v3023 = vadd.f32 %v2987, %v3015
      %v3024 = vadd.f32 %v2988, %v3015
      %v3025 = vadd.f32 %v2989, %v3015
      %v3026 = vadd.f32 %v2990, %v3015
      %v3027 = vadd.f32 %v2991, %v3015
      %v3028 = vadd.f32 %v2992, %v3015
      %v3029 = vadd.f32 %v2993, %v3015
      %v3030 = vadd.f32 %v2994, %v3015
      %v3031 = vadd.f32 %v2995, %v3015
      %v3032 = vadd.f32 %v2996, %v3015
      %v3033 = vadd.f32 %v2997, %v3015
      %v3034 = vadd.f32 %v2998, %v3015
      %v3035 = vadd.f32 %v2999, %v3015
      %v3036 = vadd.f32 %v3000, %v3015
      %v3037 = vadd.f32 %v3001, %v3015
      %v3038 = vadd.f32 %v3002, %v3015
      %v3039 = vadd.f32 %v3003, %v3015
      %v3040 = vadd.f32 %v3004, %v3015
      %v3041 = vadd.f32 %v3005, %v3015
      %v3042 = vadd.f32 %v3006, %v3015
      %v3043 = vadd.f32 %v3007, %v3015
      %v3044 = vadd.f32 %v3008, %v3015
      %v3045 = vadd.f32 %v3009, %v3015
      %v3046 = vadd.f32 %v3010, %v3015
      %v3047 = vadd.f32 %v3011, %v3015
      %v3049 = vsel %vm482, %v3016, 0
      %v3052 = vsel %vm482, %v3017, 0
      %v3055 = vsel %vm482, %v3018, 0
      %v3058 = vsel %vm482, %v3019, 0
      %v3061 = vsel %vm482, %v3020, 0
      %v3064 = vsel %vm482, %v3021, 0
      %v3067 = vsel %vm482, %v3022, 0
      %v3070 = vsel %vm482, %v3023, 0
      %v3073 = vsel %vm482, %v3024, 0
      %v3076 = vsel %vm482, %v3025, 0
      %v3079 = vsel %vm482, %v3026, 0
      %v3082 = vsel %vm482, %v3027, 0
      %v3085 = vsel %vm482, %v3028, 0
      %v3088 = vsel %vm482, %v3029, 0
      %v3091 = vsel %vm482, %v3030, 0
      %v3094 = vsel %vm482, %v3031, 0
      %v3097 = vsel %vm482, %v3032, 0
      %v3100 = vsel %vm482, %v3033, 0
      %v3103 = vsel %vm482, %v3034, 0
      %v3106 = vsel %vm482, %v3035, 0
      %v3109 = vsel %vm482, %v3036, 0
      %v3112 = vsel %vm482, %v3037, 0
      %v3115 = vsel %vm482, %v3038, 0
      %v3118 = vsel %vm482, %v3039, 0
      %v3121 = vsel %vm482, %v3040, 0
      %v3124 = vsel %vm482, %v3041, 0
      %v3127 = vsel %vm482, %v3042, 0
      %v3130 = vsel %vm482, %v3043, 0
      %v3133 = vsel %vm482, %v3044, 0
      %v3136 = vsel %vm482, %v3045, 0
      %v3139 = vsel %vm482, %v3046, 0
      %v3142 = vsel %vm482, %v3047, 0
      %3144 = vmatprep.subr.mxu0 0.0
      %3145 = vmatpush1.msra.mxu0 0.0
      %3146 = vmatprep.subr.mxu0 0.0
      %3147 = vmatpush1.msra.mxu0 0.0
      %3148 = vmatprep.subr.mxu0 0.0
      %3149 = vmatpush1.msra.mxu0 0.0
      %3150 = vmatprep.subr.mxu0 0.0
      %3151 = vmatpush1.msra.mxu0 0.0
      %3152 = vmatprep.subr.mxu0 0.0
      %3153 = vmatpush1.msra.mxu0 0.0
      %3154 = vmatprep.subr.mxu0 0.0
      %3155 = vmatpush1.msra.mxu0 0.0
      %3156 = vmatprep.subr.mxu0 0.0
      %3157 = vmatpush1.msra.mxu0 0.0
      %3158 = vmatprep.subr.mxu0 0.0
      %3159 = vmatpush1.msra.mxu0 0.0
      %3160 = vmatprep.subr.mxu0 0.0
      %3161 = vmatpush1.msra.mxu0 %v251
      %3162 = vmatprep.subr.mxu0 0.0
      %3163 = vmatpush1.msra.mxu0 %v250
      %3164 = vmatprep.subr.mxu0 0.0
      %3165 = vmatpush1.msra.mxu0 %v249
      %3166 = vmatprep.subr.mxu0 0.0
      %3167 = vmatpush1.msra.mxu0 %v248
      %3168 = vmatprep.subr.mxu0 0.0
      %3169 = vmatpush1.msra.mxu0 %v247
      %3170 = vmatprep.subr.mxu0 0.0
      %3171 = vmatpush1.msra.mxu0 %v246
      %3172 = vmatprep.subr.mxu0 0.0
      %3173 = vmatpush1.msra.mxu0 %v245
      %3174 = vmatprep.subr.mxu0 0.0
      %3175 = vmatpush1.msra.mxu0 %v244
      %3176 = vmatprep.subr.mxu0 0.0
      %3177 = vmatpush2.msra.mxu0 0.0
      %3178 = vmatprep.subr.mxu0 0.0
      %3179 = vmatpush2.msra.mxu0 0.0
      %3180 = vmatprep.subr.mxu0 0.0
      %3181 = vmatpush2.msra.mxu0 0.0
      %3182 = vmatprep.subr.mxu0 0.0
      %3183 = vmatpush2.msra.mxu0 0.0
      %3184 = vmatprep.subr.mxu0 0.0
      %3185 = vmatpush2.msra.mxu0 0.0
      %3186 = vmatprep.subr.mxu0 0.0
      %3187 = vmatpush2.msra.mxu0 0.0
      %3188 = vmatprep.subr.mxu0 0.0
      %3189 = vmatpush2.msra.mxu0 0.0
      %3190 = vmatprep.subr.mxu0 0.0
      %3191 = vmatpush2.msra.mxu0 0.0
      %3192 = vmatprep.subr.mxu0 0.0
      %3193 = vmatpush2.msra.mxu0 0.0
      %3194 = vmatprep.subr.mxu0 0.0
      %3195 = vmatpush2.msra.mxu0 0.0
      %3196 = vmatprep.subr.mxu0 0.0
      %3197 = vmatpush2.msra.mxu0 0.0
      %3198 = vmatprep.subr.mxu0 0.0
      %3199 = vmatpush2.msra.mxu0 0.0
      %3200 = vmatprep.subr.mxu0 0.0
      %3201 = vmatpush2.msra.mxu0 0.0
      %3202 = vmatprep.subr.mxu0 0.0
      %3203 = vmatpush2.msra.mxu0 0.0
      %3204 = vmatprep.subr.mxu0 0.0
      %3205 = vmatpush2.msra.mxu0 0.0
      %3206 = vmatprep.subr.mxu0 0.0
      %3207 = vmatpush2.msra.mxu0 0.0
      %3208 = vmatprep.mubr.f32.mxu0 0.0
      %3209 = vmatmul.mubr.f32.gmra.mxu0 %v3049
      %v3210 = vpop.f32.mrf.mxu0
      %v3211 = vadd.f32 %v1702, %v3210
      %v3212 = vpop.f32.mrf.mxu0
      %3213 = vmatprep.mubr.f32.mxu0 0.0
      %3214 = vmatmul.mubr.f32.gmra.mxu0 %v3052
      %v3215 = vpop.f32.mrf.mxu0
      %v3216 = vadd.f32 %v1707, %v3215
      %v3217 = vpop.f32.mrf.mxu0
      %3218 = vmatprep.mubr.f32.mxu0 0.0
      %3219 = vmatmul.mubr.f32.gmra.mxu0 %v3055
      %v3220 = vpop.f32.mrf.mxu0
      %v3221 = vadd.f32 %v1702, %v3220
      %v3222 = vpop.f32.mrf.mxu0
      %3223 = vmatprep.mubr.f32.mxu0 0.0
      %3224 = vmatmul.mubr.f32.gmra.mxu0 %v3058
      %v3225 = vpop.f32.mrf.mxu0
      %v3226 = vadd.f32 %v1707, %v3225
      %v3227 = vpop.f32.mrf.mxu0
      %3228 = vmatprep.mubr.f32.mxu0 0.0
      %3229 = vmatmul.mubr.f32.gmra.mxu0 %v3061
      %v3230 = vpop.f32.mrf.mxu0
      %v3231 = vadd.f32 %v1702, %v3230
      %v3232 = vpop.f32.mrf.mxu0
      %3233 = vmatprep.mubr.f32.mxu0 0.0
      %3234 = vmatmul.mubr.f32.gmra.mxu0 %v3064
      %v3235 = vpop.f32.mrf.mxu0
      %v3236 = vadd.f32 %v1707, %v3235
      %v3237 = vpop.f32.mrf.mxu0
      %3238 = vmatprep.mubr.f32.mxu0 0.0
      %3239 = vmatmul.mubr.f32.gmra.mxu0 %v3067
      %v3240 = vpop.f32.mrf.mxu0
      %v3241 = vadd.f32 %v1702, %v3240
      %v3242 = vpop.f32.mrf.mxu0
      %3243 = vmatprep.mubr.f32.mxu0 0.0
      %3244 = vmatmul.mubr.f32.gmra.mxu0 %v3070
      %v3245 = vpop.f32.mrf.mxu0
      %v3246 = vadd.f32 %v1707, %v3245
      %v3247 = vpop.f32.mrf.mxu0
      %3248 = vmatprep.mubr.f32.mxu0 0.0
      %3249 = vmatmul.mubr.f32.gmra.mxu0 %v3073
      %v3250 = vpop.f32.mrf.mxu0
      %v3251 = vadd.f32 %v1712, %v3250
      %v3252 = vpop.f32.mrf.mxu0
      %3253 = vmatprep.mubr.f32.mxu0 0.0
      %3254 = vmatmul.mubr.f32.gmra.mxu0 %v3076
      %v3255 = vpop.f32.mrf.mxu0
      %v3256 = vadd.f32 %v1717, %v3255
      %v3257 = vpop.f32.mrf.mxu0
      %3258 = vmatprep.mubr.f32.mxu0 0.0
      %3259 = vmatmul.mubr.f32.gmra.mxu0 %v3079
      %v3260 = vpop.f32.mrf.mxu0
      %v3261 = vadd.f32 %v1712, %v3260
      %v3262 = vpop.f32.mrf.mxu0
      %3263 = vmatprep.mubr.f32.mxu0 0.0
      %3264 = vmatmul.mubr.f32.gmra.mxu0 %v3082
      %v3265 = vpop.f32.mrf.mxu0
      %v3266 = vadd.f32 %v1717, %v3265
      %v3267 = vpop.f32.mrf.mxu0
      %3268 = vmatprep.mubr.f32.mxu0 0.0
      %3269 = vmatmul.mubr.f32.gmra.mxu0 %v3085
      %v3270 = vpop.f32.mrf.mxu0
      %v3271 = vadd.f32 %v1712, %v3270
      %v3272 = vpop.f32.mrf.mxu0
      %3273 = vmatprep.mubr.f32.mxu0 0.0
      %3274 = vmatmul.mubr.f32.gmra.mxu0 %v3088
      %v3275 = vpop.f32.mrf.mxu0
      %v3276 = vadd.f32 %v1717, %v3275
      %v3277 = vpop.f32.mrf.mxu0
      %3278 = vmatprep.mubr.f32.mxu0 0.0
      %3279 = vmatmul.mubr.f32.gmra.mxu0 %v3091
      %v3280 = vpop.f32.mrf.mxu0
      %v3281 = vadd.f32 %v1712, %v3280
      %v3282 = vpop.f32.mrf.mxu0
      %3283 = vmatprep.mubr.f32.mxu0 0.0
      %3284 = vmatmul.mubr.f32.gmra.mxu0 %v3094
      %v3285 = vpop.f32.mrf.mxu0
      %v3286 = vadd.f32 %v1717, %v3285
      %v3287 = vpop.f32.mrf.mxu0
      %3288 = vmatprep.mubr.f32.mxu0 0.0
      %3289 = vmatmul.mubr.f32.gmra.mxu0 %v3097
      %v3290 = vpop.f32.mrf.mxu0
      %v3291 = vadd.f32 %v1722, %v3290
      %v3292 = vpop.f32.mrf.mxu0
      %3293 = vmatprep.mubr.f32.mxu0 0.0
      %3294 = vmatmul.mubr.f32.gmra.mxu0 %v3100
      %v3295 = vpop.f32.mrf.mxu0
      %v3296 = vadd.f32 %v1727, %v3295
      %v3297 = vpop.f32.mrf.mxu0
      %3298 = vmatprep.mubr.f32.mxu0 0.0
      %3299 = vmatmul.mubr.f32.gmra.mxu0 %v3103
      %v3300 = vpop.f32.mrf.mxu0
      %v3301 = vadd.f32 %v1722, %v3300
      %v3302 = vpop.f32.mrf.mxu0
      %3303 = vmatprep.mubr.f32.mxu0 0.0
      %3304 = vmatmul.mubr.f32.gmra.mxu0 %v3106
      %v3305 = vpop.f32.mrf.mxu0
      %v3306 = vadd.f32 %v1727, %v3305
      %v3307 = vpop.f32.mrf.mxu0
      %3308 = vmatprep.mubr.f32.mxu0 0.0
      %3309 = vmatmul.mubr.f32.gmra.mxu0 %v3109
      %v3310 = vpop.f32.mrf.mxu0
      %v3311 = vadd.f32 %v1722, %v3310
      %v3312 = vpop.f32.mrf.mxu0
      %3313 = vmatprep.mubr.f32.mxu0 0.0
      %3314 = vmatmul.mubr.f32.gmra.mxu0 %v3112
      %v3315 = vpop.f32.mrf.mxu0
      %v3316 = vadd.f32 %v1727, %v3315
      %v3317 = vpop.f32.mrf.mxu0
      %3318 = vmatprep.mubr.f32.mxu0 0.0
      %3319 = vmatmul.mubr.f32.gmra.mxu0 %v3115
      %v3320 = vpop.f32.mrf.mxu0
      %v3321 = vadd.f32 %v1722, %v3320
      %v3322 = vpop.f32.mrf.mxu0
      %3323 = vmatprep.mubr.f32.mxu0 0.0
      %3324 = vmatmul.mubr.f32.gmra.mxu0 %v3118
      %v3325 = vpop.f32.mrf.mxu0
      %v3326 = vadd.f32 %v1727, %v3325
      %v3327 = vpop.f32.mrf.mxu0
      %3328 = vmatprep.mubr.f32.mxu0 0.0
      %3329 = vmatmul.mubr.f32.gmra.mxu0 %v3121
      %v3330 = vpop.f32.mrf.mxu0
      %v3331 = vadd.f32 %v1732, %v3330
      %v3332 = vpop.f32.mrf.mxu0
      %3333 = vmatprep.mubr.f32.mxu0 0.0
      %3334 = vmatmul.mubr.f32.gmra.mxu0 %v3124
      %v3335 = vpop.f32.mrf.mxu0
      %v3336 = vadd.f32 %v1737, %v3335
      %v3337 = vpop.f32.mrf.mxu0
      %3338 = vmatprep.mubr.f32.mxu0 0.0
      %3339 = vmatmul.mubr.f32.gmra.mxu0 %v3127
      %v3340 = vpop.f32.mrf.mxu0
      %v3341 = vadd.f32 %v1732, %v3340
      %v3342 = vpop.f32.mrf.mxu0
      %3343 = vmatprep.mubr.f32.mxu0 0.0
      %3344 = vmatmul.mubr.f32.gmra.mxu0 %v3130
      %v3345 = vpop.f32.mrf.mxu0
      %v3346 = vadd.f32 %v1737, %v3345
      %v3347 = vpop.f32.mrf.mxu0
      %3348 = vmatprep.mubr.f32.mxu0 0.0
      %3349 = vmatmul.mubr.f32.gmra.mxu0 %v3133
      %v3350 = vpop.f32.mrf.mxu0
      %v3351 = vadd.f32 %v1732, %v3350
      %v3352 = vpop.f32.mrf.mxu0
      %3353 = vmatprep.mubr.f32.mxu0 0.0
      %3354 = vmatmul.mubr.f32.gmra.mxu0 %v3136
      %v3355 = vpop.f32.mrf.mxu0
      %v3356 = vadd.f32 %v1737, %v3355
      %v3357 = vpop.f32.mrf.mxu0
      %3358 = vmatprep.mubr.f32.mxu0 0.0
      %3359 = vmatmul.mubr.f32.gmra.mxu0 %v3139
      %v3360 = vpop.f32.mrf.mxu0
      %v3361 = vadd.f32 %v1732, %v3360
      %v3362 = vpop.f32.mrf.mxu0
      %3363 = vmatprep.mubr.f32.mxu0 0.0
      %3364 = vmatmul.mubr.f32.gmra.mxu0 %v3142
      %v3365 = vpop.f32.mrf.mxu0
      %v3366 = vadd.f32 %v1737, %v3365
      %v3367 = vpop.f32.mrf.mxu0
      %3368 = vdwg.mxu0
      %v3369 = vmul.f32 %v3211, 0.5
      %v3370 = vmul.f32 %v3216, 0.5
      %v3371 = vmul.f32 %v3221, 0.5
      %v3372 = vmul.f32 %v3226, 0.5
      %v3373 = vmul.f32 %v3231, 0.5
      %v3374 = vmul.f32 %v3236, 0.5
      %v3375 = vmul.f32 %v3241, 0.5
      %v3376 = vmul.f32 %v3246, 0.5
      %v3377 = vmul.f32 %v3251, 0.5
      %v3378 = vmul.f32 %v3256, 0.5
      %v3379 = vmul.f32 %v3261, 0.5
      %v3380 = vmul.f32 %v3266, 0.5
      %v3381 = vmul.f32 %v3271, 0.5
      %v3382 = vmul.f32 %v3276, 0.5
      %v3383 = vmul.f32 %v3281, 0.5
      %v3384 = vmul.f32 %v3286, 0.5
      %v3385 = vmul.f32 %v3291, 0.5
      %v3386 = vmul.f32 %v3296, 0.5
      %v3387 = vmul.f32 %v3301, 0.5
      %v3388 = vmul.f32 %v3306, 0.5
      %v3389 = vmul.f32 %v3311, 0.5
      %v3390 = vmul.f32 %v3316, 0.5
      %v3391 = vmul.f32 %v3321, 0.5
      %v3392 = vmul.f32 %v3326, 0.5
      %v3393 = vmul.f32 %v3331, 0.5
      %v3394 = vmul.f32 %v3336, 0.5
      %v3395 = vmul.f32 %v3341, 0.5
      %v3396 = vmul.f32 %v3346, 0.5
      %v3397 = vmul.f32 %v3351, 0.5
      %v3398 = vmul.f32 %v3356, 0.5
      %v3399 = vmul.f32 %v3361, 0.5
      %v3400 = vmul.f32 %v3366, 0.5
      %v3401 = vmul.f32 %v3211, 0.044715
      %v3402 = vmul.f32 %v3216, 0.044715
      %v3403 = vmul.f32 %v3221, 0.044715
      %v3404 = vmul.f32 %v3226, 0.044715
      %v3405 = vmul.f32 %v3231, 0.044715
      %v3406 = vmul.f32 %v3236, 0.044715
      %v3407 = vmul.f32 %v3241, 0.044715
      %v3408 = vmul.f32 %v3246, 0.044715
      %v3409 = vmul.f32 %v3251, 0.044715
      %v3410 = vmul.f32 %v3256, 0.044715
      %v3411 = vmul.f32 %v3261, 0.044715
      %v3412 = vmul.f32 %v3266, 0.044715
      %v3413 = vmul.f32 %v3271, 0.044715
      %v3414 = vmul.f32 %v3276, 0.044715
      %v3415 = vmul.f32 %v3281, 0.044715
      %v3416 = vmul.f32 %v3286, 0.044715
      %v3417 = vmul.f32 %v3291, 0.044715
      %v3418 = vmul.f32 %v3296, 0.044715
      %v3419 = vmul.f32 %v3301, 0.044715
      %v3420 = vmul.f32 %v3306, 0.044715
      %v3421 = vmul.f32 %v3311, 0.044715
      %v3422 = vmul.f32 %v3316, 0.044715
      %v3423 = vmul.f32 %v3321, 0.044715
      %v3424 = vmul.f32 %v3326, 0.044715
      %v3425 = vmul.f32 %v3331, 0.044715
      %v3426 = vmul.f32 %v3336, 0.044715
      %v3427 = vmul.f32 %v3341, 0.044715
      %v3428 = vmul.f32 %v3346, 0.044715
      %v3429 = vmul.f32 %v3351, 0.044715
      %v3430 = vmul.f32 %v3356, 0.044715
      %v3431 = vmul.f32 %v3361, 0.044715
      %v3432 = vmul.f32 %v3366, 0.044715
      %v3433 = vmul.f32 %v3401, %v3211
      %v3434 = vmul.f32 %v3402, %v3216
      %v3435 = vmul.f32 %v3403, %v3221
      %v3436 = vmul.f32 %v3404, %v3226
      %v3437 = vmul.f32 %v3405, %v3231
      %v3438 = vmul.f32 %v3406, %v3236
      %v3439 = vmul.f32 %v3407, %v3241
      %v3440 = vmul.f32 %v3408, %v3246
      %v3441 = vmul.f32 %v3409, %v3251
      %v3442 = vmul.f32 %v3410, %v3256
      %v3443 = vmul.f32 %v3411, %v3261
      %v3444 = vmul.f32 %v3412, %v3266
      %v3445 = vmul.f32 %v3413, %v3271
      %v3446 = vmul.f32 %v3414, %v3276
      %v3447 = vmul.f32 %v3415, %v3281
      %v3448 = vmul.f32 %v3416, %v3286
      %v3449 = vmul.f32 %v3417, %v3291
      %v3450 = vmul.f32 %v3418, %v3296
      %v3451 = vmul.f32 %v3419, %v3301
      %v3452 = vmul.f32 %v3420, %v3306
      %v3453 = vmul.f32 %v3421, %v3311
      %v3454 = vmul.f32 %v3422, %v3316
      %v3455 = vmul.f32 %v3423, %v3321
      %v3456 = vmul.f32 %v3424, %v3326
      %v3457 = vmul.f32 %v3425, %v3331
      %v3458 = vmul.f32 %v3426, %v3336
      %v3459 = vmul.f32 %v3427, %v3341
      %v3460 = vmul.f32 %v3428, %v3346
      %v3461 = vmul.f32 %v3429, %v3351
      %v3462 = vmul.f32 %v3430, %v3356
      %v3463 = vmul.f32 %v3431, %v3361
      %v3464 = vmul.f32 %v3432, %v3366
      %v3465 = vmul.f32 %v3433, %v3211
      %v3466 = vmul.f32 %v3434, %v3216
      %v3467 = vmul.f32 %v3435, %v3221
      %v3468 = vmul.f32 %v3436, %v3226
      %v3469 = vmul.f32 %v3437, %v3231
      %v3470 = vmul.f32 %v3438, %v3236
      %v3471 = vmul.f32 %v3439, %v3241
      %v3472 = vmul.f32 %v3440, %v3246
      %v3473 = vmul.f32 %v3441, %v3251
      %v3474 = vmul.f32 %v3442, %v3256
      %v3475 = vmul.f32 %v3443, %v3261
      %v3476 = vmul.f32 %v3444, %v3266
      %v3477 = vmul.f32 %v3445, %v3271
      %v3478 = vmul.f32 %v3446, %v3276
      %v3479 = vmul.f32 %v3447, %v3281
      %v3480 = vmul.f32 %v3448, %v3286
      %v3481 = vmul.f32 %v3449, %v3291
      %v3482 = vmul.f32 %v3450, %v3296
      %v3483 = vmul.f32 %v3451, %v3301
      %v3484 = vmul.f32 %v3452, %v3306
      %v3485 = vmul.f32 %v3453, %v3311
      %v3486 = vmul.f32 %v3454, %v3316
      %v3487 = vmul.f32 %v3455, %v3321
      %v3488 = vmul.f32 %v3456, %v3326
      %v3489 = vmul.f32 %v3457, %v3331
      %v3490 = vmul.f32 %v3458, %v3336
      %v3491 = vmul.f32 %v3459, %v3341
      %v3492 = vmul.f32 %v3460, %v3346
      %v3493 = vmul.f32 %v3461, %v3351
      %v3494 = vmul.f32 %v3462, %v3356
      %v3495 = vmul.f32 %v3463, %v3361
      %v3496 = vmul.f32 %v3464, %v3366
      %v3497 = vadd.f32 %v3211, %v3465
      %v3498 = vadd.f32 %v3216, %v3466
      %v3499 = vadd.f32 %v3221, %v3467
      %v3500 = vadd.f32 %v3226, %v3468
      %v3501 = vadd.f32 %v3231, %v3469
      %v3502 = vadd.f32 %v3236, %v3470
      %v3503 = vadd.f32 %v3241, %v3471
      %v3504 = vadd.f32 %v3246, %v3472
      %v3505 = vadd.f32 %v3251, %v3473
      %v3506 = vadd.f32 %v3256, %v3474
      %v3507 = vadd.f32 %v3261, %v3475
      %v3508 = vadd.f32 %v3266, %v3476
      %v3509 = vadd.f32 %v3271, %v3477
      %v3510 = vadd.f32 %v3276, %v3478
      %v3511 = vadd.f32 %v3281, %v3479
      %v3512 = vadd.f32 %v3286, %v3480
      %v3513 = vadd.f32 %v3291, %v3481
      %v3514 = vadd.f32 %v3296, %v3482
      %v3515 = vadd.f32 %v3301, %v3483
      %v3516 = vadd.f32 %v3306, %v3484
      %v3517 = vadd.f32 %v3311, %v3485
      %v3518 = vadd.f32 %v3316, %v3486
      %v3519 = vadd.f32 %v3321, %v3487
      %v3520 = vadd.f32 %v3326, %v3488
      %v3521 = vadd.f32 %v3331, %v3489
      %v3522 = vadd.f32 %v3336, %v3490
      %v3523 = vadd.f32 %v3341, %v3491
      %v3524 = vadd.f32 %v3346, %v3492
      %v3525 = vadd.f32 %v3351, %v3493
      %v3526 = vadd.f32 %v3356, %v3494
      %v3527 = vadd.f32 %v3361, %v3495
      %v3528 = vadd.f32 %v3366, %v3496
      %v3529 = vmul.f32 %v3497, 0.7978846
      %v3530 = vmul.f32 %v3498, 0.7978846
      %v3531 = vmul.f32 %v3499, 0.7978846
      %v3532 = vmul.f32 %v3500, 0.7978846
      %v3533 = vmul.f32 %v3501, 0.7978846
      %v3534 = vmul.f32 %v3502, 0.7978846
      %v3535 = vmul.f32 %v3503, 0.7978846
      %v3536 = vmul.f32 %v3504, 0.7978846
      %v3537 = vmul.f32 %v3505, 0.7978846
      %v3538 = vmul.f32 %v3506, 0.7978846
      %v3539 = vmul.f32 %v3507, 0.7978846
      %v3540 = vmul.f32 %v3508, 0.7978846
      %v3541 = vmul.f32 %v3509, 0.7978846
      %v3542 = vmul.f32 %v3510, 0.7978846
      %v3543 = vmul.f32 %v3511, 0.7978846
      %v3544 = vmul.f32 %v3512, 0.7978846
      %v3545 = vmul.f32 %v3513, 0.7978846
      %v3546 = vmul.f32 %v3514, 0.7978846
      %v3547 = vmul.f32 %v3515, 0.7978846
      %v3548 = vmul.f32 %v3516, 0.7978846
      %v3549 = vmul.f32 %v3517, 0.7978846
      %v3550 = vmul.f32 %v3518, 0.7978846
      %v3551 = vmul.f32 %v3519, 0.7978846
      %v3552 = vmul.f32 %v3520, 0.7978846
      %v3553 = vmul.f32 %v3521, 0.7978846
      %v3554 = vmul.f32 %v3522, 0.7978846
      %v3555 = vmul.f32 %v3523, 0.7978846
      %v3556 = vmul.f32 %v3524, 0.7978846
      %v3557 = vmul.f32 %v3525, 0.7978846
      %v3558 = vmul.f32 %v3526, 0.7978846
      %v3559 = vmul.f32 %v3527, 0.7978846
      %v3560 = vmul.f32 %v3528, 0.7978846
      %v3561 = vtanh.pop %v3529
      %v3562 = vtanh.pop %v3530
      %v3563 = vtanh.pop %v3531
      %v3564 = vtanh.pop %v3532
      %v3565 = vtanh.pop %v3533
      %v3566 = vtanh.pop %v3534
      %v3567 = vtanh.pop %v3535
      %v3568 = vtanh.pop %v3536
      %v3569 = vtanh.pop %v3537
      %v3570 = vtanh.pop %v3538
      %v3571 = vtanh.pop %v3539
      %v3572 = vtanh.pop %v3540
      %v3573 = vtanh.pop %v3541
      %v3574 = vtanh.pop %v3542
      %v3575 = vtanh.pop %v3543
      %v3576 = vtanh.pop %v3544
      %v3577 = vtanh.pop %v3545
      %v3578 = vtanh.pop %v3546
      %v3579 = vtanh.pop %v3547
      %v3580 = vtanh.pop %v3548
      %v3581 = vtanh.pop %v3549
      %v3582 = vtanh.pop %v3550
      %v3583 = vtanh.pop %v3551
      %v3584 = vtanh.pop %v3552
      %v3585 = vtanh.pop %v3553
      %v3586 = vtanh.pop %v3554
      %v3587 = vtanh.pop %v3555
      %v3588 = vtanh.pop %v3556
      %v3589 = vtanh.pop %v3557
      %v3590 = vtanh.pop %v3558
      %v3591 = vtanh.pop %v3559
      %v3592 = vtanh.pop %v3560
      %v3593 = vadd.f32 %v3561, 1.0
      %v3594 = vadd.f32 %v3562, 1.0
      %v3595 = vadd.f32 %v3563, 1.0
      %v3596 = vadd.f32 %v3564, 1.0
      %v3597 = vadd.f32 %v3565, 1.0
      %v3598 = vadd.f32 %v3566, 1.0
      %v3599 = vadd.f32 %v3567, 1.0
      %v3600 = vadd.f32 %v3568, 1.0
      %v3601 = vadd.f32 %v3569, 1.0
      %v3602 = vadd.f32 %v3570, 1.0
      %v3603 = vadd.f32 %v3571, 1.0
      %v3604 = vadd.f32 %v3572, 1.0
      %v3605 = vadd.f32 %v3573, 1.0
      %v3606 = vadd.f32 %v3574, 1.0
      %v3607 = vadd.f32 %v3575, 1.0
      %v3608 = vadd.f32 %v3576, 1.0
      %v3609 = vadd.f32 %v3577, 1.0
      %v3610 = vadd.f32 %v3578, 1.0
      %v3611 = vadd.f32 %v3579, 1.0
      %v3612 = vadd.f32 %v3580, 1.0
      %v3613 = vadd.f32 %v3581, 1.0
      %v3614 = vadd.f32 %v3582, 1.0
      %v3615 = vadd.f32 %v3583, 1.0
      %v3616 = vadd.f32 %v3584, 1.0
      %v3617 = vadd.f32 %v3585, 1.0
      %v3618 = vadd.f32 %v3586, 1.0
      %v3619 = vadd.f32 %v3587, 1.0
      %v3620 = vadd.f32 %v3588, 1.0
      %v3621 = vadd.f32 %v3589, 1.0
      %v3622 = vadd.f32 %v3590, 1.0
      %v3623 = vadd.f32 %v3591, 1.0
      %v3624 = vadd.f32 %v3592, 1.0
      %v3625 = vmul.f32 %v3369, %v3593
      %v3626 = vmul.f32 %v3370, %v3594
      %v3627 = vmul.f32 %v3371, %v3595
      %v3628 = vmul.f32 %v3372, %v3596
      %v3629 = vmul.f32 %v3373, %v3597
      %v3630 = vmul.f32 %v3374, %v3598
      %v3631 = vmul.f32 %v3375, %v3599
      %v3632 = vmul.f32 %v3376, %v3600
      %v3633 = vmul.f32 %v3377, %v3601
      %v3634 = vmul.f32 %v3378, %v3602
      %v3635 = vmul.f32 %v3379, %v3603
      %v3636 = vmul.f32 %v3380, %v3604
      %v3637 = vmul.f32 %v3381, %v3605
      %v3638 = vmul.f32 %v3382, %v3606
      %v3639 = vmul.f32 %v3383, %v3607
      %v3640 = vmul.f32 %v3384, %v3608
      %v3641 = vmul.f32 %v3385, %v3609
      %v3642 = vmul.f32 %v3386, %v3610
      %v3643 = vmul.f32 %v3387, %v3611
      %v3644 = vmul.f32 %v3388, %v3612
      %v3645 = vmul.f32 %v3389, %v3613
      %v3646 = vmul.f32 %v3390, %v3614
      %v3647 = vmul.f32 %v3391, %v3615
      %v3648 = vmul.f32 %v3392, %v3616
      %v3649 = vmul.f32 %v3393, %v3617
      %v3650 = vmul.f32 %v3394, %v3618
      %v3651 = vmul.f32 %v3395, %v3619
      %v3652 = vmul.f32 %v3396, %v3620
      %v3653 = vmul.f32 %v3397, %v3621
      %v3654 = vmul.f32 %v3398, %v3622
      %v3655 = vmul.f32 %v3399, %v3623
      %v3656 = vmul.f32 %v3400, %v3624
      %v3657 = vlaneseq
      %v3658 = vshrl.u32 %v3657, 7
      %v3659 = vsub.s32 0, %v3658
      %v3660 = vrot.slane %v265, %v3659
      %v3662 = vsel %vm482, %v3625, 0
      %v3665 = vsel %vm482, %v3626, 0
      %v3668 = vsel %vm482, %v3627, 0
      %v3671 = vsel %vm482, %v3628, 0
      %v3674 = vsel %vm482, %v3629, 0
      %v3677 = vsel %vm482, %v3630, 0
      %v3680 = vsel %vm482, %v3631, 0
      %v3683 = vsel %vm482, %v3632, 0
      %v3686 = vsel %vm482, %v3633, 0
      %v3689 = vsel %vm482, %v3634, 0
      %v3692 = vsel %vm482, %v3635, 0
      %v3695 = vsel %vm482, %v3636, 0
      %v3698 = vsel %vm482, %v3637, 0
      %v3701 = vsel %vm482, %v3638, 0
      %v3704 = vsel %vm482, %v3639, 0
      %v3707 = vsel %vm482, %v3640, 0
      %v3710 = vsel %vm482, %v3641, 0
      %v3713 = vsel %vm482, %v3642, 0
      %v3716 = vsel %vm482, %v3643, 0
      %v3719 = vsel %vm482, %v3644, 0
      %v3722 = vsel %vm482, %v3645, 0
      %v3725 = vsel %vm482, %v3646, 0
      %v3728 = vsel %vm482, %v3647, 0
      %v3731 = vsel %vm482, %v3648, 0
      %v3734 = vsel %vm482, %v3649, 0
      %v3737 = vsel %vm482, %v3650, 0
      %v3740 = vsel %vm482, %v3651, 0
      %v3743 = vsel %vm482, %v3652, 0
      %v3746 = vsel %vm482, %v3653, 0
      %v3749 = vsel %vm482, %v3654, 0
      %v3752 = vsel %vm482, %v3655, 0
      %v3755 = vsel %vm482, %v3656, 0
      %3757 = vmatprep.subr.mxu0 0.0
      %3758 = vmatpush1.msra.mxu0 0.0
      %3759 = vmatprep.subr.mxu0 0.0
      %3760 = vmatpush1.msra.mxu0 0.0
      %3761 = vmatprep.subr.mxu0 0.0
      %3762 = vmatpush1.msra.mxu0 0.0
      %3763 = vmatprep.subr.mxu0 0.0
      %3764 = vmatpush1.msra.mxu0 0.0
      %3765 = vmatprep.subr.mxu0 0.0
      %3766 = vmatpush1.msra.mxu0 0.0
      %3767 = vmatprep.subr.mxu0 0.0
      %3768 = vmatpush1.msra.mxu0 0.0
      %3769 = vmatprep.subr.mxu0 0.0
      %3770 = vmatpush1.msra.mxu0 0.0
      %3771 = vmatprep.subr.mxu0 0.0
      %3772 = vmatpush1.msra.mxu0 0.0
      %3773 = vmatprep.subr.mxu0 0.0
      %3774 = vmatpush1.msra.mxu0 %v259
      %3775 = vmatprep.subr.mxu0 0.0
      %3776 = vmatpush1.msra.mxu0 %v258
      %3777 = vmatprep.subr.mxu0 0.0
      %3778 = vmatpush1.msra.mxu0 %v257
      %3779 = vmatprep.subr.mxu0 0.0
      %3780 = vmatpush1.msra.mxu0 %v256
      %3781 = vmatprep.subr.mxu0 0.0
      %3782 = vmatpush1.msra.mxu0 %v255
      %3783 = vmatprep.subr.mxu0 0.0
      %3784 = vmatpush1.msra.mxu0 %v254
      %3785 = vmatprep.subr.mxu0 0.0
      %3786 = vmatpush1.msra.mxu0 %v253
      %3787 = vmatprep.subr.mxu0 0.0
      %3788 = vmatpush1.msra.mxu0 %v252
      %3789 = vmatprep.subr.mxu0 0.0
      %3790 = vmatpush2.msra.mxu0 0.0
      %3791 = vmatprep.subr.mxu0 0.0
      %3792 = vmatpush2.msra.mxu0 0.0
      %3793 = vmatprep.subr.mxu0 0.0
      %3794 = vmatpush2.msra.mxu0 0.0
      %3795 = vmatprep.subr.mxu0 0.0
      %3796 = vmatpush2.msra.mxu0 0.0
      %3797 = vmatprep.subr.mxu0 0.0
      %3798 = vmatpush2.msra.mxu0 0.0
      %3799 = vmatprep.subr.mxu0 0.0
      %3800 = vmatpush2.msra.mxu0 0.0
      %3801 = vmatprep.subr.mxu0 0.0
      %3802 = vmatpush2.msra.mxu0 0.0
      %3803 = vmatprep.subr.mxu0 0.0
      %3804 = vmatpush2.msra.mxu0 0.0
      %3805 = vmatprep.subr.mxu0 0.0
      %3806 = vmatpush2.msra.mxu0 0.0
      %3807 = vmatprep.subr.mxu0 0.0
      %3808 = vmatpush2.msra.mxu0 0.0
      %3809 = vmatprep.subr.mxu0 0.0
      %3810 = vmatpush2.msra.mxu0 0.0
      %3811 = vmatprep.subr.mxu0 0.0
      %3812 = vmatpush2.msra.mxu0 0.0
      %3813 = vmatprep.subr.mxu0 0.0
      %3814 = vmatpush2.msra.mxu0 0.0
      %3815 = vmatprep.subr.mxu0 0.0
      %3816 = vmatpush2.msra.mxu0 0.0
      %3817 = vmatprep.subr.mxu0 0.0
      %3818 = vmatpush2.msra.mxu0 0.0
      %3819 = vmatprep.subr.mxu0 0.0
      %3820 = vmatpush2.msra.mxu0 0.0
      %3821 = vmatprep.mubr.f32.mxu0 0.0
      %3822 = vmatmul.mubr.f32.gmra.mxu0 %v3662
      %v3823 = vpop.f32.mrf.mxu0
      %v3824 = vadd.f32 %v3660, %v3823
      %v3825 = vpop.f32.mrf.mxu0
      %3826 = vmatprep.mubr.f32.mxu0 0.0
      %3827 = vmatmul.mubr.f32.gmra.mxu0 %v3665
      %v3828 = vpop.f32.mrf.mxu0
      %v3829 = vadd.f32 %v3660, %v3828
      %v3830 = vpop.f32.mrf.mxu0
      %3831 = vmatprep.mubr.f32.mxu0 0.0
      %3832 = vmatmul.mubr.f32.gmra.mxu0 %v3668
      %v3833 = vpop.f32.mrf.mxu0
      %v3834 = vadd.f32 %v3660, %v3833
      %v3835 = vpop.f32.mrf.mxu0
      %3836 = vmatprep.mubr.f32.mxu0 0.0
      %3837 = vmatmul.mubr.f32.gmra.mxu0 %v3671
      %v3838 = vpop.f32.mrf.mxu0
      %v3839 = vadd.f32 %v3660, %v3838
      %v3840 = vpop.f32.mrf.mxu0
      %3841 = vmatprep.mubr.f32.mxu0 0.0
      %3842 = vmatmul.mubr.f32.gmra.mxu0 %v3674
      %v3843 = vpop.f32.mrf.mxu0
      %v3844 = vadd.f32 %v3660, %v3843
      %v3845 = vpop.f32.mrf.mxu0
      %3846 = vmatprep.mubr.f32.mxu0 0.0
      %3847 = vmatmul.mubr.f32.gmra.mxu0 %v3677
      %v3848 = vpop.f32.mrf.mxu0
      %v3849 = vadd.f32 %v3660, %v3848
      %v3850 = vpop.f32.mrf.mxu0
      %3851 = vmatprep.mubr.f32.mxu0 0.0
      %3852 = vmatmul.mubr.f32.gmra.mxu0 %v3680
      %v3853 = vpop.f32.mrf.mxu0
      %v3854 = vadd.f32 %v3660, %v3853
      %v3855 = vpop.f32.mrf.mxu0
      %3856 = vmatprep.mubr.f32.mxu0 0.0
      %3857 = vmatmul.mubr.f32.gmra.mxu0 %v3683
      %v3858 = vpop.f32.mrf.mxu0
      %v3859 = vadd.f32 %v3660, %v3858
      %v3860 = vpop.f32.mrf.mxu0
      %3861 = vmatprep.mubr.f32.mxu0 0.0
      %3862 = vmatmul.mubr.f32.gmra.mxu0 %v3686
      %v3863 = vpop.f32.mrf.mxu0
      %v3864 = vadd.f32 %v3660, %v3863
      %v3865 = vpop.f32.mrf.mxu0
      %3866 = vmatprep.mubr.f32.mxu0 0.0
      %3867 = vmatmul.mubr.f32.gmra.mxu0 %v3689
      %v3868 = vpop.f32.mrf.mxu0
      %v3869 = vadd.f32 %v3660, %v3868
      %v3870 = vpop.f32.mrf.mxu0
      %3871 = vmatprep.mubr.f32.mxu0 0.0
      %3872 = vmatmul.mubr.f32.gmra.mxu0 %v3692
      %v3873 = vpop.f32.mrf.mxu0
      %v3874 = vadd.f32 %v3660, %v3873
      %v3875 = vpop.f32.mrf.mxu0
      %3876 = vmatprep.mubr.f32.mxu0 0.0
      %3877 = vmatmul.mubr.f32.gmra.mxu0 %v3695
      %v3878 = vpop.f32.mrf.mxu0
      %v3879 = vadd.f32 %v3660, %v3878
      %v3880 = vpop.f32.mrf.mxu0
      %3881 = vmatprep.mubr.f32.mxu0 0.0
      %3882 = vmatmul.mubr.f32.gmra.mxu0 %v3698
      %v3883 = vpop.f32.mrf.mxu0
      %v3884 = vadd.f32 %v3660, %v3883
      %v3885 = vpop.f32.mrf.mxu0
      %3886 = vmatprep.mubr.f32.mxu0 0.0
      %3887 = vmatmul.mubr.f32.gmra.mxu0 %v3701
      %v3888 = vpop.f32.mrf.mxu0
      %v3889 = vadd.f32 %v3660, %v3888
      %v3890 = vpop.f32.mrf.mxu0
      %3891 = vmatprep.mubr.f32.mxu0 0.0
      %3892 = vmatmul.mubr.f32.gmra.mxu0 %v3704
      %v3893 = vpop.f32.mrf.mxu0
      %v3894 = vadd.f32 %v3660, %v3893
      %v3895 = vpop.f32.mrf.mxu0
      %3896 = vmatprep.mubr.f32.mxu0 0.0
      %3897 = vmatmul.mubr.f32.gmra.mxu0 %v3707
      %v3898 = vpop.f32.mrf.mxu0
      %v3899 = vadd.f32 %v3660, %v3898
      %v3900 = vpop.f32.mrf.mxu0
      %3901 = vmatprep.mubr.f32.mxu0 0.0
      %3902 = vmatmul.mubr.f32.gmra.mxu0 %v3710
      %v3903 = vpop.f32.mrf.mxu0
      %v3904 = vadd.f32 %v3660, %v3903
      %v3905 = vpop.f32.mrf.mxu0
      %3906 = vmatprep.mubr.f32.mxu0 0.0
      %3907 = vmatmul.mubr.f32.gmra.mxu0 %v3713
      %v3908 = vpop.f32.mrf.mxu0
      %v3909 = vadd.f32 %v3660, %v3908
      %v3910 = vpop.f32.mrf.mxu0
      %3911 = vmatprep.mubr.f32.mxu0 0.0
      %3912 = vmatmul.mubr.f32.gmra.mxu0 %v3716
      %v3913 = vpop.f32.mrf.mxu0
      %v3914 = vadd.f32 %v3660, %v3913
      %v3915 = vpop.f32.mrf.mxu0
      %3916 = vmatprep.mubr.f32.mxu0 0.0
      %3917 = vmatmul.mubr.f32.gmra.mxu0 %v3719
      %v3918 = vpop.f32.mrf.mxu0
      %v3919 = vadd.f32 %v3660, %v3918
      %v3920 = vpop.f32.mrf.mxu0
      %3921 = vmatprep.mubr.f32.mxu0 0.0
      %3922 = vmatmul.mubr.f32.gmra.mxu0 %v3722
      %v3923 = vpop.f32.mrf.mxu0
      %v3924 = vadd.f32 %v3660, %v3923
      %v3925 = vpop.f32.mrf.mxu0
      %3926 = vmatprep.mubr.f32.mxu0 0.0
      %3927 = vmatmul.mubr.f32.gmra.mxu0 %v3725
      %v3928 = vpop.f32.mrf.mxu0
      %v3929 = vadd.f32 %v3660, %v3928
      %v3930 = vpop.f32.mrf.mxu0
      %3931 = vmatprep.mubr.f32.mxu0 0.0
      %3932 = vmatmul.mubr.f32.gmra.mxu0 %v3728
      %v3933 = vpop.f32.mrf.mxu0
      %v3934 = vadd.f32 %v3660, %v3933
      %v3935 = vpop.f32.mrf.mxu0
      %3936 = vmatprep.mubr.f32.mxu0 0.0
      %3937 = vmatmul.mubr.f32.gmra.mxu0 %v3731
      %v3938 = vpop.f32.mrf.mxu0
      %v3939 = vadd.f32 %v3660, %v3938
      %v3940 = vpop.f32.mrf.mxu0
      %3941 = vmatprep.mubr.f32.mxu0 0.0
      %3942 = vmatmul.mubr.f32.gmra.mxu0 %v3734
      %v3943 = vpop.f32.mrf.mxu0
      %v3944 = vadd.f32 %v3660, %v3943
      %v3945 = vpop.f32.mrf.mxu0
      %3946 = vmatprep.mubr.f32.mxu0 0.0
      %3947 = vmatmul.mubr.f32.gmra.mxu0 %v3737
      %v3948 = vpop.f32.mrf.mxu0
      %v3949 = vadd.f32 %v3660, %v3948
      %v3950 = vpop.f32.mrf.mxu0
      %3951 = vmatprep.mubr.f32.mxu0 0.0
      %3952 = vmatmul.mubr.f32.gmra.mxu0 %v3740
      %v3953 = vpop.f32.mrf.mxu0
      %v3954 = vadd.f32 %v3660, %v3953
      %v3955 = vpop.f32.mrf.mxu0
      %3956 = vmatprep.mubr.f32.mxu0 0.0
      %3957 = vmatmul.mubr.f32.gmra.mxu0 %v3743
      %v3958 = vpop.f32.mrf.mxu0
      %v3959 = vadd.f32 %v3660, %v3958
      %v3960 = vpop.f32.mrf.mxu0
      %3961 = vmatprep.mubr.f32.mxu0 0.0
      %3962 = vmatmul.mubr.f32.gmra.mxu0 %v3746
      %v3963 = vpop.f32.mrf.mxu0
      %v3964 = vadd.f32 %v3660, %v3963
      %v3965 = vpop.f32.mrf.mxu0
      %3966 = vmatprep.mubr.f32.mxu0 0.0
      %3967 = vmatmul.mubr.f32.gmra.mxu0 %v3749
      %v3968 = vpop.f32.mrf.mxu0
      %v3969 = vadd.f32 %v3660, %v3968
      %v3970 = vpop.f32.mrf.mxu0
      %3971 = vmatprep.mubr.f32.mxu0 0.0
      %3972 = vmatmul.mubr.f32.gmra.mxu0 %v3752
      %v3973 = vpop.f32.mrf.mxu0
      %v3974 = vadd.f32 %v3660, %v3973
      %v3975 = vpop.f32.mrf.mxu0
      %3976 = vmatprep.mubr.f32.mxu0 0.0
      %3977 = vmatmul.mubr.f32.gmra.mxu0 %v3755
      %v3978 = vpop.f32.mrf.mxu0
      %v3979 = vadd.f32 %v3660, %v3978
      %v3980 = vpop.f32.mrf.mxu0
      %3981 = vdwg.mxu0
      %v3982 = vmul.f32 %v3824, 0.5
      %v3983 = vmul.f32 %v3829, 0.5
      %v3984 = vmul.f32 %v3834, 0.5
      %v3985 = vmul.f32 %v3839, 0.5
      %v3986 = vmul.f32 %v3844, 0.5
      %v3987 = vmul.f32 %v3849, 0.5
      %v3988 = vmul.f32 %v3854, 0.5
      %v3989 = vmul.f32 %v3859, 0.5
      %v3990 = vmul.f32 %v3864, 0.5
      %v3991 = vmul.f32 %v3869, 0.5
      %v3992 = vmul.f32 %v3874, 0.5
      %v3993 = vmul.f32 %v3879, 0.5
      %v3994 = vmul.f32 %v3884, 0.5
      %v3995 = vmul.f32 %v3889, 0.5
      %v3996 = vmul.f32 %v3894, 0.5
      %v3997 = vmul.f32 %v3899, 0.5
      %v3998 = vmul.f32 %v3904, 0.5
      %v3999 = vmul.f32 %v3909, 0.5
      %v4000 = vmul.f32 %v3914, 0.5
      %v4001 = vmul.f32 %v3919, 0.5
      %v4002 = vmul.f32 %v3924, 0.5
      %v4003 = vmul.f32 %v3929, 0.5
      %v4004 = vmul.f32 %v3934, 0.5
      %v4005 = vmul.f32 %v3939, 0.5
      %v4006 = vmul.f32 %v3944, 0.5
      %v4007 = vmul.f32 %v3949, 0.5
      %v4008 = vmul.f32 %v3954, 0.5
      %v4009 = vmul.f32 %v3959, 0.5
      %v4010 = vmul.f32 %v3964, 0.5
      %v4011 = vmul.f32 %v3969, 0.5
      %v4012 = vmul.f32 %v3974, 0.5
      %v4013 = vmul.f32 %v3979, 0.5
      %v4014 = vmul.f32 %v3824, 0.044715
      %v4015 = vmul.f32 %v3829, 0.044715
      %v4016 = vmul.f32 %v3834, 0.044715
      %v4017 = vmul.f32 %v3839, 0.044715
      %v4018 = vmul.f32 %v3844, 0.044715
      %v4019 = vmul.f32 %v3849, 0.044715
      %v4020 = vmul.f32 %v3854, 0.044715
      %v4021 = vmul.f32 %v3859, 0.044715
      %v4022 = vmul.f32 %v3864, 0.044715
      %v4023 = vmul.f32 %v3869, 0.044715
      %v4024 = vmul.f32 %v3874, 0.044715
      %v4025 = vmul.f32 %v3879, 0.044715
      %v4026 = vmul.f32 %v3884, 0.044715
      %v4027 = vmul.f32 %v3889, 0.044715
      %v4028 = vmul.f32 %v3894, 0.044715
      %v4029 = vmul.f32 %v3899, 0.044715
      %v4030 = vmul.f32 %v3904, 0.044715
      %v4031 = vmul.f32 %v3909, 0.044715
      %v4032 = vmul.f32 %v3914, 0.044715
      %v4033 = vmul.f32 %v3919, 0.044715
      %v4034 = vmul.f32 %v3924, 0.044715
      %v4035 = vmul.f32 %v3929, 0.044715
      %v4036 = vmul.f32 %v3934, 0.044715
      %v4037 = vmul.f32 %v3939, 0.044715
      %v4038 = vmul.f32 %v3944, 0.044715
      %v4039 = vmul.f32 %v3949, 0.044715
      %v4040 = vmul.f32 %v3954, 0.044715
      %v4041 = vmul.f32 %v3959, 0.044715
      %v4042 = vmul.f32 %v3964, 0.044715
      %v4043 = vmul.f32 %v3969, 0.044715
      %v4044 = vmul.f32 %v3974, 0.044715
      %v4045 = vmul.f32 %v3979, 0.044715
      %v4046 = vmul.f32 %v4014, %v3824
      %v4047 = vmul.f32 %v4015, %v3829
      %v4048 = vmul.f32 %v4016, %v3834
      %v4049 = vmul.f32 %v4017, %v3839
      %v4050 = vmul.f32 %v4018, %v3844
      %v4051 = vmul.f32 %v4019, %v3849
      %v4052 = vmul.f32 %v4020, %v3854
      %v4053 = vmul.f32 %v4021, %v3859
      %v4054 = vmul.f32 %v4022, %v3864
      %v4055 = vmul.f32 %v4023, %v3869
      %v4056 = vmul.f32 %v4024, %v3874
      %v4057 = vmul.f32 %v4025, %v3879
      %v4058 = vmul.f32 %v4026, %v3884
      %v4059 = vmul.f32 %v4027, %v3889
      %v4060 = vmul.f32 %v4028, %v3894
      %v4061 = vmul.f32 %v4029, %v3899
      %v4062 = vmul.f32 %v4030, %v3904
      %v4063 = vmul.f32 %v4031, %v3909
      %v4064 = vmul.f32 %v4032, %v3914
      %v4065 = vmul.f32 %v4033, %v3919
      %v4066 = vmul.f32 %v4034, %v3924
      %v4067 = vmul.f32 %v4035, %v3929
      %v4068 = vmul.f32 %v4036, %v3934
      %v4069 = vmul.f32 %v4037, %v3939
      %v4070 = vmul.f32 %v4038, %v3944
      %v4071 = vmul.f32 %v4039, %v3949
      %v4072 = vmul.f32 %v4040, %v3954
      %v4073 = vmul.f32 %v4041, %v3959
      %v4074 = vmul.f32 %v4042, %v3964
      %v4075 = vmul.f32 %v4043, %v3969
      %v4076 = vmul.f32 %v4044, %v3974
      %v4077 = vmul.f32 %v4045, %v3979
      %v4078 = vmul.f32 %v4046, %v3824
      %v4079 = vmul.f32 %v4047, %v3829
      %v4080 = vmul.f32 %v4048, %v3834
      %v4081 = vmul.f32 %v4049, %v3839
      %v4082 = vmul.f32 %v4050, %v3844
      %v4083 = vmul.f32 %v4051, %v3849
      %v4084 = vmul.f32 %v4052, %v3854
      %v4085 = vmul.f32 %v4053, %v3859
      %v4086 = vmul.f32 %v4054, %v3864
      %v4087 = vmul.f32 %v4055, %v3869
      %v4088 = vmul.f32 %v4056, %v3874
      %v4089 = vmul.f32 %v4057, %v3879
      %v4090 = vmul.f32 %v4058, %v3884
      %v4091 = vmul.f32 %v4059, %v3889
      %v4092 = vmul.f32 %v4060, %v3894
      %v4093 = vmul.f32 %v4061, %v3899
      %v4094 = vmul.f32 %v4062, %v3904
      %v4095 = vmul.f32 %v4063, %v3909
      %v4096 = vmul.f32 %v4064, %v3914
      %v4097 = vmul.f32 %v4065, %v3919
      %v4098 = vmul.f32 %v4066, %v3924
      %v4099 = vmul.f32 %v4067, %v3929
      %v4100 = vmul.f32 %v4068, %v3934
      %v4101 = vmul.f32 %v4069, %v3939
      %v4102 = vmul.f32 %v4070, %v3944
      %v4103 = vmul.f32 %v4071, %v3949
      %v4104 = vmul.f32 %v4072, %v3954
      %v4105 = vmul.f32 %v4073, %v3959
      %v4106 = vmul.f32 %v4074, %v3964
      %v4107 = vmul.f32 %v4075, %v3969
      %v4108 = vmul.f32 %v4076, %v3974
      %v4109 = vmul.f32 %v4077, %v3979
      %v4110 = vadd.f32 %v3824, %v4078
      %v4111 = vadd.f32 %v3829, %v4079
      %v4112 = vadd.f32 %v3834, %v4080
      %v4113 = vadd.f32 %v3839, %v4081
      %v4114 = vadd.f32 %v3844, %v4082
      %v4115 = vadd.f32 %v3849, %v4083
      %v4116 = vadd.f32 %v3854, %v4084
      %v4117 = vadd.f32 %v3859, %v4085
      %v4118 = vadd.f32 %v3864, %v4086
      %v4119 = vadd.f32 %v3869, %v4087
      %v4120 = vadd.f32 %v3874, %v4088
      %v4121 = vadd.f32 %v3879, %v4089
      %v4122 = vadd.f32 %v3884, %v4090
      %v4123 = vadd.f32 %v3889, %v4091
      %v4124 = vadd.f32 %v3894, %v4092
      %v4125 = vadd.f32 %v3899, %v4093
      %v4126 = vadd.f32 %v3904, %v4094
      %v4127 = vadd.f32 %v3909, %v4095
      %v4128 = vadd.f32 %v3914, %v4096
      %v4129 = vadd.f32 %v3919, %v4097
      %v4130 = vadd.f32 %v3924, %v4098
      %v4131 = vadd.f32 %v3929, %v4099
      %v4132 = vadd.f32 %v3934, %v4100
      %v4133 = vadd.f32 %v3939, %v4101
      %v4134 = vadd.f32 %v3944, %v4102
      %v4135 = vadd.f32 %v3949, %v4103
      %v4136 = vadd.f32 %v3954, %v4104
      %v4137 = vadd.f32 %v3959, %v4105
      %v4138 = vadd.f32 %v3964, %v4106
      %v4139 = vadd.f32 %v3969, %v4107
      %v4140 = vadd.f32 %v3974, %v4108
      %v4141 = vadd.f32 %v3979, %v4109
      %v4142 = vmul.f32 %v4110, 0.7978846
      %v4143 = vmul.f32 %v4111, 0.7978846
      %v4144 = vmul.f32 %v4112, 0.7978846
      %v4145 = vmul.f32 %v4113, 0.7978846
      %v4146 = vmul.f32 %v4114, 0.7978846
      %v4147 = vmul.f32 %v4115, 0.7978846
      %v4148 = vmul.f32 %v4116, 0.7978846
      %v4149 = vmul.f32 %v4117, 0.7978846
      %v4150 = vmul.f32 %v4118, 0.7978846
      %v4151 = vmul.f32 %v4119, 0.7978846
      %v4152 = vmul.f32 %v4120, 0.7978846
      %v4153 = vmul.f32 %v4121, 0.7978846
      %v4154 = vmul.f32 %v4122, 0.7978846
      %v4155 = vmul.f32 %v4123, 0.7978846
      %v4156 = vmul.f32 %v4124, 0.7978846
      %v4157 = vmul.f32 %v4125, 0.7978846
      %v4158 = vmul.f32 %v4126, 0.7978846
      %v4159 = vmul.f32 %v4127, 0.7978846
      %v4160 = vmul.f32 %v4128, 0.7978846
      %v4161 = vmul.f32 %v4129, 0.7978846
      %v4162 = vmul.f32 %v4130, 0.7978846
      %v4163 = vmul.f32 %v4131, 0.7978846
      %v4164 = vmul.f32 %v4132, 0.7978846
      %v4165 = vmul.f32 %v4133, 0.7978846
      %v4166 = vmul.f32 %v4134, 0.7978846
      %v4167 = vmul.f32 %v4135, 0.7978846
      %v4168 = vmul.f32 %v4136, 0.7978846
      %v4169 = vmul.f32 %v4137, 0.7978846
      %v4170 = vmul.f32 %v4138, 0.7978846
      %v4171 = vmul.f32 %v4139, 0.7978846
      %v4172 = vmul.f32 %v4140, 0.7978846
      %v4173 = vmul.f32 %v4141, 0.7978846
      %v4174 = vtanh.pop %v4142
      %v4175 = vtanh.pop %v4143
      %v4176 = vtanh.pop %v4144
      %v4177 = vtanh.pop %v4145
      %v4178 = vtanh.pop %v4146
      %v4179 = vtanh.pop %v4147
      %v4180 = vtanh.pop %v4148
      %v4181 = vtanh.pop %v4149
      %v4182 = vtanh.pop %v4150
      %v4183 = vtanh.pop %v4151
      %v4184 = vtanh.pop %v4152
      %v4185 = vtanh.pop %v4153
      %v4186 = vtanh.pop %v4154
      %v4187 = vtanh.pop %v4155
      %v4188 = vtanh.pop %v4156
      %v4189 = vtanh.pop %v4157
      %v4190 = vtanh.pop %v4158
      %v4191 = vtanh.pop %v4159
      %v4192 = vtanh.pop %v4160
      %v4193 = vtanh.pop %v4161
      %v4194 = vtanh.pop %v4162
      %v4195 = vtanh.pop %v4163
      %v4196 = vtanh.pop %v4164
      %v4197 = vtanh.pop %v4165
      %v4198 = vtanh.pop %v4166
      %v4199 = vtanh.pop %v4167
      %v4200 = vtanh.pop %v4168
      %v4201 = vtanh.pop %v4169
      %v4202 = vtanh.pop %v4170
      %v4203 = vtanh.pop %v4171
      %v4204 = vtanh.pop %v4172
      %v4205 = vtanh.pop %v4173
      %v4206 = vadd.f32 %v4174, 1.0
      %v4207 = vadd.f32 %v4175, 1.0
      %v4208 = vadd.f32 %v4176, 1.0
      %v4209 = vadd.f32 %v4177, 1.0
      %v4210 = vadd.f32 %v4178, 1.0
      %v4211 = vadd.f32 %v4179, 1.0
      %v4212 = vadd.f32 %v4180, 1.0
      %v4213 = vadd.f32 %v4181, 1.0
      %v4214 = vadd.f32 %v4182, 1.0
      %v4215 = vadd.f32 %v4183, 1.0
      %v4216 = vadd.f32 %v4184, 1.0
      %v4217 = vadd.f32 %v4185, 1.0
      %v4218 = vadd.f32 %v4186, 1.0
      %v4219 = vadd.f32 %v4187, 1.0
      %v4220 = vadd.f32 %v4188, 1.0
      %v4221 = vadd.f32 %v4189, 1.0
      %v4222 = vadd.f32 %v4190, 1.0
      %v4223 = vadd.f32 %v4191, 1.0
      %v4224 = vadd.f32 %v4192, 1.0
      %v4225 = vadd.f32 %v4193, 1.0
      %v4226 = vadd.f32 %v4194, 1.0
      %v4227 = vadd.f32 %v4195, 1.0
      %v4228 = vadd.f32 %v4196, 1.0
      %v4229 = vadd.f32 %v4197, 1.0
      %v4230 = vadd.f32 %v4198, 1.0
      %v4231 = vadd.f32 %v4199, 1.0
      %v4232 = vadd.f32 %v4200, 1.0
      %v4233 = vadd.f32 %v4201, 1.0
      %v4234 = vadd.f32 %v4202, 1.0
      %v4235 = vadd.f32 %v4203, 1.0
      %v4236 = vadd.f32 %v4204, 1.0
      %v4237 = vadd.f32 %v4205, 1.0
      %v4238 = vmul.f32 %v3982, %v4206
      %v4239 = vmul.f32 %v3983, %v4207
      %v4240 = vmul.f32 %v3984, %v4208
      %v4241 = vmul.f32 %v3985, %v4209
      %v4242 = vmul.f32 %v3986, %v4210
      %v4243 = vmul.f32 %v3987, %v4211
      %v4244 = vmul.f32 %v3988, %v4212
      %v4245 = vmul.f32 %v3989, %v4213
      %v4246 = vmul.f32 %v3990, %v4214
      %v4247 = vmul.f32 %v3991, %v4215
      %v4248 = vmul.f32 %v3992, %v4216
      %v4249 = vmul.f32 %v3993, %v4217
      %v4250 = vmul.f32 %v3994, %v4218
      %v4251 = vmul.f32 %v3995, %v4219
      %v4252 = vmul.f32 %v3996, %v4220
      %v4253 = vmul.f32 %v3997, %v4221
      %v4254 = vmul.f32 %v3998, %v4222
      %v4255 = vmul.f32 %v3999, %v4223
      %v4256 = vmul.f32 %v4000, %v4224
      %v4257 = vmul.f32 %v4001, %v4225
      %v4258 = vmul.f32 %v4002, %v4226
      %v4259 = vmul.f32 %v4003, %v4227
      %v4260 = vmul.f32 %v4004, %v4228
      %v4261 = vmul.f32 %v4005, %v4229
      %v4262 = vmul.f32 %v4006, %v4230
      %v4263 = vmul.f32 %v4007, %v4231
      %v4264 = vmul.f32 %v4008, %v4232
      %v4265 = vmul.f32 %v4009, %v4233
      %v4266 = vmul.f32 %v4010, %v4234
      %v4267 = vmul.f32 %v4011, %v4235
      %v4268 = vmul.f32 %v4012, %v4236
      %v4269 = vmul.f32 %v4013, %v4237
      %4271 = vset.pattern.permute.xlu0 0
      %4272 = vperm.xlu0 %4271, %v271
      %v4273 = vpop.permute.xlu0 %4272
      %v4276 = vsel %vm482, %v270, 0
      %v4279 = vsel %vm482, %v4238, 0
      %v4282 = vsel %vm482, %v4239, 0
      %v4285 = vsel %vm482, %v4240, 0
      %v4288 = vsel %vm482, %v4241, 0
      %v4291 = vsel %vm482, %v4242, 0
      %v4294 = vsel %vm482, %v4243, 0
      %v4297 = vsel %vm482, %v4244, 0
      %v4300 = vsel %vm482, %v4245, 0
      %v4303 = vsel %vm482, %v4246, 0
      %v4306 = vsel %vm482, %v4247, 0
      %v4309 = vsel %vm482, %v4248, 0
      %v4312 = vsel %vm482, %v4249, 0
      %v4315 = vsel %vm482, %v4250, 0
      %v4318 = vsel %vm482, %v4251, 0
      %v4321 = vsel %vm482, %v4252, 0
      %v4324 = vsel %vm482, %v4253, 0
      %v4327 = vsel %vm482, %v4254, 0
      %v4330 = vsel %vm482, %v4255, 0
      %v4333 = vsel %vm482, %v4256, 0
      %v4336 = vsel %vm482, %v4257, 0
      %v4339 = vsel %vm482, %v4258, 0
      %v4342 = vsel %vm482, %v4259, 0
      %v4345 = vsel %vm482, %v4260, 0
      %v4348 = vsel %vm482, %v4261, 0
      %v4351 = vsel %vm482, %v4262, 0
      %v4354 = vsel %vm482, %v4263, 0
      %v4357 = vsel %vm482, %v4264, 0
      %v4360 = vsel %vm482, %v4265, 0
      %v4363 = vsel %vm482, %v4266, 0
      %v4366 = vsel %vm482, %v4267, 0
      %v4369 = vsel %vm482, %v4268, 0
      %v4372 = vsel %vm482, %v4269, 0
      %4374 = vmatprep.subr.mxu0 0.0
      %4375 = vmatpush1.xpose.msra.mxu0 %v4324
      %4376 = vmatprep.subr.mxu0 0.0
      %4377 = vmatpush1.xpose.msra.mxu0 %v4321
      %4378 = vmatprep.subr.mxu0 0.0
      %4379 = vmatpush1.xpose.msra.mxu0 %v4318
      %4380 = vmatprep.subr.mxu0 0.0
      %4381 = vmatpush1.xpose.msra.mxu0 %v4315
      %4382 = vmatprep.subr.mxu0 0.0
      %4383 = vmatpush1.xpose.msra.mxu0 %v4312
      %4384 = vmatprep.subr.mxu0 0.0
      %4385 = vmatpush1.xpose.msra.mxu0 %v4309
      %4386 = vmatprep.subr.mxu0 0.0
      %4387 = vmatpush1.xpose.msra.mxu0 %v4306
      %4388 = vmatprep.subr.mxu0 0.0
      %4389 = vmatpush1.xpose.msra.mxu0 %v4303
      %4390 = vmatprep.subr.mxu0 0.0
      %4391 = vmatpush1.xpose.msra.mxu0 %v4300
      %4392 = vmatprep.subr.mxu0 0.0
      %4393 = vmatpush1.xpose.msra.mxu0 %v4297
      %4394 = vmatprep.subr.mxu0 0.0
      %4395 = vmatpush1.xpose.msra.mxu0 %v4294
      %4396 = vmatprep.subr.mxu0 0.0
      %4397 = vmatpush1.xpose.msra.mxu0 %v4291
      %4398 = vmatprep.subr.mxu0 0.0
      %4399 = vmatpush1.xpose.msra.mxu0 %v4288
      %4400 = vmatprep.subr.mxu0 0.0
      %4401 = vmatpush1.xpose.msra.mxu0 %v4285
      %4402 = vmatprep.subr.mxu0 0.0
      %4403 = vmatpush1.xpose.msra.mxu0 %v4282
      %4404 = vmatprep.subr.mxu0 0.0
      %4405 = vmatpush1.xpose.msra.mxu0 %v4279
      %4406 = vmatprep.subr.mxu0 0.0
      %4407 = vmatpush2.xpose.msra.mxu0 %v4372
      %4408 = vmatprep.subr.mxu0 0.0
      %4409 = vmatpush2.xpose.msra.mxu0 %v4369
      %4410 = vmatprep.subr.mxu0 0.0
      %4411 = vmatpush2.xpose.msra.mxu0 %v4366
      %4412 = vmatprep.subr.mxu0 0.0
      %4413 = vmatpush2.xpose.msra.mxu0 %v4363
      %4414 = vmatprep.subr.mxu0 0.0
      %4415 = vmatpush2.xpose.msra.mxu0 %v4360
      %4416 = vmatprep.subr.mxu0 0.0
      %4417 = vmatpush2.xpose.msra.mxu0 %v4357
      %4418 = vmatprep.subr.mxu0 0.0
      %4419 = vmatpush2.xpose.msra.mxu0 %v4354
      %4420 = vmatprep.subr.mxu0 0.0
      %4421 = vmatpush2.xpose.msra.mxu0 %v4351
      %4422 = vmatprep.subr.mxu0 0.0
      %4423 = vmatpush2.xpose.msra.mxu0 %v4348
      %4424 = vmatprep.subr.mxu0 0.0
      %4425 = vmatpush2.xpose.msra.mxu0 %v4345
      %4426 = vmatprep.subr.mxu0 0.0
      %4427 = vmatpush2.xpose.msra.mxu0 %v4342
      %4428 = vmatprep.subr.mxu0 0.0
      %4429 = vmatpush2.xpose.msra.mxu0 %v4339
      %4430 = vmatprep.subr.mxu0 0.0
      %4431 = vmatpush2.xpose.msra.mxu0 %v4336
      %4432 = vmatprep.subr.mxu0 0.0
      %4433 = vmatpush2.xpose.msra.mxu0 %v4333
      %4434 = vmatprep.subr.mxu0 0.0
      %4435 = vmatpush2.xpose.msra.mxu0 %v4330
      %4436 = vmatprep.subr.mxu0 0.0
      %4437 = vmatpush2.xpose.msra.mxu0 %v4327
      %4438 = vmatprep.mubr.f32.mxu0 0.0
      %4439 = vmatmul.mubr.f32.gmra.mxu0 %v4276
      %v4440 = vpop.f32.mrf.mxu0
      %v4441 = vadd.f32 %v4273, %v4440
      %v4442 = vpop.f32.mrf.mxu0
      %v4443 = vadd.f32 %v4273, %v4442
      %4444 = vdwg.mxu0
      %vm4445 = vcmask 64512
      %v4447 = vsel %vm4445, 1.0, 0
      %v4450 = vsel %vm4445, %v1928, 0
      %v4453 = vsel %vm4445, %v1929, 0
      %v4456 = vsel %vm4445, %v1942, 0
      %v4459 = vsel %vm4445, %v1943, 0
      %v4462 = vsel %vm4445, %v1956, 0
      %v4465 = vsel %vm4445, %v1957, 0
      %v4468 = vsel %vm4445, %v1970, 0
      %v4471 = vsel %vm4445, %v1971, 0
      %v4474 = vsel %vm4445, %v2122, 0
      %v4477 = vsel %vm4445, %v2123, 0
      %v4480 = vsel %vm4445, %v2138, 0
      %v4483 = vsel %vm4445, %v2139, 0
      %v4486 = vsel %vm4445, %v2152, 0
      %v4489 = vsel %vm4445, %v2153, 0
      %v4492 = vsel %vm4445, %v2166, 0
      %v4495 = vsel %vm4445, %v2167, 0
      %v4498 = vsel %vm4445, %v2318, 0
      %v4501 = vsel %vm4445, %v2319, 0
      %v4504 = vsel %vm4445, %v2332, 0
      %v4507 = vsel %vm4445, %v2333, 0
      %v4510 = vsel %vm4445, %v2348, 0
      %v4513 = vsel %vm4445, %v2349, 0
      %v4516 = vsel %vm4445, %v2362, 0
      %v4519 = vsel %vm4445, %v2363, 0
      %v4522 = vsel %vm4445, %v2514, 0
      %v4525 = vsel %vm4445, %v2515, 0
      %v4528 = vsel %vm4445, %v2528, 0
      %v4531 = vsel %vm4445, %v2529, 0
      %v4534 = vsel %vm4445, %v2542, 0
      %v4537 = vsel %vm4445, %v2543, 0
      %v4540 = vsel %vm4445, %v2558, 0
      %v4543 = vsel %vm4445, %v2559, 0
      %4545 = vmatprep.subr.mxu0 0.0
      %4546 = vmatpush1.xpose.msra.mxu0 %v4495
      %4547 = vmatprep.subr.mxu0 0.0
      %4548 = vmatpush1.xpose.msra.mxu0 %v4492
      %4549 = vmatprep.subr.mxu0 0.0
      %4550 = vmatpush1.xpose.msra.mxu0 %v4489
      %4551 = vmatprep.subr.mxu0 0.0
      %4552 = vmatpush1.xpose.msra.mxu0 %v4486
      %4553 = vmatprep.subr.mxu0 0.0
      %4554 = vmatpush1.xpose.msra.mxu0 %v4483
      %4555 = vmatprep.subr.mxu0 0.0
      %4556 = vmatpush1.xpose.msra.mxu0 %v4480
      %4557 = vmatprep.subr.mxu0 0.0
      %4558 = vmatpush1.xpose.msra.mxu0 %v4477
      %4559 = vmatprep.subr.mxu0 0.0
      %4560 = vmatpush1.xpose.msra.mxu0 %v4474
      %4561 = vmatprep.subr.mxu0 0.0
      %4562 = vmatpush1.xpose.msra.mxu0 %v4471
      %4563 = vmatprep.subr.mxu0 0.0
      %4564 = vmatpush1.xpose.msra.mxu0 %v4468
      %4565 = vmatprep.subr.mxu0 0.0
      %4566 = vmatpush1.xpose.msra.mxu0 %v4465
      %4567 = vmatprep.subr.mxu0 0.0
      %4568 = vmatpush1.xpose.msra.mxu0 %v4462
      %4569 = vmatprep.subr.mxu0 0.0
      %4570 = vmatpush1.xpose.msra.mxu0 %v4459
      %4571 = vmatprep.subr.mxu0 0.0
      %4572 = vmatpush1.xpose.msra.mxu0 %v4456
      %4573 = vmatprep.subr.mxu0 0.0
      %4574 = vmatpush1.xpose.msra.mxu0 %v4453
      %4575 = vmatprep.subr.mxu0 0.0
      %4576 = vmatpush1.xpose.msra.mxu0 %v4450
      %4577 = vmatprep.subr.mxu0 0.0
      %4578 = vmatpush2.xpose.msra.mxu0 %v4543
      %4579 = vmatprep.subr.mxu0 0.0
      %4580 = vmatpush2.xpose.msra.mxu0 %v4540
      %4581 = vmatprep.subr.mxu0 0.0
      %4582 = vmatpush2.xpose.msra.mxu0 %v4537
      %4583 = vmatprep.subr.mxu0 0.0
      %4584 = vmatpush2.xpose.msra.mxu0 %v4534
      %4585 = vmatprep.subr.mxu0 0.0
      %4586 = vmatpush2.xpose.msra.mxu0 %v4531
      %4587 = vmatprep.subr.mxu0 0.0
      %4588 = vmatpush2.xpose.msra.mxu0 %v4528
      %4589 = vmatprep.subr.mxu0 0.0
      %4590 = vmatpush2.xpose.msra.mxu0 %v4525
      %4591 = vmatprep.subr.mxu0 0.0
      %4592 = vmatpush2.xpose.msra.mxu0 %v4522
      %4593 = vmatprep.subr.mxu0 0.0
      %4594 = vmatpush2.xpose.msra.mxu0 %v4519
      %4595 = vmatprep.subr.mxu0 0.0
      %4596 = vmatpush2.xpose.msra.mxu0 %v4516
      %4597 = vmatprep.subr.mxu0 0.0
      %4598 = vmatpush2.xpose.msra.mxu0 %v4513
      %4599 = vmatprep.subr.mxu0 0.0
      %4600 = vmatpush2.xpose.msra.mxu0 %v4510
      %4601 = vmatprep.subr.mxu0 0.0
      %4602 = vmatpush2.xpose.msra.mxu0 %v4507
      %4603 = vmatprep.subr.mxu0 0.0
      %4604 = vmatpush2.xpose.msra.mxu0 %v4504
      %4605 = vmatprep.subr.mxu0 0.0
      %4606 = vmatpush2.xpose.msra.mxu0 %v4501
      %4607 = vmatprep.subr.mxu0 0.0
      %4608 = vmatpush2.xpose.msra.mxu0 %v4498
      %4609 = vmatprep.mubr.f32.mxu0 0.0
      %4610 = vmatmul.mubr.f32.gmra.mxu0 %v4447
      %v4611 = vpop.f32.mrf.mxu0
      %v4612 = vadd.f32 0.0, %v4611
      %v4613 = vpop.f32.mrf.mxu0
      %v4614 = vadd.f32 0.0, %v4613
      %4615 = vdwg.mxu0
      %v4618 = vrot.slane %v4612, 7
      %v4619 = vrot.slane %v4614, 7
      %vm4622 = vcmask 1040384
      %v4623 = vsel %vm4622, %v4441, %v4618
      %v4624 = vsel %vm4622, %v4443, %v4619
      %v4627 = vcombine.low %v4623, %v4624
      %v4629 = vunpack.c.l.s4 1983009808
      %v4630 = vunpack.c.0.s8 %v4629
      %v4631 = vlaneseq
      %v4632 = vshrl.u32 %v4631, 7
      %v4633 = vsub.s32 %v4630, %v4632
      %v4634 = vrot.slane %v4627, %v4633
      %4636 = vst [vmem:[%s197] sm:$0xf] %v4634
      %p4637 = scmp.lt.s32.totalorder %s15, 1
      %s4638 = scalar_select %p4637, %s15, 1
      %s4639 = smul.addr %s4638, 2
      %s4640 = smul.addr %s4639, 2
      %s4641 = scalar_lea.vmem %s4, %s4640
      // Predicated region
      $region37: #{transformer_critic_forward.1} parent=35 // pred_check
        %p4642 = pneg %p122
      $region38: #{transformer_critic_forward.1} parent=35 // pred_check_branch
        %4644 = sbr.rel (%p4642) target = $region40
      $region39: #{transformer_critic_forward.1} parent=35 // pred_region
        _
      $region40: #{transformer_critic_forward.1} parent=35 // pred_fallthru
        _
    $region36: #{transformer_critic_forward.1} parent=5 // pred_fallthru
      _
    %p4645 = scmp.le.s32.totalorder 2, %s10
    // Predicated region
    $region41: #{transformer_critic_forward.1} parent=5 // pred_check
      %p4646 = pneg %p4645
    $region42: #{transformer_critic_forward.1} parent=5 // pred_check_branch
      %4648 = sbr.rel (%p4646) target = $region44
    $region43: #{transformer_critic_forward.1} parent=5 // pred_region
      %s4649 = ssub.s32 %s10, 2
      // Predicated region
      $region45: #{transformer_critic_forward.1} parent=43 // pred_check
        %p4650 = pneg %p128
      $region46: #{transformer_critic_forward.1} parent=43 // pred_check_branch
        %4652 = sbr.rel (%p4650) target = $region48
      $region47: #{transformer_critic_forward.1} parent=43 // pred_region
        %p4653 = scmp.lt.s32.totalorder %s16, 1
        %s4654 = scalar_select %p4653, %s16, 1
        %s4655 = smul.addr %s4654, 2
        %s4656 = smul.addr %s4655, 2
        %s4657 = scalar_lea.vmem %s4, %s4656
      $region48: #{transformer_critic_forward.1} parent=43 // pred_fallthru
        _
    $region44: #{transformer_critic_forward.1} parent=5 // pred_fallthru
      _
  $region6: #{transformer_critic_forward.1} parent=0 // loop_footer
    %s14 = sadd.s32 1, %s10
  $region7: #{transformer_critic_forward.1} parent=0 // loop_footer_branch
    %9 = sbr.rel target = $region3
  $region8: #{transformer_critic_forward.1} parent=0 // loop_exit
    _

</llo_original>
